<compile_context>
chip_gen: v6e
topology: v6e:2x2x1
jax: 0.10.0
libtpu: 0.0.40
codegen_flags: <defaults>
</compile_context>

<pallas_src>
import functools
import math

import jax
import jax.numpy as jnp
from jax import lax
from jax.experimental import pallas as pl
from jax.experimental.pallas import tpu as pltpu


_LOG_FLOOR = 1e-30   # smallest log2 argument we allow (keeps it a normal f32 on TPU)


# ----------------------------------------------------------------------------------
# Hardware-aware sizing
# ----------------------------------------------------------------------------------
@functools.lru_cache(maxsize=None)
def _vmem_budget():
    """(vmem_limit_bytes, native-dtype block byte target) derived from this chip's VMEM."""
    try:
        cap = int(pltpu.get_tpu_info().vmem_capacity_bytes)   # 128 MiB v5e/v6e, 64 MiB/TC v7x
    except Exception:
        cap = 64 << 20                                        # conservative (v7x-safe) fallback
    vmem_limit = min((cap * 5) // 8, 96 << 20)                # ~80 MiB on 128-MiB parts, 40 MiB on v7x
    # Working set per grid step ~= 2 double-buffered native blocks + ~5 f32-sized temporaries
    # (worst case bf16 ~= 12x the native block), so keep the block <= 1/16 of the limit.
    block_bytes = max(512 << 10, min(4 << 20, vmem_limit // 16))
    return int(vmem_limit), int(block_bytes)


def _pick_tile(num_mats, n, itemsize, block_bytes):
    """Matrices per grid step: near the per-generation byte target, no divisor constraint."""
    mat_bytes = max(1, n * n * itemsize)
    tile = int(max(1, min(num_mats, block_bytes // mat_bytes)))
    num_blocks = pl.cdiv(num_mats, tile)
    if num_blocks == 1 and num_mats >= 2 and num_mats * mat_bytes >= (512 << 10):
        num_blocks = 2                       # give the second TensorCore work (megacore parts)
    return pl.cdiv(num_mats, num_blocks)     # rebalance so blocks are near-equal


# ----------------------------------------------------------------------------------
# Kernel: one grid step = `tile` whole (n, n) matrices -> per-matrix partials
# ----------------------------------------------------------------------------------
def _loss_partials_kernel(a_ref, out_ref, *, n, smooth):
    """out block is (1, tile, 128) f32.  For matrix r in the block:
         lane 0: p_loss(r)  = relu(min-row normalized entropy - 0.9) * 10
         lane 1: sl1_sum(r) = sum over the matrix of SmoothL1(n*a, n*a^T)
    """
    a = a_ref[...].astype(jnp.float32)                        # (tile, n, n)
    # TODO(synk): for bf16 inputs, keep the |a - a^T| chain in packed bf16 (2x VALU throughput
    #             on v6e/v7x) once re-validated against the f32 reference.
    tile = a.shape[0]
    nf = float(n)

    # --- entropy branch ------------------------------------------------------------
    if smooth >= _LOG_FLOOR:
        safe = a + smooth
    else:
        # smooth (default 1e-40) is subnormal -> flushed to 0 on TPU; clamp instead so the
        # a == 0 contribution is 0 (matches PyTorch) rather than 0 * log2(0) = NaN.
        safe = jnp.maximum(a, _LOG_FLOOR)
    plogp = a * jnp.log2(safe)
    # TODO(synk): if a bundle dump shows the XLU slot saturating, move this row-sum and the
    #             transpose below onto the idle MXU (ones / identity matmul, f32 accumulate).
    ent = -jnp.sum(plogp, axis=-1)                                       # (tile, n), unnormalized
    ent_min = jnp.min(ent, axis=-1, keepdims=True) * (1.0 / math.log2(nf))   # (tile, 1)
    p_per_mat = jnp.maximum(ent_min - 0.9, 0.0) * 10.0                   # (tile, 1)

    # --- symmetry branch -----------------------------------------------------------
    # SmoothL1(n*a, n*a^T) without a per-element select or n-scale:
    #   with d = |a - a^T| and m = min(d, 1/n):  huber(n*d) = 0.5*n^2 * m * (2d - m)
    d = jnp.abs(a - jnp.swapaxes(a, -1, -2))
    m = jnp.minimum(d, 1.0 / nf)
    t = m * (d + d - m)
    s_per_mat = jnp.sum(jnp.sum(t, axis=-1), axis=-1, keepdims=True) * (0.5 * nf * nf)  # (tile, 1)

    lane = lax.broadcasted_iota(jnp.int32, (tile, 128), 1)
    out_ref[0] = jnp.where(lane == 0, p_per_mat,
                           jnp.where(lane == 1, s_per_mat, 0.0)).astype(jnp.float32)


def _block_partials(a, tile, smooth, vmem_limit):
    """a: (M, n, n) native dtype.  Returns per-matrix (p_loss, sl1_sum), each shape (M,)."""
    m_total, n, _ = a.shape
    num_blocks = pl.cdiv(m_total, tile)
    kernel = functools.partial(_loss_partials_kernel, n=n, smooth=smooth)
    per_mat = pl.pallas_call(
        kernel,
        out_shape=jax.ShapeDtypeStruct((num_blocks, tile, 128), jnp.float32),
        grid=(num_blocks,),
        # TODO(synk): on v5e, try pipeline_mode=pl.Buffered(3) here if a profile shows exposed
        #             DMA waits (the VMEM budget above leaves headroom for a 3rd buffer).
        in_specs=[pl.BlockSpec((tile, n, n), lambda i: (i, 0, 0))],
        out_specs=pl.BlockSpec((1, tile, 128), lambda i: (i, 0, 0)),
        compiler_params=pltpu.CompilerParams(
            dimension_semantics=("parallel",),
            vmem_limit_bytes=int(vmem_limit)),
    )(a)
    # Drop the (unspecified-content) tail rows of a partial last block outside the kernel.
    per_mat = per_mat.reshape(num_blocks * tile, 128)[:m_total]
    return per_mat[:, 0], per_mat[:, 1]


# ----------------------------------------------------------------------------------
# Per-layer / per-group drivers
# ----------------------------------------------------------------------------------
def _layer_loss_term_pallas(attn, smooth, block_bytes, vmem_limit):
    """0.8*clamp(mean_sl1, 0.1) + 0.2*mean(p_loss) for one (b, h, n, n) layer (no stack copy)."""
    b, h, n, _ = attn.shape
    bh = b * h
    a = attn.reshape(bh, n, n)                                # native dtype, read in place
    tile = _pick_tile(bh, n, jnp.dtype(attn.dtype).itemsize, block_bytes)
    p_mat, s_mat = _block_partials(a, tile, smooth, vmem_limit)
    p_mean = jnp.sum(p_mat) / jnp.float32(bh)
    s_mean = jnp.sum(s_mat) / jnp.float32(bh * n * n)
    return 0.8 * jnp.maximum(s_mean, 0.1) + 0.2 * p_mean


def _stacked_loss_terms_pallas(stacked, smooth, vmem_limit):
    """Sum of per-layer loss terms for a stack of small same-shape layers (1 layer / grid step)."""
    lg, b, h, n, _ = stacked.shape
    bh = b * h
    a = stacked.reshape(lg * bh, n, n)
    p_mat, s_mat = _block_partials(a, bh, smooth, vmem_limit)
    p_mean = p_mat.reshape(lg, bh).sum(axis=1) / jnp.float32(bh)
    s_mean = jnp.maximum(s_mat.reshape(lg, bh).sum(axis=1) / jnp.float32(bh * n * n), 0.1)
    return jnp.sum(0.8 * s_mean + 0.2 * p_mean)


def _layer_loss_term_xla(attn, smooth):
    """Plain-XLA path for n < 128 (lane-starved) or very large n (VMEM-bound) layers."""
    b, h, n, _ = attn.shape
    a = attn.astype(jnp.float32)
    safe = (a + smooth) if smooth >= _LOG_FLOOR else jnp.maximum(a, _LOG_FLOOR)
    ent = -jnp.sum(a * jnp.log2(safe), axis=-1) / jnp.log2(jnp.float32(n))
    ent_min = jnp.min(ent, axis=-1)
    p_mean = jnp.mean(jnp.maximum(ent_min - 0.9, 0.0) * 10.0)
    diff = jnp.float32(n) * jnp.abs(a - jnp.swapaxes(a, -1, -2))
    sl1 = jnp.where(diff < 1.0, 0.5 * diff * diff, diff - 0.5)
    s_mean = jnp.maximum(jnp.mean(sl1), 0.1)
    return 0.8 * s_mean + 0.2 * p_mean


def selfsupervise_loss(attns, smooth=1e-40):
    """Equivalent of the PyTorch module's forward over a list of (b, h, n, n) attention tensors."""
    num_layers = len(attns)
    smooth = float(smooth)
    vmem_limit, block_bytes = _vmem_budget()

    terms = []
    stack_groups = {}
    for attn in attns:
        b, h, n, d = attn.shape
        assert n == d, "attention matrices must be square (n == d)"
        itemsize = jnp.dtype(attn.dtype).itemsize
        layer_bytes = b * h * n * n * itemsize
        single_ws = (2 * itemsize + 20) * n * n      # 1-matrix block: 2 native bufs + ~5 f32 temps
        if n < 128 or single_ws > vmem_limit:
            # n < 128: vregs would be mostly masked; huge n: single matrix blows the VMEM budget.
            # TODO(synk): (qi, kj) sub-tiled kernel (transposed operand via swapped index_map,
            #             row-entropy carry over a trailing "arbitrary" axis) for very large n.
            terms.append(_layer_loss_term_xla(attn, smooth))
        elif layer_bytes <= block_bytes:
            stack_groups.setdefault((attn.shape, str(jnp.dtype(attn.dtype))), []).append(attn)
        else:
            terms.append(_layer_loss_term_pallas(attn, smooth, block_bytes, vmem_limit))

    for group in stack_groups.values():
        if len(group) == 1:
            terms.append(_layer_loss_term_pallas(group[0], smooth, block_bytes, vmem_limit))
        else:
            # Small layers: the stack copy is negligible and one launch amortizes pipeline fill.
            terms.append(_stacked_loss_terms_pallas(jnp.stack(group), smooth, vmem_limit))

    total = jnp.float32(0.0)
    for t in terms:
        total = total + t
    return total / num_layers


def selfsupervise_loss_ref(attns, smooth=1e-40):
    """Pure-JAX reference (literal port of the PyTorch forward) for verification."""
    layer = len(attns)
    loss = jnp.float32(0.0)
    for attn in attns:
        b, h, n, d = attn.shape
        a = attn.astype(jnp.float32)
        log_a = jnp.log2(a + smooth)
        entropy = -jnp.sum(a * log_a, axis=-1) / jnp.log2(jnp.float32(n))
        entropy_min = jnp.min(entropy, axis=-1)
        p_loss = jnp.maximum(entropy_min - 0.9, 0.0) * (1.0 / 0.1)
        at = jnp.swapaxes(a, -1, -2)
        diff = jnp.abs(a * n - at * n)
        sl1 = jnp.where(diff < 1.0, 0.5 * diff * diff, diff - 0.5)
        s_loss = jnp.maximum(jnp.mean(sl1), 0.1)
        loss = loss + 0.8 * s_loss + 0.2 * jnp.mean(p_loss)
    return loss / layer


if __name__ == "__main__":
    key = jax.random.PRNGKey(0)

    def softmax_attn(k, shape, scale=1.0, dtype=jnp.float32):
        logits = scale * jax.random.normal(k, shape, dtype=jnp.float32)
        return jax.nn.softmax(logits, axis=-1).astype(dtype)

    # Check 1: the module's nominal tiny shapes (batch=2, heads=6, seq=8) -> XLA path (n < 128).
    key, k1, k2 = jax.random.split(key, 3)
    attns = [softmax_attn(k1, (2, 6, 8, 8)), softmax_attn(k2, (2, 6, 8, 8))]
    out = jax.block_until_ready(selfsupervise_loss(attns))
    ref = jax.block_until_ready(selfsupervise_loss_ref(attns))
    assert jnp.allclose(out, ref, rtol=2e-5, atol=2e-5), ("check1", out, ref)

    # Check 2: n=128, near-uniform attention (entropy branch active, p_loss > 0); small layers
    # -> one stacked pallas_call, one layer per grid step on a parallel grid.
    key, k1, k2 = jax.random.split(key, 3)
    attns = [softmax_attn(k1, (2, 6, 128, 128), scale=0.1),
             softmax_attn(k2, (2, 6, 128, 128), scale=0.1)]
    out = jax.block_until_ready(selfsupervise_loss(attns))
    ref = jax.block_until_ready(selfsupervise_loss_ref(attns))
    assert jnp.allclose(out, ref, rtol=2e-5, atol=2e-5), ("check2", out, ref)

    # Check 3: bf16, n=512 -> large layers, one pallas_call per layer (no jnp.stack HBM copy),
    # multi-block grid, native bf16 DMA + in-kernel f32 cast.
    key, k1, k2 = jax.random.split(key, 3)
    attns = [softmax_attn(k1, (2, 6, 512, 512), dtype=jnp.bfloat16),
             softmax_attn(k2, (2, 6, 512, 512), dtype=jnp.bfloat16)]
    out = jax.block_until_ready(selfsupervise_loss(attns))
    ref = jax.block_until_ready(selfsupervise_loss_ref(attns))
    assert jnp.allclose(out, ref, rtol=1e-4, atol=1e-4), ("check3", out, ref)

    # Check 4: b*h = 13 (prime) -> non-divisible tiling; partial tail block handled by slicing
    # off the invalid per-matrix rows outside the kernel.
    key, k1 = jax.random.split(key)
    attns = [softmax_attn(k1, (13, 1, 256, 256))]
    out = jax.block_until_ready(selfsupervise_loss(attns))
    ref = jax.block_until_ready(selfsupervise_loss_ref(attns))
    assert jnp.allclose(out, ref, rtol=2e-5, atol=2e-5), ("check4", out, ref)

    print("KERNEL_OK")
</pallas_src>

<mosaic_0001>
module attributes {stable_mosaic.version = 11 : i64} {
  func.func @_loss_partials_kernel(%arg0: i32, %arg1: memref<12x128x128xf32, #tpu.memory_space<vmem>>, %arg2: memref<1x12x128xf32, #tpu.memory_space<vmem>>) attributes {dimension_semantics = [#tpu.dimension_semantics<parallel>], iteration_bounds = array<i64: 2>, scalar_prefetch = 0 : i64, scratch_operands = 0 : i64, tpu.core_type = #tpu.core_type<tc>, window_params = [{transform_indices = @transform_0, window_bounds = array<i64: 12, 128, 128>}, {transform_indices = @transform_1, window_bounds = array<i64: 1, 12, 128>}]} {
    %c0 = arith.constant 0 : index
    %c0_0 = arith.constant 0 : index
    %c0_1 = arith.constant 0 : index
    %0 = vector.load %arg1[%c0, %c0_0, %c0_1] : memref<12x128x128xf32, #tpu.memory_space<vmem>>, vector<12x128x128xf32>
    %cst = arith.constant 1.000000e-30 : f32
    %1 = vector.broadcast %cst : f32 to vector<12x128x128xf32>
    %2 = arith.maximumf %0, %1 : vector<12x128x128xf32>
    %3 = math.log %2 : vector<12x128x128xf32>
    %cst_2 = arith.constant 2.000000e+00 : f32
    %4 = math.log %cst_2 : f32
    %5 = vector.broadcast %4 : f32 to vector<12x128x128xf32>
    %6 = arith.divf %3, %5 : vector<12x128x128xf32>
    %7 = arith.mulf %0, %6 : vector<12x128x128xf32>
    %cst_3 = arith.constant dense<0.000000e+00> : vector<12x128xf32>
    %8 = vector.multi_reduction <add>, %7, %cst_3 [2] : vector<12x128x128xf32> to vector<12x128xf32>
    %cst_4 = arith.constant 0.000000e+00 : f32
    %9 = vector.broadcast %cst_4 : f32 to vector<12x128xf32>
    %10 = arith.subf %9, %8 : vector<12x128xf32>
    %cst_5 = arith.constant dense<0x7F800000> : vector<12xf32>
    %11 = vector.multi_reduction <minimumf>, %10, %cst_5 [1] : vector<12x128xf32> to vector<12xf32>
    %12 = vector.shape_cast %11 : vector<12xf32> to vector<12x1xf32>
    %cst_6 = arith.constant 0.142857149 : f32
    %13 = vector.broadcast %cst_6 : f32 to vector<12x1xf32>
    %14 = arith.mulf %12, %13 : vector<12x1xf32>
    %cst_7 = arith.constant 0.899999976 : f32
    %15 = vector.broadcast %cst_7 : f32 to vector<12x1xf32>
    %16 = arith.subf %14, %15 : vector<12x1xf32>
    %cst_8 = arith.constant 0.000000e+00 : f32
    %17 = vector.broadcast %cst_8 : f32 to vector<12x1xf32>
    %18 = arith.maximumf %16, %17 : vector<12x1xf32>
    %cst_9 = arith.constant 1.000000e+01 : f32
    %19 = vector.broadcast %cst_9 : f32 to vector<12x1xf32>
    %20 = arith.mulf %18, %19 : vector<12x1xf32>
    %21 = tpu.transpose %0, [0, 2, 1] : vector<12x128x128xf32> -> vector<12x128x128xf32>
    %22 = arith.subf %0, %21 : vector<12x128x128xf32>
    %23 = math.absf %22 : vector<12x128x128xf32>
    %cst_10 = arith.constant 7.812500e-03 : f32
    %24 = vector.broadcast %cst_10 : f32 to vector<12x128x128xf32>
    %25 = arith.minimumf %23, %24 : vector<12x128x128xf32>
    %26 = arith.addf %23, %23 : vector<12x128x128xf32>
    %27 = arith.subf %26, %25 : vector<12x128x128xf32>
    %28 = arith.mulf %25, %27 : vector<12x128x128xf32>
    %cst_11 = arith.constant dense<0.000000e+00> : vector<12x128xf32>
    %29 = vector.multi_reduction <add>, %28, %cst_11 [2] : vector<12x128x128xf32> to vector<12x128xf32>
    %cst_12 = arith.constant dense<0.000000e+00> : vector<12xf32>
    %30 = vector.multi_reduction <add>, %29, %cst_12 [1] : vector<12x128xf32> to vector<12xf32>
    %31 = vector.shape_cast %30 : vector<12xf32> to vector<12x1xf32>
    %cst_13 = arith.constant 8.192000e+03 : f32
    %32 = vector.broadcast %cst_13 : f32 to vector<12x1xf32>
    %33 = arith.mulf %31, %32 : vector<12x1xf32>
    %34 = tpu.iota {dimensions = array<i32: 1>} : vector<12x128xi32>
    %c0_i32 = arith.constant 0 : i32
    %35 = vector.broadcast %c0_i32 : i32 to vector<12x128xi32>
    %36 = arith.cmpi eq, %34, %35 : vector<12x128xi32>
    %c1_i32 = arith.constant 1 : i32
    %37 = vector.broadcast %c1_i32 : i32 to vector<12x128xi32>
    %38 = arith.cmpi eq, %34, %37 : vector<12x128xi32>
    %cst_14 = arith.constant 0.000000e+00 : f32
    %39 = vector.shape_cast %33 : vector<12x1xf32> to vector<12x1xf32>
    %40 = vector.broadcast %39 : vector<12x1xf32> to vector<12x128xf32>
    %41 = vector.broadcast %cst_14 : f32 to vector<12x128xf32>
    %42 = arith.select %38, %40, %41 : vector<12x128xi1>, vector<12x128xf32>
    %43 = vector.shape_cast %20 : vector<12x1xf32> to vector<12x1xf32>
    %44 = vector.broadcast %43 : vector<12x1xf32> to vector<12x128xf32>
    %45 = arith.select %36, %44, %42 : vector<12x128xi1>, vector<12x128xf32>
    %c0_15 = arith.constant 0 : index
    %c0_16 = arith.constant 0 : index
    %c0_17 = arith.constant 0 : index
    %46 = vector.load %arg2[%c0_15, %c0_16, %c0_17] : memref<1x12x128xf32, #tpu.memory_space<vmem>>, vector<1x12x128xf32>
    %47 = vector.shape_cast %46 : vector<1x12x128xf32> to vector<12x128xf32>
    %48 = vector.shape_cast %45 : vector<12x128xf32> to vector<1x12x128xf32>
    tpu.vector_store %arg2[%c0_15, %c0_16, %c0_17], %48 {strides = array<i32>} : memref<1x12x128xf32, #tpu.memory_space<vmem>>, vector<1x12x128xf32>,
    return
  }
  func.func @transform_0(%arg0: i32) -> (i32, i32, i32) {
    %c0_i32 = arith.constant 0 : i32
    %c0_i32_0 = arith.constant 0 : i32
    %c0_i32_1 = arith.constant 0 : i32
    return %arg0, %c0_i32, %c0_i32_0 : i32, i32, i32
  }
  func.func @transform_1(%arg0: i32) -> (i32, i32, i32) {
    %c0_i32 = arith.constant 0 : i32
    %c0_i32_0 = arith.constant 0 : i32
    %c0_i32_1 = arith.constant 0 : i32
    return %arg0, %c0_i32, %c0_i32_0 : i32, i32, i32
  }
}

</mosaic_0001>

<llo_original>
// kernel: tpu_custom_call.1
$region0: #{tpu_custom_call.1}
  #allocation0 [shape = 'u32[]', space=smem, size = 0x4, offset = 0x4, fixed_abs, tag = 'smem constant byte address 0x4 - core index']
  #allocation1 [shape = 'u32[144,128]{1,0:T(1,128)}', space=vmem, size = 0x12000, scoped, tag = 'internal scratch']
  %s0 = inlined_call_operand.hbm [shape: f32[24,128,128], index: 0, kind: input, shape index: {}]
  %s1 = inlined_call_operand.vmem [shape: f32[2,12,128], index: 1, kind: output, shape index: {}]
  %s2 = sld [smem:[#allocation0]]
  $region41: #{tpu_custom_call.1} parent=0
    _
  %s4 = ssub.s32 1, %s2
  %s5 = scalar_select 0, %s4, %s2
  $region1: #{tpu_custom_call.1} parent=0
    #allocation2 [shape = 'u8[1572864]{0}', space=vmem, size = 0x180000, scoped, tag = 'input window, operand 0']
    #allocation3 [shape = 's32[2]{0}', space=sflag, size = 0x8, scoped, tag = 'scoped memory for tpu_custom_call.1']
    %6 = vsyncpa [#allocation3], 0
    %s7 = scalar_lea.sflag [#allocation3], 1
    %8 = vsyncpa %s7, 0
    loop: start=0, step=1, limit=4
    $region2: #{tpu_custom_call.1} parent=1 // loop_pre_header
      _
    $region3: #{tpu_custom_call.1} parent=1 // loop_header
      %s10 = sphi 0, %s14
      %p11 = scmp.ge.s32.totalorder %s10, 4
      %s20 = sphi 0, %s22
      %s23 = sphi 0, %s20
      %s24 = sphi 0, %s23
      %s40 = sphi 0, %s24
      %s46 = sphi 0, %s48
      %s49 = sphi 0, %s46
      %s50 = sphi 0, %s49
      %s66 = sphi 0, %s50
    $region4: #{tpu_custom_call.1} parent=1 // loop_header_branch
      %13 = sbr.rel (%p11) target = $region8
    $region5: #{tpu_custom_call.1} parent=1 // loop_body
      %s15 = ssub.s32 %s10, 1
      %s16 = ssub.s32 %s10, 2
      %s17 = sadd.s32 %s10, 1
      %s18 = ssub.s32 %s10, %s17
      %p19 = scmp.eq.s32.totalorder %s18, 0
      %s21 = sadd.s32 %s20, 1
      %s22 = scalar_select %p19, %s20, %s21
      %p25 = pneg %p19
      %p26 = scmp.eq.s32.totalorder %s10, 1
      %p27 = por %p25, %p26
      %p28 = scmp.ne.s32.totalorder %s20, %s23
      %p29 = scmp.eq.s32.totalorder %s10, 0
      %p30 = por %p28, %p29
      %p31 = scmp.ne.s32.totalorder %s20, %s23
      %p32 = scmp.eq.s32.totalorder %s15, 1
      %p33 = por %p31, %p32
      %p34 = scmp.ne.s32.totalorder %s23, %s24
      %p35 = scmp.eq.s32.totalorder %s15, 0
      %p36 = por %p34, %p35
      %p37 = scmp.ne.s32.totalorder %s23, %s24
      %p38 = scmp.eq.s32.totalorder %s16, 1
      %p39 = por %p37, %p38
      %p41 = scmp.ne.s32.totalorder %s24, %s40
      %p42 = scmp.eq.s32.totalorder %s16, 0
      %p43 = por %p41, %p42
      %s44 = ssub.s32 %s10, %s17
      %p45 = scmp.eq.s32.totalorder %s44, 0
      %s47 = sadd.s32 %s46, 1
      %s48 = scalar_select %p45, %s46, %s47
      %p51 = pneg %p45
      %p52 = scmp.eq.s32.totalorder %s10, 1
      %p53 = por %p51, %p52
      %p54 = scmp.ne.s32.totalorder %s46, %s49
      %p55 = scmp.eq.s32.totalorder %s10, 0
      %p56 = por %p54, %p55
      %p57 = scmp.ne.s32.totalorder %s46, %s49
      %p58 = scmp.eq.s32.totalorder %s15, 1
      %p59 = por %p57, %p58
      %p60 = scmp.ne.s32.totalorder %s49, %s50
      %p61 = scmp.eq.s32.totalorder %s15, 0
      %p62 = por %p60, %p61
      %p63 = scmp.ne.s32.totalorder %s49, %s50
      %p64 = scmp.eq.s32.totalorder %s16, 1
      %p65 = por %p63, %p64
      %p67 = scmp.ne.s32.totalorder %s50, %s66
      %p68 = scmp.eq.s32.totalorder %s16, 0
      %p69 = por %p67, %p68
      %p70 = scmp.le.s32.totalorder 1, %s10
      %p71 = scmp.lt.s32.totalorder %s10, 3
      %p72 = pnand %p70, %p71
      %p73 = pneg %p72
      // Predicated region
      $region9: #{tpu_custom_call.1} parent=5 // pred_check
        _
      $region10: #{tpu_custom_call.1} parent=5 // pred_check_branch
        %75 = sbr.rel (%p72) target = $region12
      $region11: #{tpu_custom_call.1} parent=5 // pred_region
        %s76 = ssub.s32 %s10, 1
      $region12: #{tpu_custom_call.1} parent=5 // pred_fallthru
        _
      %p77 = scmp.lt.s32.totalorder %s10, 2
      // Predicated region
      $region13: #{tpu_custom_call.1} parent=5 // pred_check
        %p78 = pneg %p77
      $region14: #{tpu_custom_call.1} parent=5 // pred_check_branch
        %80 = sbr.rel (%p78) target = $region16
      $region15: #{tpu_custom_call.1} parent=5 // pred_region
        // Predicated region
        $region17: #{tpu_custom_call.1} parent=15 // pred_check
          %p81 = pneg %p30
        $region18: #{tpu_custom_call.1} parent=15 // pred_check_branch
          %83 = sbr.rel (%p81) target = $region20
        $region19: #{tpu_custom_call.1} parent=15 // pred_region
          %s84 = sand.u32 %s20, 1
          %s85 = scalar_lea.sflag [#allocation3], %s84
          %s86 = sand.u32 %s20, 1
          %s87 = smul.addr %s86, 1536
          %s88 = scalar_lea.vmem [#allocation2], %s87
          %s89 = smul.u32 12, %s10
          %s91 = ssub.s32 24576, 24576
          %92 = vsyncadd %s85, %s91
          %s93 = smul.addr %s89, 16
          %s94 = smul.addr %s93, 128
          %s95 = scalar_lea.hbm %s0, %s94
          %s96 = sshll.u32 %s88, 4
          %s97 = int_to_ptr.vmem [resolvable:$true] %s96
          %102 = dma.hbm_to_vmem [thread:$0]  %s95, 24576, %s97, %s85, 128, 128, 8
        $region20: #{tpu_custom_call.1} parent=15 // pred_fallthru
          _
      $region16: #{tpu_custom_call.1} parent=5 // pred_fallthru
        _
      %p103 = scmp.le.s32.totalorder 1, %s10
      %p104 = scmp.lt.s32.totalorder %s10, 3
      %p105 = pnand %p103, %p104
      %p106 = pneg %p105
      // Predicated region
      $region21: #{tpu_custom_call.1} parent=5 // pred_check
        _
      $region22: #{tpu_custom_call.1} parent=5 // pred_check_branch
        %108 = sbr.rel (%p105) target = $region24
      $region23: #{tpu_custom_call.1} parent=5 // pred_region
        %s109 = ssub.s32 %s10, 1
        %s110 = sand.u32 %s23, 1
        %s111 = scalar_lea.sflag [#allocation3], %s110
        %s112 = sand.u32 %s23, 1
        %s113 = smul.addr %s112, 1536
        %s114 = scalar_lea.vmem [#allocation2], %s113
        // Predicated region
        $region25: #{tpu_custom_call.1} parent=23 // pred_check
          %p115 = pneg %p36
        $region26: #{tpu_custom_call.1} parent=23 // pred_check_branch
          %117 = sbr.rel (%p115) target = $region28
        $region27: #{tpu_custom_call.1} parent=23 // pred_region
          %118 = dma.done %s111, 24576
        $region28: #{tpu_custom_call.1} parent=23 // pred_fallthru
          _
        %s119 = sand.u32 %s23, 1
        %s120 = scalar_lea.sflag [#allocation3], %s119
        %s121 = sand.u32 %s23, 1
        %s122 = smul.addr %s121, 1536
        %s123 = scalar_lea.vmem [#allocation2], %s122
        %p124 = pneg %p36
        %p125 = pneg %p33
        %p126 = pneg %p62
        %p127 = pneg %p59
        %p128 = scmp.lt.s32.totalorder %s15, 1
        %s129 = scalar_select %p128, %s15, 1
        %s130 = smul.addr %s129, 2
        %s131 = smul.addr %s130, 8
        %s132 = scalar_lea.vmem %s1, %s131
        %s133 = smul.u32 12, %s15
        %p134 = scmp.lt.s32.totalorder %s15, 1
        %s135 = scalar_select %p134, %s15, 1
        %s136 = smul.addr %s135, 2
        %s137 = smul.addr %s136, 8
        %s138 = scalar_lea.vmem %s1, %s137
        %v139 = vld [vmem:[%s114] sm:$0xff]
        %v140 = vld [vmem:[%s114 + $0x8] sm:$0xff]
        %v141 = vld [vmem:[%s114 + $0x10] sm:$0xff]
        %v142 = vld [vmem:[%s114 + $0x18] sm:$0xff]
        %v143 = vld [vmem:[%s114 + $0x20] sm:$0xff]
        %v144 = vld [vmem:[%s114 + $0x28] sm:$0xff]
        %v145 = vld [vmem:[%s114 + $0x30] sm:$0xff]
        %v146 = vld [vmem:[%s114 + $0x38] sm:$0xff]
        %v147 = vld [vmem:[%s114 + $0x40] sm:$0xff]
        %v148 = vld [vmem:[%s114 + $0x48] sm:$0xff]
        %v149 = vld [vmem:[%s114 + $0x50] sm:$0xff]
        %v150 = vld [vmem:[%s114 + $0x58] sm:$0xff]
        %v151 = vld [vmem:[%s114 + $0x60] sm:$0xff]
        %v152 = vld [vmem:[%s114 + $0x68] sm:$0xff]
        %v153 = vld [vmem:[%s114 + $0x70] sm:$0xff]
        %v154 = vld [vmem:[%s114 + $0x78] sm:$0xff]
        %v155 = vld [vmem:[%s114 + $0x80] sm:$0xff]
        %v156 = vld [vmem:[%s114 + $0x88] sm:$0xff]
        %v157 = vld [vmem:[%s114 + $0x90] sm:$0xff]
        %v158 = vld [vmem:[%s114 + $0x98] sm:$0xff]
        %v159 = vld [vmem:[%s114 + $0xa0] sm:$0xff]
        %v160 = vld [vmem:[%s114 + $0xa8] sm:$0xff]
        %v161 = vld [vmem:[%s114 + $0xb0] sm:$0xff]
        %v162 = vld [vmem:[%s114 + $0xb8] sm:$0xff]
        %v163 = vld [vmem:[%s114 + $0xc0] sm:$0xff]
        %v164 = vld [vmem:[%s114 + $0xc8] sm:$0xff]
        %v165 = vld [vmem:[%s114 + $0xd0] sm:$0xff]
        %v166 = vld [vmem:[%s114 + $0xd8] sm:$0xff]
        %v167 = vld [vmem:[%s114 + $0xe0] sm:$0xff]
        %v168 = vld [vmem:[%s114 + $0xe8] sm:$0xff]
        %v169 = vld [vmem:[%s114 + $0xf0] sm:$0xff]
        %v170 = vld [vmem:[%s114 + $0xf8] sm:$0xff]
        %v171 = vld [vmem:[%s114 + $0x100] sm:$0xff]
        %v172 = vld [vmem:[%s114 + $0x108] sm:$0xff]
        %v173 = vld [vmem:[%s114 + $0x110] sm:$0xff]
        %v174 = vld [vmem:[%s114 + $0x118] sm:$0xff]
        %v175 = vld [vmem:[%s114 + $0x120] sm:$0xff]
        %v176 = vld [vmem:[%s114 + $0x128] sm:$0xff]
        %v177 = vld [vmem:[%s114 + $0x130] sm:$0xff]
        %v178 = vld [vmem:[%s114 + $0x138] sm:$0xff]
        %v179 = vld [vmem:[%s114 + $0x140] sm:$0xff]
        %v180 = vld [vmem:[%s114 + $0x148] sm:$0xff]
        %v181 = vld [vmem:[%s114 + $0x150] sm:$0xff]
        %v182 = vld [vmem:[%s114 + $0x158] sm:$0xff]
        %v183 = vld [vmem:[%s114 + $0x160] sm:$0xff]
        %v184 = vld [vmem:[%s114 + $0x168] sm:$0xff]
        %v185 = vld [vmem:[%s114 + $0x170] sm:$0xff]
        %v186 = vld [vmem:[%s114 + $0x178] sm:$0xff]
        %v187 = vld [vmem:[%s114 + $0x180] sm:$0xff]
        %v188 = vld [vmem:[%s114 + $0x188] sm:$0xff]
        %v189 = vld [vmem:[%s114 + $0x190] sm:$0xff]
        %v190 = vld [vmem:[%s114 + $0x198] sm:$0xff]
        %v191 = vld [vmem:[%s114 + $0x1a0] sm:$0xff]
        %v192 = vld [vmem:[%s114 + $0x1a8] sm:$0xff]
        %v193 = vld [vmem:[%s114 + $0x1b0] sm:$0xff]
        %v194 = vld [vmem:[%s114 + $0x1b8] sm:$0xff]
        %v195 = vld [vmem:[%s114 + $0x1c0] sm:$0xff]
        %v196 = vld [vmem:[%s114 + $0x1c8] sm:$0xff]
        %v197 = vld [vmem:[%s114 + $0x1d0] sm:$0xff]
        %v198 = vld [vmem:[%s114 + $0x1d8] sm:$0xff]
        %v199 = vld [vmem:[%s114 + $0x1e0] sm:$0xff]
        %v200 = vld [vmem:[%s114 + $0x1e8] sm:$0xff]
        %v201 = vld [vmem:[%s114 + $0x1f0] sm:$0xff]
        %v202 = vld [vmem:[%s114 + $0x1f8] sm:$0xff]
        %v203 = vld [vmem:[%s114 + $0x200] sm:$0xff]
        %v204 = vld [vmem:[%s114 + $0x208] sm:$0xff]
        %v205 = vld [vmem:[%s114 + $0x210] sm:$0xff]
        %v206 = vld [vmem:[%s114 + $0x218] sm:$0xff]
        %v207 = vld [vmem:[%s114 + $0x220] sm:$0xff]
        %v208 = vld [vmem:[%s114 + $0x228] sm:$0xff]
        %v209 = vld [vmem:[%s114 + $0x230] sm:$0xff]
        %v210 = vld [vmem:[%s114 + $0x238] sm:$0xff]
        %v211 = vld [vmem:[%s114 + $0x240] sm:$0xff]
        %v212 = vld [vmem:[%s114 + $0x248] sm:$0xff]
        %v213 = vld [vmem:[%s114 + $0x250] sm:$0xff]
        %v214 = vld [vmem:[%s114 + $0x258] sm:$0xff]
        %v215 = vld [vmem:[%s114 + $0x260] sm:$0xff]
        %v216 = vld [vmem:[%s114 + $0x268] sm:$0xff]
        %v217 = vld [vmem:[%s114 + $0x270] sm:$0xff]
        %v218 = vld [vmem:[%s114 + $0x278] sm:$0xff]
        %v219 = vld [vmem:[%s114 + $0x280] sm:$0xff]
        %v220 = vld [vmem:[%s114 + $0x288] sm:$0xff]
        %v221 = vld [vmem:[%s114 + $0x290] sm:$0xff]
        %v222 = vld [vmem:[%s114 + $0x298] sm:$0xff]
        %v223 = vld [vmem:[%s114 + $0x2a0] sm:$0xff]
        %v224 = vld [vmem:[%s114 + $0x2a8] sm:$0xff]
        %v225 = vld [vmem:[%s114 + $0x2b0] sm:$0xff]
        %v226 = vld [vmem:[%s114 + $0x2b8] sm:$0xff]
        %v227 = vld [vmem:[%s114 + $0x2c0] sm:$0xff]
        %v228 = vld [vmem:[%s114 + $0x2c8] sm:$0xff]
        %v229 = vld [vmem:[%s114 + $0x2d0] sm:$0xff]
        %v230 = vld [vmem:[%s114 + $0x2d8] sm:$0xff]
        %v231 = vld [vmem:[%s114 + $0x2e0] sm:$0xff]
        %v232 = vld [vmem:[%s114 + $0x2e8] sm:$0xff]
        %v233 = vld [vmem:[%s114 + $0x2f0] sm:$0xff]
        %v234 = vld [vmem:[%s114 + $0x2f8] sm:$0xff]
        %v235 = vld [vmem:[%s114 + $0x300] sm:$0xff]
        %v236 = vld [vmem:[%s114 + $0x308] sm:$0xff]
        %v237 = vld [vmem:[%s114 + $0x310] sm:$0xff]
        %v238 = vld [vmem:[%s114 + $0x318] sm:$0xff]
        %v239 = vld [vmem:[%s114 + $0x320] sm:$0xff]
        %v240 = vld [vmem:[%s114 + $0x328] sm:$0xff]
        %v241 = vld [vmem:[%s114 + $0x330] sm:$0xff]
        %v242 = vld [vmem:[%s114 + $0x338] sm:$0xff]
        %v243 = vld [vmem:[%s114 + $0x340] sm:$0xff]
        %v244 = vld [vmem:[%s114 + $0x348] sm:$0xff]
        %v245 = vld [vmem:[%s114 + $0x350] sm:$0xff]
        %v246 = vld [vmem:[%s114 + $0x358] sm:$0xff]
        %v247 = vld [vmem:[%s114 + $0x360] sm:$0xff]
        %v248 = vld [vmem:[%s114 + $0x368] sm:$0xff]
        %v249 = vld [vmem:[%s114 + $0x370] sm:$0xff]
        %v250 = vld [vmem:[%s114 + $0x378] sm:$0xff]
        %v251 = vld [vmem:[%s114 + $0x380] sm:$0xff]
        %v252 = vld [vmem:[%s114 + $0x388] sm:$0xff]
        %v253 = vld [vmem:[%s114 + $0x390] sm:$0xff]
        %v254 = vld [vmem:[%s114 + $0x398] sm:$0xff]
        %v255 = vld [vmem:[%s114 + $0x3a0] sm:$0xff]
        %v256 = vld [vmem:[%s114 + $0x3a8] sm:$0xff]
        %v257 = vld [vmem:[%s114 + $0x3b0] sm:$0xff]
        %v258 = vld [vmem:[%s114 + $0x3b8] sm:$0xff]
        %v259 = vld [vmem:[%s114 + $0x3c0] sm:$0xff]
        %v260 = vld [vmem:[%s114 + $0x3c8] sm:$0xff]
        %v261 = vld [vmem:[%s114 + $0x3d0] sm:$0xff]
        %v262 = vld [vmem:[%s114 + $0x3d8] sm:$0xff]
        %v263 = vld [vmem:[%s114 + $0x3e0] sm:$0xff]
        %v264 = vld [vmem:[%s114 + $0x3e8] sm:$0xff]
        %v265 = vld [vmem:[%s114 + $0x3f0] sm:$0xff]
        %v266 = vld [vmem:[%s114 + $0x3f8] sm:$0xff]
        %v267 = vld [vmem:[%s114 + $0x400] sm:$0xff]
        %v268 = vld [vmem:[%s114 + $0x408] sm:$0xff]
        %v269 = vld [vmem:[%s114 + $0x410] sm:$0xff]
        %v270 = vld [vmem:[%s114 + $0x418] sm:$0xff]
        %v271 = vld [vmem:[%s114 + $0x420] sm:$0xff]
        %v272 = vld [vmem:[%s114 + $0x428] sm:$0xff]
        %v273 = vld [vmem:[%s114 + $0x430] sm:$0xff]
        %v274 = vld [vmem:[%s114 + $0x438] sm:$0xff]
        %v275 = vld [vmem:[%s114 + $0x440] sm:$0xff]
        %v276 = vld [vmem:[%s114 + $0x448] sm:$0xff]
        %v277 = vld [vmem:[%s114 + $0x450] sm:$0xff]
        %v278 = vld [vmem:[%s114 + $0x458] sm:$0xff]
        %v279 = vld [vmem:[%s114 + $0x460] sm:$0xff]
        %v280 = vld [vmem:[%s114 + $0x468] sm:$0xff]
        %v281 = vld [vmem:[%s114 + $0x470] sm:$0xff]
        %v282 = vld [vmem:[%s114 + $0x478] sm:$0xff]
        %v283 = vld [vmem:[%s114 + $0x480] sm:$0xff]
        %v284 = vld [vmem:[%s114 + $0x488] sm:$0xff]
        %v285 = vld [vmem:[%s114 + $0x490] sm:$0xff]
        %v286 = vld [vmem:[%s114 + $0x498] sm:$0xff]
        %v287 = vld [vmem:[%s114 + $0x4a0] sm:$0xff]
        %v288 = vld [vmem:[%s114 + $0x4a8] sm:$0xff]
        %v289 = vld [vmem:[%s114 + $0x4b0] sm:$0xff]
        %v290 = vld [vmem:[%s114 + $0x4b8] sm:$0xff]
        %v291 = vld [vmem:[%s114 + $0x4c0] sm:$0xff]
        %v292 = vld [vmem:[%s114 + $0x4c8] sm:$0xff]
        %v293 = vld [vmem:[%s114 + $0x4d0] sm:$0xff]
        %v294 = vld [vmem:[%s114 + $0x4d8] sm:$0xff]
        %v295 = vld [vmem:[%s114 + $0x4e0] sm:$0xff]
        %v296 = vld [vmem:[%s114 + $0x4e8] sm:$0xff]
        %v297 = vld [vmem:[%s114 + $0x4f0] sm:$0xff]
        %v298 = vld [vmem:[%s114 + $0x4f8] sm:$0xff]
        %v299 = vld [vmem:[%s114 + $0x500] sm:$0xff]
        %v300 = vld [vmem:[%s114 + $0x508] sm:$0xff]
        %v301 = vld [vmem:[%s114 + $0x510] sm:$0xff]
        %v302 = vld [vmem:[%s114 + $0x518] sm:$0xff]
        %v303 = vld [vmem:[%s114 + $0x520] sm:$0xff]
        %v304 = vld [vmem:[%s114 + $0x528] sm:$0xff]
        %v305 = vld [vmem:[%s114 + $0x530] sm:$0xff]
        %v306 = vld [vmem:[%s114 + $0x538] sm:$0xff]
        %v307 = vld [vmem:[%s114 + $0x540] sm:$0xff]
        %v308 = vld [vmem:[%s114 + $0x548] sm:$0xff]
        %v309 = vld [vmem:[%s114 + $0x550] sm:$0xff]
        %v310 = vld [vmem:[%s114 + $0x558] sm:$0xff]
        %v311 = vld [vmem:[%s114 + $0x560] sm:$0xff]
        %v312 = vld [vmem:[%s114 + $0x568] sm:$0xff]
        %v313 = vld [vmem:[%s114 + $0x570] sm:$0xff]
        %v314 = vld [vmem:[%s114 + $0x578] sm:$0xff]
        %v315 = vld [vmem:[%s114 + $0x580] sm:$0xff]
        %v316 = vld [vmem:[%s114 + $0x588] sm:$0xff]
        %v317 = vld [vmem:[%s114 + $0x590] sm:$0xff]
        %v318 = vld [vmem:[%s114 + $0x598] sm:$0xff]
        %v319 = vld [vmem:[%s114 + $0x5a0] sm:$0xff]
        %v320 = vld [vmem:[%s114 + $0x5a8] sm:$0xff]
        %v321 = vld [vmem:[%s114 + $0x5b0] sm:$0xff]
        %v322 = vld [vmem:[%s114 + $0x5b8] sm:$0xff]
        %v323 = vld [vmem:[%s114 + $0x5c0] sm:$0xff]
        %v324 = vld [vmem:[%s114 + $0x5c8] sm:$0xff]
        %v325 = vld [vmem:[%s114 + $0x5d0] sm:$0xff]
        %v326 = vld [vmem:[%s114 + $0x5d8] sm:$0xff]
        %v327 = vld [vmem:[%s114 + $0x5e0] sm:$0xff]
        %v328 = vld [vmem:[%s114 + $0x5e8] sm:$0xff]
        %v329 = vld [vmem:[%s114 + $0x5f0] sm:$0xff]
        %v330 = vld [vmem:[%s114 + $0x5f8] sm:$0xff]
        %v331 = vmax.f32 %v139, 1e-30
        %v332 = vmax.f32 %v140, 1e-30
        %v333 = vmax.f32 %v141, 1e-30
        %v334 = vmax.f32 %v142, 1e-30
        %v335 = vmax.f32 %v143, 1e-30
        %v336 = vmax.f32 %v144, 1e-30
        %v337 = vmax.f32 %v145, 1e-30
        %v338 = vmax.f32 %v146, 1e-30
        %v339 = vmax.f32 %v147, 1e-30
        %v340 = vmax.f32 %v148, 1e-30
        %v341 = vmax.f32 %v149, 1e-30
        %v342 = vmax.f32 %v150, 1e-30
        %v343 = vmax.f32 %v151, 1e-30
        %v344 = vmax.f32 %v152, 1e-30
        %v345 = vmax.f32 %v153, 1e-30
        %v346 = vmax.f32 %v154, 1e-30
        %v347 = vmax.f32 %v155, 1e-30
        %v348 = vmax.f32 %v156, 1e-30
        %v349 = vmax.f32 %v157, 1e-30
        %v350 = vmax.f32 %v158, 1e-30
        %v351 = vmax.f32 %v159, 1e-30
        %v352 = vmax.f32 %v160, 1e-30
        %v353 = vmax.f32 %v161, 1e-30
        %v354 = vmax.f32 %v162, 1e-30
        %v355 = vmax.f32 %v163, 1e-30
        %v356 = vmax.f32 %v164, 1e-30
        %v357 = vmax.f32 %v165, 1e-30
        %v358 = vmax.f32 %v166, 1e-30
        %v359 = vmax.f32 %v167, 1e-30
        %v360 = vmax.f32 %v168, 1e-30
        %v361 = vmax.f32 %v169, 1e-30
        %v362 = vmax.f32 %v170, 1e-30
        %v363 = vmax.f32 %v171, 1e-30
        %v364 = vmax.f32 %v172, 1e-30
        %v365 = vmax.f32 %v173, 1e-30
        %v366 = vmax.f32 %v174, 1e-30
        %v367 = vmax.f32 %v175, 1e-30
        %v368 = vmax.f32 %v176, 1e-30
        %v369 = vmax.f32 %v177, 1e-30
        %v370 = vmax.f32 %v178, 1e-30
        %v371 = vmax.f32 %v179, 1e-30
        %v372 = vmax.f32 %v180, 1e-30
        %v373 = vmax.f32 %v181, 1e-30
        %v374 = vmax.f32 %v182, 1e-30
        %v375 = vmax.f32 %v183, 1e-30
        %v376 = vmax.f32 %v184, 1e-30
        %v377 = vmax.f32 %v185, 1e-30
        %v378 = vmax.f32 %v186, 1e-30
        %v379 = vmax.f32 %v187, 1e-30
        %v380 = vmax.f32 %v188, 1e-30
        %v381 = vmax.f32 %v189, 1e-30
        %v382 = vmax.f32 %v190, 1e-30
        %v383 = vmax.f32 %v191, 1e-30
        %v384 = vmax.f32 %v192, 1e-30
        %v385 = vmax.f32 %v193, 1e-30
        %v386 = vmax.f32 %v194, 1e-30
        %v387 = vmax.f32 %v195, 1e-30
        %v388 = vmax.f32 %v196, 1e-30
        %v389 = vmax.f32 %v197, 1e-30
        %v390 = vmax.f32 %v198, 1e-30
        %v391 = vmax.f32 %v199, 1e-30
        %v392 = vmax.f32 %v200, 1e-30
        %v393 = vmax.f32 %v201, 1e-30
        %v394 = vmax.f32 %v202, 1e-30
        %v395 = vmax.f32 %v203, 1e-30
        %v396 = vmax.f32 %v204, 1e-30
        %v397 = vmax.f32 %v205, 1e-30
        %v398 = vmax.f32 %v206, 1e-30
        %v399 = vmax.f32 %v207, 1e-30
        %v400 = vmax.f32 %v208, 1e-30
        %v401 = vmax.f32 %v209, 1e-30
        %v402 = vmax.f32 %v210, 1e-30
        %v403 = vmax.f32 %v211, 1e-30
        %v404 = vmax.f32 %v212, 1e-30
        %v405 = vmax.f32 %v213, 1e-30
        %v406 = vmax.f32 %v214, 1e-30
        %v407 = vmax.f32 %v215, 1e-30
        %v408 = vmax.f32 %v216, 1e-30
        %v409 = vmax.f32 %v217, 1e-30
        %v410 = vmax.f32 %v218, 1e-30
        %v411 = vmax.f32 %v219, 1e-30
        %v412 = vmax.f32 %v220, 1e-30
        %v413 = vmax.f32 %v221, 1e-30
        %v414 = vmax.f32 %v222, 1e-30
        %v415 = vmax.f32 %v223, 1e-30
        %v416 = vmax.f32 %v224, 1e-30
        %v417 = vmax.f32 %v225, 1e-30
        %v418 = vmax.f32 %v226, 1e-30
        %v419 = vmax.f32 %v227, 1e-30
        %v420 = vmax.f32 %v228, 1e-30
        %v421 = vmax.f32 %v229, 1e-30
        %v422 = vmax.f32 %v230, 1e-30
        %v423 = vmax.f32 %v231, 1e-30
        %v424 = vmax.f32 %v232, 1e-30
        %v425 = vmax.f32 %v233, 1e-30
        %v426 = vmax.f32 %v234, 1e-30
        %v427 = vmax.f32 %v235, 1e-30
        %v428 = vmax.f32 %v236, 1e-30
        %v429 = vmax.f32 %v237, 1e-30
        %v430 = vmax.f32 %v238, 1e-30
        %v431 = vmax.f32 %v239, 1e-30
        %v432 = vmax.f32 %v240, 1e-30
        %v433 = vmax.f32 %v241, 1e-30
        %v434 = vmax.f32 %v242, 1e-30
        %v435 = vmax.f32 %v243, 1e-30
        %v436 = vmax.f32 %v244, 1e-30
        %v437 = vmax.f32 %v245, 1e-30
        %v438 = vmax.f32 %v246, 1e-30
        %v439 = vmax.f32 %v247, 1e-30
        %v440 = vmax.f32 %v248, 1e-30
        %v441 = vmax.f32 %v249, 1e-30
        %v442 = vmax.f32 %v250, 1e-30
        %v443 = vmax.f32 %v251, 1e-30
        %v444 = vmax.f32 %v252, 1e-30
        %v445 = vmax.f32 %v253, 1e-30
        %v446 = vmax.f32 %v254, 1e-30
        %v447 = vmax.f32 %v255, 1e-30
        %v448 = vmax.f32 %v256, 1e-30
        %v449 = vmax.f32 %v257, 1e-30
        %v450 = vmax.f32 %v258, 1e-30
        %v451 = vmax.f32 %v259, 1e-30
        %v452 = vmax.f32 %v260, 1e-30
        %v453 = vmax.f32 %v261, 1e-30
        %v454 = vmax.f32 %v262, 1e-30
        %v455 = vmax.f32 %v263, 1e-30
        %v456 = vmax.f32 %v264, 1e-30
        %v457 = vmax.f32 %v265, 1e-30
        %v458 = vmax.f32 %v266, 1e-30
        %v459 = vmax.f32 %v267, 1e-30
        %v460 = vmax.f32 %v268, 1e-30
        %v461 = vmax.f32 %v269, 1e-30
        %v462 = vmax.f32 %v270, 1e-30
        %v463 = vmax.f32 %v271, 1e-30
        %v464 = vmax.f32 %v272, 1e-30
        %v465 = vmax.f32 %v273, 1e-30
        %v466 = vmax.f32 %v274, 1e-30
        %v467 = vmax.f32 %v275, 1e-30
        %v468 = vmax.f32 %v276, 1e-30
        %v469 = vmax.f32 %v277, 1e-30
        %v470 = vmax.f32 %v278, 1e-30
        %v471 = vmax.f32 %v279, 1e-30
        %v472 = vmax.f32 %v280, 1e-30
        %v473 = vmax.f32 %v281, 1e-30
        %v474 = vmax.f32 %v282, 1e-30
        %v475 = vmax.f32 %v283, 1e-30
        %v476 = vmax.f32 %v284, 1e-30
        %v477 = vmax.f32 %v285, 1e-30
        %v478 = vmax.f32 %v286, 1e-30
        %v479 = vmax.f32 %v287, 1e-30
        %v480 = vmax.f32 %v288, 1e-30
        %v481 = vmax.f32 %v289, 1e-30
        %v482 = vmax.f32 %v290, 1e-30
        %v483 = vmax.f32 %v291, 1e-30
        %v484 = vmax.f32 %v292, 1e-30
        %v485 = vmax.f32 %v293, 1e-30
        %v486 = vmax.f32 %v294, 1e-30
        %v487 = vmax.f32 %v295, 1e-30
        %v488 = vmax.f32 %v296, 1e-30
        %v489 = vmax.f32 %v297, 1e-30
        %v490 = vmax.f32 %v298, 1e-30
        %v491 = vmax.f32 %v299, 1e-30
        %v492 = vmax.f32 %v300, 1e-30
        %v493 = vmax.f32 %v301, 1e-30
        %v494 = vmax.f32 %v302, 1e-30
        %v495 = vmax.f32 %v303, 1e-30
        %v496 = vmax.f32 %v304, 1e-30
        %v497 = vmax.f32 %v305, 1e-30
        %v498 = vmax.f32 %v306, 1e-30
        %v499 = vmax.f32 %v307, 1e-30
        %v500 = vmax.f32 %v308, 1e-30
        %v501 = vmax.f32 %v309, 1e-30
        %v502 = vmax.f32 %v310, 1e-30
        %v503 = vmax.f32 %v311, 1e-30
        %v504 = vmax.f32 %v312, 1e-30
        %v505 = vmax.f32 %v313, 1e-30
        %v506 = vmax.f32 %v314, 1e-30
        %v507 = vmax.f32 %v315, 1e-30
        %v508 = vmax.f32 %v316, 1e-30
        %v509 = vmax.f32 %v317, 1e-30
        %v510 = vmax.f32 %v318, 1e-30
        %v511 = vmax.f32 %v319, 1e-30
        %v512 = vmax.f32 %v320, 1e-30
        %v513 = vmax.f32 %v321, 1e-30
        %v514 = vmax.f32 %v322, 1e-30
        %v515 = vmax.f32 %v323, 1e-30
        %v516 = vmax.f32 %v324, 1e-30
        %v517 = vmax.f32 %v325, 1e-30
        %v518 = vmax.f32 %v326, 1e-30
        %v519 = vmax.f32 %v327, 1e-30
        %v520 = vmax.f32 %v328, 1e-30
        %v521 = vmax.f32 %v329, 1e-30
        %v522 = vmax.f32 %v330, 1e-30
        %v523 = vlog2.pop %v331
        %v524 = vmul.f32 %v523, 0.6931472
        %v525 = vlog2.pop %v332
        %v526 = vmul.f32 %v525, 0.6931472
        %v527 = vlog2.pop %v333
        %v528 = vmul.f32 %v527, 0.6931472
        %v529 = vlog2.pop %v334
        %v530 = vmul.f32 %v529, 0.6931472
        %v531 = vlog2.pop %v335
        %v532 = vmul.f32 %v531, 0.6931472
        %v533 = vlog2.pop %v336
        %v534 = vmul.f32 %v533, 0.6931472
        %v535 = vlog2.pop %v337
        %v536 = vmul.f32 %v535, 0.6931472
        %v537 = vlog2.pop %v338
        %v538 = vmul.f32 %v537, 0.6931472
        %v539 = vlog2.pop %v339
        %v540 = vmul.f32 %v539, 0.6931472
        %v541 = vlog2.pop %v340
        %v542 = vmul.f32 %v541, 0.6931472
        %v543 = vlog2.pop %v341
        %v544 = vmul.f32 %v543, 0.6931472
        %v545 = vlog2.pop %v342
        %v546 = vmul.f32 %v545, 0.6931472
        %v547 = vlog2.pop %v343
        %v548 = vmul.f32 %v547, 0.6931472
        %v549 = vlog2.pop %v344
        %v550 = vmul.f32 %v549, 0.6931472
        %v551 = vlog2.pop %v345
        %v552 = vmul.f32 %v551, 0.6931472
        %v553 = vlog2.pop %v346
        %v554 = vmul.f32 %v553, 0.6931472
        %v555 = vlog2.pop %v347
        %v556 = vmul.f32 %v555, 0.6931472
        %v557 = vlog2.pop %v348
        %v558 = vmul.f32 %v557, 0.6931472
        %v559 = vlog2.pop %v349
        %v560 = vmul.f32 %v559, 0.6931472
        %v561 = vlog2.pop %v350
        %v562 = vmul.f32 %v561, 0.6931472
        %v563 = vlog2.pop %v351
        %v564 = vmul.f32 %v563, 0.6931472
        %v565 = vlog2.pop %v352
        %v566 = vmul.f32 %v565, 0.6931472
        %v567 = vlog2.pop %v353
        %v568 = vmul.f32 %v567, 0.6931472
        %v569 = vlog2.pop %v354
        %v570 = vmul.f32 %v569, 0.6931472
        %v571 = vlog2.pop %v355
        %v572 = vmul.f32 %v571, 0.6931472
        %v573 = vlog2.pop %v356
        %v574 = vmul.f32 %v573, 0.6931472
        %v575 = vlog2.pop %v357
        %v576 = vmul.f32 %v575, 0.6931472
        %v577 = vlog2.pop %v358
        %v578 = vmul.f32 %v577, 0.6931472
        %v579 = vlog2.pop %v359
        %v580 = vmul.f32 %v579, 0.6931472
        %v581 = vlog2.pop %v360
        %v582 = vmul.f32 %v581, 0.6931472
        %v583 = vlog2.pop %v361
        %v584 = vmul.f32 %v583, 0.6931472
        %v585 = vlog2.pop %v362
        %v586 = vmul.f32 %v585, 0.6931472
        %v587 = vlog2.pop %v363
        %v588 = vmul.f32 %v587, 0.6931472
        %v589 = vlog2.pop %v364
        %v590 = vmul.f32 %v589, 0.6931472
        %v591 = vlog2.pop %v365
        %v592 = vmul.f32 %v591, 0.6931472
        %v593 = vlog2.pop %v366
        %v594 = vmul.f32 %v593, 0.6931472
        %v595 = vlog2.pop %v367
        %v596 = vmul.f32 %v595, 0.6931472
        %v597 = vlog2.pop %v368
        %v598 = vmul.f32 %v597, 0.6931472
        %v599 = vlog2.pop %v369
        %v600 = vmul.f32 %v599, 0.6931472
        %v601 = vlog2.pop %v370
        %v602 = vmul.f32 %v601, 0.6931472
        %v603 = vlog2.pop %v371
        %v604 = vmul.f32 %v603, 0.6931472
        %v605 = vlog2.pop %v372
        %v606 = vmul.f32 %v605, 0.6931472
        %v607 = vlog2.pop %v373
        %v608 = vmul.f32 %v607, 0.6931472
        %v609 = vlog2.pop %v374
        %v610 = vmul.f32 %v609, 0.6931472
        %v611 = vlog2.pop %v375
        %v612 = vmul.f32 %v611, 0.6931472
        %v613 = vlog2.pop %v376
        %v614 = vmul.f32 %v613, 0.6931472
        %v615 = vlog2.pop %v377
        %v616 = vmul.f32 %v615, 0.6931472
        %v617 = vlog2.pop %v378
        %v618 = vmul.f32 %v617, 0.6931472
        %v619 = vlog2.pop %v379
        %v620 = vmul.f32 %v619, 0.6931472
        %v621 = vlog2.pop %v380
        %v622 = vmul.f32 %v621, 0.6931472
        %v623 = vlog2.pop %v381
        %v624 = vmul.f32 %v623, 0.6931472
        %v625 = vlog2.pop %v382
        %v626 = vmul.f32 %v625, 0.6931472
        %v627 = vlog2.pop %v383
        %v628 = vmul.f32 %v627, 0.6931472
        %v629 = vlog2.pop %v384
        %v630 = vmul.f32 %v629, 0.6931472
        %v631 = vlog2.pop %v385
        %v632 = vmul.f32 %v631, 0.6931472
        %v633 = vlog2.pop %v386
        %v634 = vmul.f32 %v633, 0.6931472
        %v635 = vlog2.pop %v387
        %v636 = vmul.f32 %v635, 0.6931472
        %v637 = vlog2.pop %v388
        %v638 = vmul.f32 %v637, 0.6931472
        %v639 = vlog2.pop %v389
        %v640 = vmul.f32 %v639, 0.6931472
        %v641 = vlog2.pop %v390
        %v642 = vmul.f32 %v641, 0.6931472
        %v643 = vlog2.pop %v391
        %v644 = vmul.f32 %v643, 0.6931472
        %v645 = vlog2.pop %v392
        %v646 = vmul.f32 %v645, 0.6931472
        %v647 = vlog2.pop %v393
        %v648 = vmul.f32 %v647, 0.6931472
        %v649 = vlog2.pop %v394
        %v650 = vmul.f32 %v649, 0.6931472
        %v651 = vlog2.pop %v395
        %v652 = vmul.f32 %v651, 0.6931472
        %v653 = vlog2.pop %v396
        %v654 = vmul.f32 %v653, 0.6931472
        %v655 = vlog2.pop %v397
        %v656 = vmul.f32 %v655, 0.6931472
        %v657 = vlog2.pop %v398
        %v658 = vmul.f32 %v657, 0.6931472
        %v659 = vlog2.pop %v399
        %v660 = vmul.f32 %v659, 0.6931472
        %v661 = vlog2.pop %v400
        %v662 = vmul.f32 %v661, 0.6931472
        %v663 = vlog2.pop %v401
        %v664 = vmul.f32 %v663, 0.6931472
        %v665 = vlog2.pop %v402
        %v666 = vmul.f32 %v665, 0.6931472
        %v667 = vlog2.pop %v403
        %v668 = vmul.f32 %v667, 0.6931472
        %v669 = vlog2.pop %v404
        %v670 = vmul.f32 %v669, 0.6931472
        %v671 = vlog2.pop %v405
        %v672 = vmul.f32 %v671, 0.6931472
        %v673 = vlog2.pop %v406
        %v674 = vmul.f32 %v673, 0.6931472
        %v675 = vlog2.pop %v407
        %v676 = vmul.f32 %v675, 0.6931472
        %v677 = vlog2.pop %v408
        %v678 = vmul.f32 %v677, 0.6931472
        %v679 = vlog2.pop %v409
        %v680 = vmul.f32 %v679, 0.6931472
        %v681 = vlog2.pop %v410
        %v682 = vmul.f32 %v681, 0.6931472
        %v683 = vlog2.pop %v411
        %v684 = vmul.f32 %v683, 0.6931472
        %v685 = vlog2.pop %v412
        %v686 = vmul.f32 %v685, 0.6931472
        %v687 = vlog2.pop %v413
        %v688 = vmul.f32 %v687, 0.6931472
        %v689 = vlog2.pop %v414
        %v690 = vmul.f32 %v689, 0.6931472
        %v691 = vlog2.pop %v415
        %v692 = vmul.f32 %v691, 0.6931472
        %v693 = vlog2.pop %v416
        %v694 = vmul.f32 %v693, 0.6931472
        %v695 = vlog2.pop %v417
        %v696 = vmul.f32 %v695, 0.6931472
        %v697 = vlog2.pop %v418
        %v698 = vmul.f32 %v697, 0.6931472
        %v699 = vlog2.pop %v419
        %v700 = vmul.f32 %v699, 0.6931472
        %v701 = vlog2.pop %v420
        %v702 = vmul.f32 %v701, 0.6931472
        %v703 = vlog2.pop %v421
        %v704 = vmul.f32 %v703, 0.6931472
        %v705 = vlog2.pop %v422
        %v706 = vmul.f32 %v705, 0.6931472
        %v707 = vlog2.pop %v423
        %v708 = vmul.f32 %v707, 0.6931472
        %v709 = vlog2.pop %v424
        %v710 = vmul.f32 %v709, 0.6931472
        %v711 = vlog2.pop %v425
        %v712 = vmul.f32 %v711, 0.6931472
        %v713 = vlog2.pop %v426
        %v714 = vmul.f32 %v713, 0.6931472
        %v715 = vlog2.pop %v427
        %v716 = vmul.f32 %v715, 0.6931472
        %v717 = vlog2.pop %v428
        %v718 = vmul.f32 %v717, 0.6931472
        %v719 = vlog2.pop %v429
        %v720 = vmul.f32 %v719, 0.6931472
        %v721 = vlog2.pop %v430
        %v722 = vmul.f32 %v721, 0.6931472
        %v723 = vlog2.pop %v431
        %v724 = vmul.f32 %v723, 0.6931472
        %v725 = vlog2.pop %v432
        %v726 = vmul.f32 %v725, 0.6931472
        %v727 = vlog2.pop %v433
        %v728 = vmul.f32 %v727, 0.6931472
        %v729 = vlog2.pop %v434
        %v730 = vmul.f32 %v729, 0.6931472
        %v731 = vlog2.pop %v435
        %v732 = vmul.f32 %v731, 0.6931472
        %v733 = vlog2.pop %v436
        %v734 = vmul.f32 %v733, 0.6931472
        %v735 = vlog2.pop %v437
        %v736 = vmul.f32 %v735, 0.6931472
        %v737 = vlog2.pop %v438
        %v738 = vmul.f32 %v737, 0.6931472
        %v739 = vlog2.pop %v439
        %v740 = vmul.f32 %v739, 0.6931472
        %v741 = vlog2.pop %v440
        %v742 = vmul.f32 %v741, 0.6931472
        %v743 = vlog2.pop %v441
        %v744 = vmul.f32 %v743, 0.6931472
        %v745 = vlog2.pop %v442
        %v746 = vmul.f32 %v745, 0.6931472
        %v747 = vlog2.pop %v443
        %v748 = vmul.f32 %v747, 0.6931472
        %v749 = vlog2.pop %v444
        %v750 = vmul.f32 %v749, 0.6931472
        %v751 = vlog2.pop %v445
        %v752 = vmul.f32 %v751, 0.6931472
        %v753 = vlog2.pop %v446
        %v754 = vmul.f32 %v753, 0.6931472
        %v755 = vlog2.pop %v447
        %v756 = vmul.f32 %v755, 0.6931472
        %v757 = vlog2.pop %v448
        %v758 = vmul.f32 %v757, 0.6931472
        %v759 = vlog2.pop %v449
        %v760 = vmul.f32 %v759, 0.6931472
        %v761 = vlog2.pop %v450
        %v762 = vmul.f32 %v761, 0.6931472
        %v763 = vlog2.pop %v451
        %v764 = vmul.f32 %v763, 0.6931472
        %v765 = vlog2.pop %v452
        %v766 = vmul.f32 %v765, 0.6931472
        %v767 = vlog2.pop %v453
        %v768 = vmul.f32 %v767, 0.6931472
        %v769 = vlog2.pop %v454
        %v770 = vmul.f32 %v769, 0.6931472
        %v771 = vlog2.pop %v455
        %v772 = vmul.f32 %v771, 0.6931472
        %v773 = vlog2.pop %v456
        %v774 = vmul.f32 %v773, 0.6931472
        %v775 = vlog2.pop %v457
        %v776 = vmul.f32 %v775, 0.6931472
        %v777 = vlog2.pop %v458
        %v778 = vmul.f32 %v777, 0.6931472
        %v779 = vlog2.pop %v459
        %v780 = vmul.f32 %v779, 0.6931472
        %v781 = vlog2.pop %v460
        %v782 = vmul.f32 %v781, 0.6931472
        %v783 = vlog2.pop %v461
        %v784 = vmul.f32 %v783, 0.6931472
        %v785 = vlog2.pop %v462
        %v786 = vmul.f32 %v785, 0.6931472
        %v787 = vlog2.pop %v463
        %v788 = vmul.f32 %v787, 0.6931472
        %v789 = vlog2.pop %v464
        %v790 = vmul.f32 %v789, 0.6931472
        %v791 = vlog2.pop %v465
        %v792 = vmul.f32 %v791, 0.6931472
        %v793 = vlog2.pop %v466
        %v794 = vmul.f32 %v793, 0.6931472
        %v795 = vlog2.pop %v467
        %v796 = vmul.f32 %v795, 0.6931472
        %v797 = vlog2.pop %v468
        %v798 = vmul.f32 %v797, 0.6931472
        %v799 = vlog2.pop %v469
        %v800 = vmul.f32 %v799, 0.6931472
        %v801 = vlog2.pop %v470
        %v802 = vmul.f32 %v801, 0.6931472
        %v803 = vlog2.pop %v471
        %v804 = vmul.f32 %v803, 0.6931472
        %v805 = vlog2.pop %v472
        %v806 = vmul.f32 %v805, 0.6931472
        %v807 = vlog2.pop %v473
        %v808 = vmul.f32 %v807, 0.6931472
        %v809 = vlog2.pop %v474
        %v810 = vmul.f32 %v809, 0.6931472
        %v811 = vlog2.pop %v475
        %v812 = vmul.f32 %v811, 0.6931472
        %v813 = vlog2.pop %v476
        %v814 = vmul.f32 %v813, 0.6931472
        %v815 = vlog2.pop %v477
        %v816 = vmul.f32 %v815, 0.6931472
        %v817 = vlog2.pop %v478
        %v818 = vmul.f32 %v817, 0.6931472
        %v819 = vlog2.pop %v479
        %v820 = vmul.f32 %v819, 0.6931472
        %v821 = vlog2.pop %v480
        %v822 = vmul.f32 %v821, 0.6931472
        %v823 = vlog2.pop %v481
        %v824 = vmul.f32 %v823, 0.6931472
        %v825 = vlog2.pop %v482
        %v826 = vmul.f32 %v825, 0.6931472
        %v827 = vlog2.pop %v483
        %v828 = vmul.f32 %v827, 0.6931472
        %v829 = vlog2.pop %v484
        %v830 = vmul.f32 %v829, 0.6931472
        %v831 = vlog2.pop %v485
        %v832 = vmul.f32 %v831, 0.6931472
        %v833 = vlog2.pop %v486
        %v834 = vmul.f32 %v833, 0.6931472
        %v835 = vlog2.pop %v487
        %v836 = vmul.f32 %v835, 0.6931472
        %v837 = vlog2.pop %v488
        %v838 = vmul.f32 %v837, 0.6931472
        %v839 = vlog2.pop %v489
        %v840 = vmul.f32 %v839, 0.6931472
        %v841 = vlog2.pop %v490
        %v842 = vmul.f32 %v841, 0.6931472
        %v843 = vlog2.pop %v491
        %v844 = vmul.f32 %v843, 0.6931472
        %v845 = vlog2.pop %v492
        %v846 = vmul.f32 %v845, 0.6931472
        %v847 = vlog2.pop %v493
        %v848 = vmul.f32 %v847, 0.6931472
        %v849 = vlog2.pop %v494
        %v850 = vmul.f32 %v849, 0.6931472
        %v851 = vlog2.pop %v495
        %v852 = vmul.f32 %v851, 0.6931472
        %v853 = vlog2.pop %v496
        %v854 = vmul.f32 %v853, 0.6931472
        %v855 = vlog2.pop %v497
        %v856 = vmul.f32 %v855, 0.6931472
        %v857 = vlog2.pop %v498
        %v858 = vmul.f32 %v857, 0.6931472
        %v859 = vlog2.pop %v499
        %v860 = vmul.f32 %v859, 0.6931472
        %v861 = vlog2.pop %v500
        %v862 = vmul.f32 %v861, 0.6931472
        %v863 = vlog2.pop %v501
        %v864 = vmul.f32 %v863, 0.6931472
        %v865 = vlog2.pop %v502
        %v866 = vmul.f32 %v865, 0.6931472
        %v867 = vlog2.pop %v503
        %v868 = vmul.f32 %v867, 0.6931472
        %v869 = vlog2.pop %v504
        %v870 = vmul.f32 %v869, 0.6931472
        %v871 = vlog2.pop %v505
        %v872 = vmul.f32 %v871, 0.6931472
        %v873 = vlog2.pop %v506
        %v874 = vmul.f32 %v873, 0.6931472
        %v875 = vlog2.pop %v507
        %v876 = vmul.f32 %v875, 0.6931472
        %v877 = vlog2.pop %v508
        %v878 = vmul.f32 %v877, 0.6931472
        %v879 = vlog2.pop %v509
        %v880 = vmul.f32 %v879, 0.6931472
        %v881 = vlog2.pop %v510
        %v882 = vmul.f32 %v881, 0.6931472
        %v883 = vlog2.pop %v511
        %v884 = vmul.f32 %v883, 0.6931472
        %v885 = vlog2.pop %v512
        %v886 = vmul.f32 %v885, 0.6931472
        %v887 = vlog2.pop %v513
        %v888 = vmul.f32 %v887, 0.6931472
        %v889 = vlog2.pop %v514
        %v890 = vmul.f32 %v889, 0.6931472
        %v891 = vlog2.pop %v515
        %v892 = vmul.f32 %v891, 0.6931472
        %v893 = vlog2.pop %v516
        %v894 = vmul.f32 %v893, 0.6931472
        %v895 = vlog2.pop %v517
        %v896 = vmul.f32 %v895, 0.6931472
        %v897 = vlog2.pop %v518
        %v898 = vmul.f32 %v897, 0.6931472
        %v899 = vlog2.pop %v519
        %v900 = vmul.f32 %v899, 0.6931472
        %v901 = vlog2.pop %v520
        %v902 = vmul.f32 %v901, 0.6931472
        %v903 = vlog2.pop %v521
        %v904 = vmul.f32 %v903, 0.6931472
        %v905 = vlog2.pop %v522
        %v906 = vmul.f32 %v905, 0.6931472
        %v907 = vrcp.pop 0.6931472
        %v908 = vmul.f32 %v524, %v907
        %v909 = vmul.f32 %v526, %v907
        %v910 = vmul.f32 %v528, %v907
        %v911 = vmul.f32 %v530, %v907
        %v912 = vmul.f32 %v532, %v907
        %v913 = vmul.f32 %v534, %v907
        %v914 = vmul.f32 %v536, %v907
        %v915 = vmul.f32 %v538, %v907
        %v916 = vmul.f32 %v540, %v907
        %v917 = vmul.f32 %v542, %v907
        %v918 = vmul.f32 %v544, %v907
        %v919 = vmul.f32 %v546, %v907
        %v920 = vmul.f32 %v548, %v907
        %v921 = vmul.f32 %v550, %v907
        %v922 = vmul.f32 %v552, %v907
        %v923 = vmul.f32 %v554, %v907
        %v924 = vmul.f32 %v556, %v907
        %v925 = vmul.f32 %v558, %v907
        %v926 = vmul.f32 %v560, %v907
        %v927 = vmul.f32 %v562, %v907
        %v928 = vmul.f32 %v564, %v907
        %v929 = vmul.f32 %v566, %v907
        %v930 = vmul.f32 %v568, %v907
        %v931 = vmul.f32 %v570, %v907
        %v932 = vmul.f32 %v572, %v907
        %v933 = vmul.f32 %v574, %v907
        %v934 = vmul.f32 %v576, %v907
        %v935 = vmul.f32 %v578, %v907
        %v936 = vmul.f32 %v580, %v907
        %v937 = vmul.f32 %v582, %v907
        %v938 = vmul.f32 %v584, %v907
        %v939 = vmul.f32 %v586, %v907
        %v940 = vmul.f32 %v588, %v907
        %v941 = vmul.f32 %v590, %v907
        %v942 = vmul.f32 %v592, %v907
        %v943 = vmul.f32 %v594, %v907
        %v944 = vmul.f32 %v596, %v907
        %v945 = vmul.f32 %v598, %v907
        %v946 = vmul.f32 %v600, %v907
        %v947 = vmul.f32 %v602, %v907
        %v948 = vmul.f32 %v604, %v907
        %v949 = vmul.f32 %v606, %v907
        %v950 = vmul.f32 %v608, %v907
        %v951 = vmul.f32 %v610, %v907
        %v952 = vmul.f32 %v612, %v907
        %v953 = vmul.f32 %v614, %v907
        %v954 = vmul.f32 %v616, %v907
        %v955 = vmul.f32 %v618, %v907
        %v956 = vmul.f32 %v620, %v907
        %v957 = vmul.f32 %v622, %v907
        %v958 = vmul.f32 %v624, %v907
        %v959 = vmul.f32 %v626, %v907
        %v960 = vmul.f32 %v628, %v907
        %v961 = vmul.f32 %v630, %v907
        %v962 = vmul.f32 %v632, %v907
        %v963 = vmul.f32 %v634, %v907
        %v964 = vmul.f32 %v636, %v907
        %v965 = vmul.f32 %v638, %v907
        %v966 = vmul.f32 %v640, %v907
        %v967 = vmul.f32 %v642, %v907
        %v968 = vmul.f32 %v644, %v907
        %v969 = vmul.f32 %v646, %v907
        %v970 = vmul.f32 %v648, %v907
        %v971 = vmul.f32 %v650, %v907
        %v972 = vmul.f32 %v652, %v907
        %v973 = vmul.f32 %v654, %v907
        %v974 = vmul.f32 %v656, %v907
        %v975 = vmul.f32 %v658, %v907
        %v976 = vmul.f32 %v660, %v907
        %v977 = vmul.f32 %v662, %v907
        %v978 = vmul.f32 %v664, %v907
        %v979 = vmul.f32 %v666, %v907
        %v980 = vmul.f32 %v668, %v907
        %v981 = vmul.f32 %v670, %v907
        %v982 = vmul.f32 %v672, %v907
        %v983 = vmul.f32 %v674, %v907
        %v984 = vmul.f32 %v676, %v907
        %v985 = vmul.f32 %v678, %v907
        %v986 = vmul.f32 %v680, %v907
        %v987 = vmul.f32 %v682, %v907
        %v988 = vmul.f32 %v684, %v907
        %v989 = vmul.f32 %v686, %v907
        %v990 = vmul.f32 %v688, %v907
        %v991 = vmul.f32 %v690, %v907
        %v992 = vmul.f32 %v692, %v907
        %v993 = vmul.f32 %v694, %v907
        %v994 = vmul.f32 %v696, %v907
        %v995 = vmul.f32 %v698, %v907
        %v996 = vmul.f32 %v700, %v907
        %v997 = vmul.f32 %v702, %v907
        %v998 = vmul.f32 %v704, %v907
        %v999 = vmul.f32 %v706, %v907
        %v1000 = vmul.f32 %v708, %v907
        %v1001 = vmul.f32 %v710, %v907
        %v1002 = vmul.f32 %v712, %v907
        %v1003 = vmul.f32 %v714, %v907
        %v1004 = vmul.f32 %v716, %v907
        %v1005 = vmul.f32 %v718, %v907
        %v1006 = vmul.f32 %v720, %v907
        %v1007 = vmul.f32 %v722, %v907
        %v1008 = vmul.f32 %v724, %v907
        %v1009 = vmul.f32 %v726, %v907
        %v1010 = vmul.f32 %v728, %v907
        %v1011 = vmul.f32 %v730, %v907
        %v1012 = vmul.f32 %v732, %v907
        %v1013 = vmul.f32 %v734, %v907
        %v1014 = vmul.f32 %v736, %v907
        %v1015 = vmul.f32 %v738, %v907
        %v1016 = vmul.f32 %v740, %v907
        %v1017 = vmul.f32 %v742, %v907
        %v1018 = vmul.f32 %v744, %v907
        %v1019 = vmul.f32 %v746, %v907
        %v1020 = vmul.f32 %v748, %v907
        %v1021 = vmul.f32 %v750, %v907
        %v1022 = vmul.f32 %v752, %v907
        %v1023 = vmul.f32 %v754, %v907
        %v1024 = vmul.f32 %v756, %v907
        %v1025 = vmul.f32 %v758, %v907
        %v1026 = vmul.f32 %v760, %v907
        %v1027 = vmul.f32 %v762, %v907
        %v1028 = vmul.f32 %v764, %v907
        %v1029 = vmul.f32 %v766, %v907
        %v1030 = vmul.f32 %v768, %v907
        %v1031 = vmul.f32 %v770, %v907
        %v1032 = vmul.f32 %v772, %v907
        %v1033 = vmul.f32 %v774, %v907
        %v1034 = vmul.f32 %v776, %v907
        %v1035 = vmul.f32 %v778, %v907
        %v1036 = vmul.f32 %v780, %v907
        %v1037 = vmul.f32 %v782, %v907
        %v1038 = vmul.f32 %v784, %v907
        %v1039 = vmul.f32 %v786, %v907
        %v1040 = vmul.f32 %v788, %v907
        %v1041 = vmul.f32 %v790, %v907
        %v1042 = vmul.f32 %v792, %v907
        %v1043 = vmul.f32 %v794, %v907
        %v1044 = vmul.f32 %v796, %v907
        %v1045 = vmul.f32 %v798, %v907
        %v1046 = vmul.f32 %v800, %v907
        %v1047 = vmul.f32 %v802, %v907
        %v1048 = vmul.f32 %v804, %v907
        %v1049 = vmul.f32 %v806, %v907
        %v1050 = vmul.f32 %v808, %v907
        %v1051 = vmul.f32 %v810, %v907
        %v1052 = vmul.f32 %v812, %v907
        %v1053 = vmul.f32 %v814, %v907
        %v1054 = vmul.f32 %v816, %v907
        %v1055 = vmul.f32 %v818, %v907
        %v1056 = vmul.f32 %v820, %v907
        %v1057 = vmul.f32 %v822, %v907
        %v1058 = vmul.f32 %v824, %v907
        %v1059 = vmul.f32 %v826, %v907
        %v1060 = vmul.f32 %v828, %v907
        %v1061 = vmul.f32 %v830, %v907
        %v1062 = vmul.f32 %v832, %v907
        %v1063 = vmul.f32 %v834, %v907
        %v1064 = vmul.f32 %v836, %v907
        %v1065 = vmul.f32 %v838, %v907
        %v1066 = vmul.f32 %v840, %v907
        %v1067 = vmul.f32 %v842, %v907
        %v1068 = vmul.f32 %v844, %v907
        %v1069 = vmul.f32 %v846, %v907
        %v1070 = vmul.f32 %v848, %v907
        %v1071 = vmul.f32 %v850, %v907
        %v1072 = vmul.f32 %v852, %v907
        %v1073 = vmul.f32 %v854, %v907
        %v1074 = vmul.f32 %v856, %v907
        %v1075 = vmul.f32 %v858, %v907
        %v1076 = vmul.f32 %v860, %v907
        %v1077 = vmul.f32 %v862, %v907
        %v1078 = vmul.f32 %v864, %v907
        %v1079 = vmul.f32 %v866, %v907
        %v1080 = vmul.f32 %v868, %v907
        %v1081 = vmul.f32 %v870, %v907
        %v1082 = vmul.f32 %v872, %v907
        %v1083 = vmul.f32 %v874, %v907
        %v1084 = vmul.f32 %v876, %v907
        %v1085 = vmul.f32 %v878, %v907
        %v1086 = vmul.f32 %v880, %v907
        %v1087 = vmul.f32 %v882, %v907
        %v1088 = vmul.f32 %v884, %v907
        %v1089 = vmul.f32 %v886, %v907
        %v1090 = vmul.f32 %v888, %v907
        %v1091 = vmul.f32 %v890, %v907
        %v1092 = vmul.f32 %v892, %v907
        %v1093 = vmul.f32 %v894, %v907
        %v1094 = vmul.f32 %v896, %v907
        %v1095 = vmul.f32 %v898, %v907
        %v1096 = vmul.f32 %v900, %v907
        %v1097 = vmul.f32 %v902, %v907
        %v1098 = vmul.f32 %v904, %v907
        %v1099 = vmul.f32 %v906, %v907
        %v1100 = vmul.f32 %v139, %v908
        %v1101 = vmul.f32 %v140, %v909
        %v1102 = vmul.f32 %v141, %v910
        %v1103 = vmul.f32 %v142, %v911
        %v1104 = vmul.f32 %v143, %v912
        %v1105 = vmul.f32 %v144, %v913
        %v1106 = vmul.f32 %v145, %v914
        %v1107 = vmul.f32 %v146, %v915
        %v1108 = vmul.f32 %v147, %v916
        %v1109 = vmul.f32 %v148, %v917
        %v1110 = vmul.f32 %v149, %v918
        %v1111 = vmul.f32 %v150, %v919
        %v1112 = vmul.f32 %v151, %v920
        %v1113 = vmul.f32 %v152, %v921
        %v1114 = vmul.f32 %v153, %v922
        %v1115 = vmul.f32 %v154, %v923
        %v1116 = vmul.f32 %v155, %v924
        %v1117 = vmul.f32 %v156, %v925
        %v1118 = vmul.f32 %v157, %v926
        %v1119 = vmul.f32 %v158, %v927
        %v1120 = vmul.f32 %v159, %v928
        %v1121 = vmul.f32 %v160, %v929
        %v1122 = vmul.f32 %v161, %v930
        %v1123 = vmul.f32 %v162, %v931
        %v1124 = vmul.f32 %v163, %v932
        %v1125 = vmul.f32 %v164, %v933
        %v1126 = vmul.f32 %v165, %v934
        %v1127 = vmul.f32 %v166, %v935
        %v1128 = vmul.f32 %v167, %v936
        %v1129 = vmul.f32 %v168, %v937
        %v1130 = vmul.f32 %v169, %v938
        %v1131 = vmul.f32 %v170, %v939
        %v1132 = vmul.f32 %v171, %v940
        %v1133 = vmul.f32 %v172, %v941
        %v1134 = vmul.f32 %v173, %v942
        %v1135 = vmul.f32 %v174, %v943
        %v1136 = vmul.f32 %v175, %v944
        %v1137 = vmul.f32 %v176, %v945
        %v1138 = vmul.f32 %v177, %v946
        %v1139 = vmul.f32 %v178, %v947
        %v1140 = vmul.f32 %v179, %v948
        %v1141 = vmul.f32 %v180, %v949
        %v1142 = vmul.f32 %v181, %v950
        %v1143 = vmul.f32 %v182, %v951
        %v1144 = vmul.f32 %v183, %v952
        %v1145 = vmul.f32 %v184, %v953
        %v1146 = vmul.f32 %v185, %v954
        %v1147 = vmul.f32 %v186, %v955
        %v1148 = vmul.f32 %v187, %v956
        %v1149 = vmul.f32 %v188, %v957
        %v1150 = vmul.f32 %v189, %v958
        %v1151 = vmul.f32 %v190, %v959
        %v1152 = vmul.f32 %v191, %v960
        %v1153 = vmul.f32 %v192, %v961
        %v1154 = vmul.f32 %v193, %v962
        %v1155 = vmul.f32 %v194, %v963
        %v1156 = vmul.f32 %v195, %v964
        %v1157 = vmul.f32 %v196, %v965
        %v1158 = vmul.f32 %v197, %v966
        %v1159 = vmul.f32 %v198, %v967
        %v1160 = vmul.f32 %v199, %v968
        %v1161 = vmul.f32 %v200, %v969
        %v1162 = vmul.f32 %v201, %v970
        %v1163 = vmul.f32 %v202, %v971
        %v1164 = vmul.f32 %v203, %v972
        %v1165 = vmul.f32 %v204, %v973
        %v1166 = vmul.f32 %v205, %v974
        %v1167 = vmul.f32 %v206, %v975
        %v1168 = vmul.f32 %v207, %v976
        %v1169 = vmul.f32 %v208, %v977
        %v1170 = vmul.f32 %v209, %v978
        %v1171 = vmul.f32 %v210, %v979
        %v1172 = vmul.f32 %v211, %v980
        %v1173 = vmul.f32 %v212, %v981
        %v1174 = vmul.f32 %v213, %v982
        %v1175 = vmul.f32 %v214, %v983
        %v1176 = vmul.f32 %v215, %v984
        %v1177 = vmul.f32 %v216, %v985
        %v1178 = vmul.f32 %v217, %v986
        %v1179 = vmul.f32 %v218, %v987
        %v1180 = vmul.f32 %v219, %v988
        %v1181 = vmul.f32 %v220, %v989
        %v1182 = vmul.f32 %v221, %v990
        %v1183 = vmul.f32 %v222, %v991
        %v1184 = vmul.f32 %v223, %v992
        %v1185 = vmul.f32 %v224, %v993
        %v1186 = vmul.f32 %v225, %v994
        %v1187 = vmul.f32 %v226, %v995
        %v1188 = vmul.f32 %v227, %v996
        %v1189 = vmul.f32 %v228, %v997
        %v1190 = vmul.f32 %v229, %v998
        %v1191 = vmul.f32 %v230, %v999
        %v1192 = vmul.f32 %v231, %v1000
        %v1193 = vmul.f32 %v232, %v1001
        %v1194 = vmul.f32 %v233, %v1002
        %v1195 = vmul.f32 %v234, %v1003
        %v1196 = vmul.f32 %v235, %v1004
        %v1197 = vmul.f32 %v236, %v1005
        %v1198 = vmul.f32 %v237, %v1006
        %v1199 = vmul.f32 %v238, %v1007
        %v1200 = vmul.f32 %v239, %v1008
        %v1201 = vmul.f32 %v240, %v1009
        %v1202 = vmul.f32 %v241, %v1010
        %v1203 = vmul.f32 %v242, %v1011
        %v1204 = vmul.f32 %v243, %v1012
        %v1205 = vmul.f32 %v244, %v1013
        %v1206 = vmul.f32 %v245, %v1014
        %v1207 = vmul.f32 %v246, %v1015
        %v1208 = vmul.f32 %v247, %v1016
        %v1209 = vmul.f32 %v248, %v1017
        %v1210 = vmul.f32 %v249, %v1018
        %v1211 = vmul.f32 %v250, %v1019
        %v1212 = vmul.f32 %v251, %v1020
        %v1213 = vmul.f32 %v252, %v1021
        %v1214 = vmul.f32 %v253, %v1022
        %v1215 = vmul.f32 %v254, %v1023
        %v1216 = vmul.f32 %v255, %v1024
        %v1217 = vmul.f32 %v256, %v1025
        %v1218 = vmul.f32 %v257, %v1026
        %v1219 = vmul.f32 %v258, %v1027
        %v1220 = vmul.f32 %v259, %v1028
        %v1221 = vmul.f32 %v260, %v1029
        %v1222 = vmul.f32 %v261, %v1030
        %v1223 = vmul.f32 %v262, %v1031
        %v1224 = vmul.f32 %v263, %v1032
        %v1225 = vmul.f32 %v264, %v1033
        %v1226 = vmul.f32 %v265, %v1034
        %v1227 = vmul.f32 %v266, %v1035
        %v1228 = vmul.f32 %v267, %v1036
        %v1229 = vmul.f32 %v268, %v1037
        %v1230 = vmul.f32 %v269, %v1038
        %v1231 = vmul.f32 %v270, %v1039
        %v1232 = vmul.f32 %v271, %v1040
        %v1233 = vmul.f32 %v272, %v1041
        %v1234 = vmul.f32 %v273, %v1042
        %v1235 = vmul.f32 %v274, %v1043
        %v1236 = vmul.f32 %v275, %v1044
        %v1237 = vmul.f32 %v276, %v1045
        %v1238 = vmul.f32 %v277, %v1046
        %v1239 = vmul.f32 %v278, %v1047
        %v1240 = vmul.f32 %v279, %v1048
        %v1241 = vmul.f32 %v280, %v1049
        %v1242 = vmul.f32 %v281, %v1050
        %v1243 = vmul.f32 %v282, %v1051
        %v1244 = vmul.f32 %v283, %v1052
        %v1245 = vmul.f32 %v284, %v1053
        %v1246 = vmul.f32 %v285, %v1054
        %v1247 = vmul.f32 %v286, %v1055
        %v1248 = vmul.f32 %v287, %v1056
        %v1249 = vmul.f32 %v288, %v1057
        %v1250 = vmul.f32 %v289, %v1058
        %v1251 = vmul.f32 %v290, %v1059
        %v1252 = vmul.f32 %v291, %v1060
        %v1253 = vmul.f32 %v292, %v1061
        %v1254 = vmul.f32 %v293, %v1062
        %v1255 = vmul.f32 %v294, %v1063
        %v1256 = vmul.f32 %v295, %v1064
        %v1257 = vmul.f32 %v296, %v1065
        %v1258 = vmul.f32 %v297, %v1066
        %v1259 = vmul.f32 %v298, %v1067
        %v1260 = vmul.f32 %v299, %v1068
        %v1261 = vmul.f32 %v300, %v1069
        %v1262 = vmul.f32 %v301, %v1070
        %v1263 = vmul.f32 %v302, %v1071
        %v1264 = vmul.f32 %v303, %v1072
        %v1265 = vmul.f32 %v304, %v1073
        %v1266 = vmul.f32 %v305, %v1074
        %v1267 = vmul.f32 %v306, %v1075
        %v1268 = vmul.f32 %v307, %v1076
        %v1269 = vmul.f32 %v308, %v1077
        %v1270 = vmul.f32 %v309, %v1078
        %v1271 = vmul.f32 %v310, %v1079
        %v1272 = vmul.f32 %v311, %v1080
        %v1273 = vmul.f32 %v312, %v1081
        %v1274 = vmul.f32 %v313, %v1082
        %v1275 = vmul.f32 %v314, %v1083
        %v1276 = vmul.f32 %v315, %v1084
        %v1277 = vmul.f32 %v316, %v1085
        %v1278 = vmul.f32 %v317, %v1086
        %v1279 = vmul.f32 %v318, %v1087
        %v1280 = vmul.f32 %v319, %v1088
        %v1281 = vmul.f32 %v320, %v1089
        %v1282 = vmul.f32 %v321, %v1090
        %v1283 = vmul.f32 %v322, %v1091
        %v1284 = vmul.f32 %v323, %v1092
        %v1285 = vmul.f32 %v324, %v1093
        %v1286 = vmul.f32 %v325, %v1094
        %v1287 = vmul.f32 %v326, %v1095
        %v1288 = vmul.f32 %v327, %v1096
        %v1289 = vmul.f32 %v328, %v1097
        %v1290 = vmul.f32 %v329, %v1098
        %v1291 = vmul.f32 %v330, %v1099
        %1292 = vadd.xlane.f32.xlu0 %v1100
        %v1293 = vpop.xlane.xlu0 %1292
        %1294 = vadd.xlane.f32.xlu0 %v1101
        %v1295 = vpop.xlane.xlu0 %1294
        %1296 = vadd.xlane.f32.xlu0 %v1102
        %v1297 = vpop.xlane.xlu0 %1296
        %1298 = vadd.xlane.f32.xlu0 %v1103
        %v1299 = vpop.xlane.xlu0 %1298
        %1300 = vadd.xlane.f32.xlu0 %v1104
        %v1301 = vpop.xlane.xlu0 %1300
        %1302 = vadd.xlane.f32.xlu0 %v1105
        %v1303 = vpop.xlane.xlu0 %1302
        %1304 = vadd.xlane.f32.xlu0 %v1106
        %v1305 = vpop.xlane.xlu0 %1304
        %1306 = vadd.xlane.f32.xlu0 %v1107
        %v1307 = vpop.xlane.xlu0 %1306
        %1308 = vadd.xlane.f32.xlu0 %v1108
        %v1309 = vpop.xlane.xlu0 %1308
        %1310 = vadd.xlane.f32.xlu0 %v1109
        %v1311 = vpop.xlane.xlu0 %1310
        %1312 = vadd.xlane.f32.xlu0 %v1110
        %v1313 = vpop.xlane.xlu0 %1312
        %1314 = vadd.xlane.f32.xlu0 %v1111
        %v1315 = vpop.xlane.xlu0 %1314
        %1316 = vadd.xlane.f32.xlu0 %v1112
        %v1317 = vpop.xlane.xlu0 %1316
        %1318 = vadd.xlane.f32.xlu0 %v1113
        %v1319 = vpop.xlane.xlu0 %1318
        %1320 = vadd.xlane.f32.xlu0 %v1114
        %v1321 = vpop.xlane.xlu0 %1320
        %1322 = vadd.xlane.f32.xlu0 %v1115
        %v1323 = vpop.xlane.xlu0 %1322
        %1324 = vadd.xlane.f32.xlu0 %v1116
        %v1325 = vpop.xlane.xlu0 %1324
        %1326 = vadd.xlane.f32.xlu0 %v1117
        %v1327 = vpop.xlane.xlu0 %1326
        %1328 = vadd.xlane.f32.xlu0 %v1118
        %v1329 = vpop.xlane.xlu0 %1328
        %1330 = vadd.xlane.f32.xlu0 %v1119
        %v1331 = vpop.xlane.xlu0 %1330
        %1332 = vadd.xlane.f32.xlu0 %v1120
        %v1333 = vpop.xlane.xlu0 %1332
        %1334 = vadd.xlane.f32.xlu0 %v1121
        %v1335 = vpop.xlane.xlu0 %1334
        %1336 = vadd.xlane.f32.xlu0 %v1122
        %v1337 = vpop.xlane.xlu0 %1336
        %1338 = vadd.xlane.f32.xlu0 %v1123
        %v1339 = vpop.xlane.xlu0 %1338
        %1340 = vadd.xlane.f32.xlu0 %v1124
        %v1341 = vpop.xlane.xlu0 %1340
        %1342 = vadd.xlane.f32.xlu0 %v1125
        %v1343 = vpop.xlane.xlu0 %1342
        %1344 = vadd.xlane.f32.xlu0 %v1126
        %v1345 = vpop.xlane.xlu0 %1344
        %1346 = vadd.xlane.f32.xlu0 %v1127
        %v1347 = vpop.xlane.xlu0 %1346
        %1348 = vadd.xlane.f32.xlu0 %v1128
        %v1349 = vpop.xlane.xlu0 %1348
        %1350 = vadd.xlane.f32.xlu0 %v1129
        %v1351 = vpop.xlane.xlu0 %1350
        %1352 = vadd.xlane.f32.xlu0 %v1130
        %v1353 = vpop.xlane.xlu0 %1352
        %1354 = vadd.xlane.f32.xlu0 %v1131
        %v1355 = vpop.xlane.xlu0 %1354
        %1356 = vadd.xlane.f32.xlu0 %v1132
        %v1357 = vpop.xlane.xlu0 %1356
        %1358 = vadd.xlane.f32.xlu0 %v1133
        %v1359 = vpop.xlane.xlu0 %1358
        %1360 = vadd.xlane.f32.xlu0 %v1134
        %v1361 = vpop.xlane.xlu0 %1360
        %1362 = vadd.xlane.f32.xlu0 %v1135
        %v1363 = vpop.xlane.xlu0 %1362
        %1364 = vadd.xlane.f32.xlu0 %v1136
        %v1365 = vpop.xlane.xlu0 %1364
        %1366 = vadd.xlane.f32.xlu0 %v1137
        %v1367 = vpop.xlane.xlu0 %1366
        %1368 = vadd.xlane.f32.xlu0 %v1138
        %v1369 = vpop.xlane.xlu0 %1368
        %1370 = vadd.xlane.f32.xlu0 %v1139
        %v1371 = vpop.xlane.xlu0 %1370
        %1372 = vadd.xlane.f32.xlu0 %v1140
        %v1373 = vpop.xlane.xlu0 %1372
        %1374 = vadd.xlane.f32.xlu0 %v1141
        %v1375 = vpop.xlane.xlu0 %1374
        %1376 = vadd.xlane.f32.xlu0 %v1142
        %v1377 = vpop.xlane.xlu0 %1376
        %1378 = vadd.xlane.f32.xlu0 %v1143
        %v1379 = vpop.xlane.xlu0 %1378
        %1380 = vadd.xlane.f32.xlu0 %v1144
        %v1381 = vpop.xlane.xlu0 %1380
        %1382 = vadd.xlane.f32.xlu0 %v1145
        %v1383 = vpop.xlane.xlu0 %1382
        %1384 = vadd.xlane.f32.xlu0 %v1146
        %v1385 = vpop.xlane.xlu0 %1384
        %1386 = vadd.xlane.f32.xlu0 %v1147
        %v1387 = vpop.xlane.xlu0 %1386
        %1388 = vadd.xlane.f32.xlu0 %v1148
        %v1389 = vpop.xlane.xlu0 %1388
        %1390 = vadd.xlane.f32.xlu0 %v1149
        %v1391 = vpop.xlane.xlu0 %1390
        %1392 = vadd.xlane.f32.xlu0 %v1150
        %v1393 = vpop.xlane.xlu0 %1392
        %1394 = vadd.xlane.f32.xlu0 %v1151
        %v1395 = vpop.xlane.xlu0 %1394
        %1396 = vadd.xlane.f32.xlu0 %v1152
        %v1397 = vpop.xlane.xlu0 %1396
        %1398 = vadd.xlane.f32.xlu0 %v1153
        %v1399 = vpop.xlane.xlu0 %1398
        %1400 = vadd.xlane.f32.xlu0 %v1154
        %v1401 = vpop.xlane.xlu0 %1400
        %1402 = vadd.xlane.f32.xlu0 %v1155
        %v1403 = vpop.xlane.xlu0 %1402
        %1404 = vadd.xlane.f32.xlu0 %v1156
        %v1405 = vpop.xlane.xlu0 %1404
        %1406 = vadd.xlane.f32.xlu0 %v1157
        %v1407 = vpop.xlane.xlu0 %1406
        %1408 = vadd.xlane.f32.xlu0 %v1158
        %v1409 = vpop.xlane.xlu0 %1408
        %1410 = vadd.xlane.f32.xlu0 %v1159
        %v1411 = vpop.xlane.xlu0 %1410
        %1412 = vadd.xlane.f32.xlu0 %v1160
        %v1413 = vpop.xlane.xlu0 %1412
        %1414 = vadd.xlane.f32.xlu0 %v1161
        %v1415 = vpop.xlane.xlu0 %1414
        %1416 = vadd.xlane.f32.xlu0 %v1162
        %v1417 = vpop.xlane.xlu0 %1416
        %1418 = vadd.xlane.f32.xlu0 %v1163
        %v1419 = vpop.xlane.xlu0 %1418
        %1420 = vadd.xlane.f32.xlu0 %v1164
        %v1421 = vpop.xlane.xlu0 %1420
        %1422 = vadd.xlane.f32.xlu0 %v1165
        %v1423 = vpop.xlane.xlu0 %1422
        %1424 = vadd.xlane.f32.xlu0 %v1166
        %v1425 = vpop.xlane.xlu0 %1424
        %1426 = vadd.xlane.f32.xlu0 %v1167
        %v1427 = vpop.xlane.xlu0 %1426
        %1428 = vadd.xlane.f32.xlu0 %v1168
        %v1429 = vpop.xlane.xlu0 %1428
        %1430 = vadd.xlane.f32.xlu0 %v1169
        %v1431 = vpop.xlane.xlu0 %1430
        %1432 = vadd.xlane.f32.xlu0 %v1170
        %v1433 = vpop.xlane.xlu0 %1432
        %1434 = vadd.xlane.f32.xlu0 %v1171
        %v1435 = vpop.xlane.xlu0 %1434
        %1436 = vadd.xlane.f32.xlu0 %v1172
        %v1437 = vpop.xlane.xlu0 %1436
        %1438 = vadd.xlane.f32.xlu0 %v1173
        %v1439 = vpop.xlane.xlu0 %1438
        %1440 = vadd.xlane.f32.xlu0 %v1174
        %v1441 = vpop.xlane.xlu0 %1440
        %1442 = vadd.xlane.f32.xlu0 %v1175
        %v1443 = vpop.xlane.xlu0 %1442
        %1444 = vadd.xlane.f32.xlu0 %v1176
        %v1445 = vpop.xlane.xlu0 %1444
        %1446 = vadd.xlane.f32.xlu0 %v1177
        %v1447 = vpop.xlane.xlu0 %1446
        %1448 = vadd.xlane.f32.xlu0 %v1178
        %v1449 = vpop.xlane.xlu0 %1448
        %1450 = vadd.xlane.f32.xlu0 %v1179
        %v1451 = vpop.xlane.xlu0 %1450
        %1452 = vadd.xlane.f32.xlu0 %v1180
        %v1453 = vpop.xlane.xlu0 %1452
        %1454 = vadd.xlane.f32.xlu0 %v1181
        %v1455 = vpop.xlane.xlu0 %1454
        %1456 = vadd.xlane.f32.xlu0 %v1182
        %v1457 = vpop.xlane.xlu0 %1456
        %1458 = vadd.xlane.f32.xlu0 %v1183
        %v1459 = vpop.xlane.xlu0 %1458
        %1460 = vadd.xlane.f32.xlu0 %v1184
        %v1461 = vpop.xlane.xlu0 %1460
        %1462 = vadd.xlane.f32.xlu0 %v1185
        %v1463 = vpop.xlane.xlu0 %1462
        %1464 = vadd.xlane.f32.xlu0 %v1186
        %v1465 = vpop.xlane.xlu0 %1464
        %1466 = vadd.xlane.f32.xlu0 %v1187
        %v1467 = vpop.xlane.xlu0 %1466
        %1468 = vadd.xlane.f32.xlu0 %v1188
        %v1469 = vpop.xlane.xlu0 %1468
        %1470 = vadd.xlane.f32.xlu0 %v1189
        %v1471 = vpop.xlane.xlu0 %1470
        %1472 = vadd.xlane.f32.xlu0 %v1190
        %v1473 = vpop.xlane.xlu0 %1472
        %1474 = vadd.xlane.f32.xlu0 %v1191
        %v1475 = vpop.xlane.xlu0 %1474
        %1476 = vadd.xlane.f32.xlu0 %v1192
        %v1477 = vpop.xlane.xlu0 %1476
        %1478 = vadd.xlane.f32.xlu0 %v1193
        %v1479 = vpop.xlane.xlu0 %1478
        %1480 = vadd.xlane.f32.xlu0 %v1194
        %v1481 = vpop.xlane.xlu0 %1480
        %1482 = vadd.xlane.f32.xlu0 %v1195
        %v1483 = vpop.xlane.xlu0 %1482
        %1484 = vadd.xlane.f32.xlu0 %v1196
        %v1485 = vpop.xlane.xlu0 %1484
        %1486 = vadd.xlane.f32.xlu0 %v1197
        %v1487 = vpop.xlane.xlu0 %1486
        %1488 = vadd.xlane.f32.xlu0 %v1198
        %v1489 = vpop.xlane.xlu0 %1488
        %1490 = vadd.xlane.f32.xlu0 %v1199
        %v1491 = vpop.xlane.xlu0 %1490
        %1492 = vadd.xlane.f32.xlu0 %v1200
        %v1493 = vpop.xlane.xlu0 %1492
        %1494 = vadd.xlane.f32.xlu0 %v1201
        %v1495 = vpop.xlane.xlu0 %1494
        %1496 = vadd.xlane.f32.xlu0 %v1202
        %v1497 = vpop.xlane.xlu0 %1496
        %1498 = vadd.xlane.f32.xlu0 %v1203
        %v1499 = vpop.xlane.xlu0 %1498
        %1500 = vadd.xlane.f32.xlu0 %v1204
        %v1501 = vpop.xlane.xlu0 %1500
        %1502 = vadd.xlane.f32.xlu0 %v1205
        %v1503 = vpop.xlane.xlu0 %1502
        %1504 = vadd.xlane.f32.xlu0 %v1206
        %v1505 = vpop.xlane.xlu0 %1504
        %1506 = vadd.xlane.f32.xlu0 %v1207
        %v1507 = vpop.xlane.xlu0 %1506
        %1508 = vadd.xlane.f32.xlu0 %v1208
        %v1509 = vpop.xlane.xlu0 %1508
        %1510 = vadd.xlane.f32.xlu0 %v1209
        %v1511 = vpop.xlane.xlu0 %1510
        %1512 = vadd.xlane.f32.xlu0 %v1210
        %v1513 = vpop.xlane.xlu0 %1512
        %1514 = vadd.xlane.f32.xlu0 %v1211
        %v1515 = vpop.xlane.xlu0 %1514
        %1516 = vadd.xlane.f32.xlu0 %v1212
        %v1517 = vpop.xlane.xlu0 %1516
        %1518 = vadd.xlane.f32.xlu0 %v1213
        %v1519 = vpop.xlane.xlu0 %1518
        %1520 = vadd.xlane.f32.xlu0 %v1214
        %v1521 = vpop.xlane.xlu0 %1520
        %1522 = vadd.xlane.f32.xlu0 %v1215
        %v1523 = vpop.xlane.xlu0 %1522
        %1524 = vadd.xlane.f32.xlu0 %v1216
        %v1525 = vpop.xlane.xlu0 %1524
        %1526 = vadd.xlane.f32.xlu0 %v1217
        %v1527 = vpop.xlane.xlu0 %1526
        %1528 = vadd.xlane.f32.xlu0 %v1218
        %v1529 = vpop.xlane.xlu0 %1528
        %1530 = vadd.xlane.f32.xlu0 %v1219
        %v1531 = vpop.xlane.xlu0 %1530
        %1532 = vadd.xlane.f32.xlu0 %v1220
        %v1533 = vpop.xlane.xlu0 %1532
        %1534 = vadd.xlane.f32.xlu0 %v1221
        %v1535 = vpop.xlane.xlu0 %1534
        %1536 = vadd.xlane.f32.xlu0 %v1222
        %v1537 = vpop.xlane.xlu0 %1536
        %1538 = vadd.xlane.f32.xlu0 %v1223
        %v1539 = vpop.xlane.xlu0 %1538
        %1540 = vadd.xlane.f32.xlu0 %v1224
        %v1541 = vpop.xlane.xlu0 %1540
        %1542 = vadd.xlane.f32.xlu0 %v1225
        %v1543 = vpop.xlane.xlu0 %1542
        %1544 = vadd.xlane.f32.xlu0 %v1226
        %v1545 = vpop.xlane.xlu0 %1544
        %1546 = vadd.xlane.f32.xlu0 %v1227
        %v1547 = vpop.xlane.xlu0 %1546
        %1548 = vadd.xlane.f32.xlu0 %v1228
        %v1549 = vpop.xlane.xlu0 %1548
        %1550 = vadd.xlane.f32.xlu0 %v1229
        %v1551 = vpop.xlane.xlu0 %1550
        %1552 = vadd.xlane.f32.xlu0 %v1230
        %v1553 = vpop.xlane.xlu0 %1552
        %1554 = vadd.xlane.f32.xlu0 %v1231
        %v1555 = vpop.xlane.xlu0 %1554
        %1556 = vadd.xlane.f32.xlu0 %v1232
        %v1557 = vpop.xlane.xlu0 %1556
        %1558 = vadd.xlane.f32.xlu0 %v1233
        %v1559 = vpop.xlane.xlu0 %1558
        %1560 = vadd.xlane.f32.xlu0 %v1234
        %v1561 = vpop.xlane.xlu0 %1560
        %1562 = vadd.xlane.f32.xlu0 %v1235
        %v1563 = vpop.xlane.xlu0 %1562
        %1564 = vadd.xlane.f32.xlu0 %v1236
        %v1565 = vpop.xlane.xlu0 %1564
        %1566 = vadd.xlane.f32.xlu0 %v1237
        %v1567 = vpop.xlane.xlu0 %1566
        %1568 = vadd.xlane.f32.xlu0 %v1238
        %v1569 = vpop.xlane.xlu0 %1568
        %1570 = vadd.xlane.f32.xlu0 %v1239
        %v1571 = vpop.xlane.xlu0 %1570
        %1572 = vadd.xlane.f32.xlu0 %v1240
        %v1573 = vpop.xlane.xlu0 %1572
        %1574 = vadd.xlane.f32.xlu0 %v1241
        %v1575 = vpop.xlane.xlu0 %1574
        %1576 = vadd.xlane.f32.xlu0 %v1242
        %v1577 = vpop.xlane.xlu0 %1576
        %1578 = vadd.xlane.f32.xlu0 %v1243
        %v1579 = vpop.xlane.xlu0 %1578
        %1580 = vadd.xlane.f32.xlu0 %v1244
        %v1581 = vpop.xlane.xlu0 %1580
        %1582 = vadd.xlane.f32.xlu0 %v1245
        %v1583 = vpop.xlane.xlu0 %1582
        %1584 = vadd.xlane.f32.xlu0 %v1246
        %v1585 = vpop.xlane.xlu0 %1584
        %1586 = vadd.xlane.f32.xlu0 %v1247
        %v1587 = vpop.xlane.xlu0 %1586
        %1588 = vadd.xlane.f32.xlu0 %v1248
        %v1589 = vpop.xlane.xlu0 %1588
        %1590 = vadd.xlane.f32.xlu0 %v1249
        %v1591 = vpop.xlane.xlu0 %1590
        %1592 = vadd.xlane.f32.xlu0 %v1250
        %v1593 = vpop.xlane.xlu0 %1592
        %1594 = vadd.xlane.f32.xlu0 %v1251
        %v1595 = vpop.xlane.xlu0 %1594
        %1596 = vadd.xlane.f32.xlu0 %v1252
        %v1597 = vpop.xlane.xlu0 %1596
        %1598 = vadd.xlane.f32.xlu0 %v1253
        %v1599 = vpop.xlane.xlu0 %1598
        %1600 = vadd.xlane.f32.xlu0 %v1254
        %v1601 = vpop.xlane.xlu0 %1600
        %1602 = vadd.xlane.f32.xlu0 %v1255
        %v1603 = vpop.xlane.xlu0 %1602
        %1604 = vadd.xlane.f32.xlu0 %v1256
        %v1605 = vpop.xlane.xlu0 %1604
        %1606 = vadd.xlane.f32.xlu0 %v1257
        %v1607 = vpop.xlane.xlu0 %1606
        %1608 = vadd.xlane.f32.xlu0 %v1258
        %v1609 = vpop.xlane.xlu0 %1608
        %1610 = vadd.xlane.f32.xlu0 %v1259
        %v1611 = vpop.xlane.xlu0 %1610
        %1612 = vadd.xlane.f32.xlu0 %v1260
        %v1613 = vpop.xlane.xlu0 %1612
        %1614 = vadd.xlane.f32.xlu0 %v1261
        %v1615 = vpop.xlane.xlu0 %1614
        %1616 = vadd.xlane.f32.xlu0 %v1262
        %v1617 = vpop.xlane.xlu0 %1616
        %1618 = vadd.xlane.f32.xlu0 %v1263
        %v1619 = vpop.xlane.xlu0 %1618
        %1620 = vadd.xlane.f32.xlu0 %v1264
        %v1621 = vpop.xlane.xlu0 %1620
        %1622 = vadd.xlane.f32.xlu0 %v1265
        %v1623 = vpop.xlane.xlu0 %1622
        %1624 = vadd.xlane.f32.xlu0 %v1266
        %v1625 = vpop.xlane.xlu0 %1624
        %1626 = vadd.xlane.f32.xlu0 %v1267
        %v1627 = vpop.xlane.xlu0 %1626
        %1628 = vadd.xlane.f32.xlu0 %v1268
        %v1629 = vpop.xlane.xlu0 %1628
        %1630 = vadd.xlane.f32.xlu0 %v1269
        %v1631 = vpop.xlane.xlu0 %1630
        %1632 = vadd.xlane.f32.xlu0 %v1270
        %v1633 = vpop.xlane.xlu0 %1632
        %1634 = vadd.xlane.f32.xlu0 %v1271
        %v1635 = vpop.xlane.xlu0 %1634
        %1636 = vadd.xlane.f32.xlu0 %v1272
        %v1637 = vpop.xlane.xlu0 %1636
        %1638 = vadd.xlane.f32.xlu0 %v1273
        %v1639 = vpop.xlane.xlu0 %1638
        %1640 = vadd.xlane.f32.xlu0 %v1274
        %v1641 = vpop.xlane.xlu0 %1640
        %1642 = vadd.xlane.f32.xlu0 %v1275
        %v1643 = vpop.xlane.xlu0 %1642
        %1644 = vadd.xlane.f32.xlu0 %v1276
        %v1645 = vpop.xlane.xlu0 %1644
        %1646 = vadd.xlane.f32.xlu0 %v1277
        %v1647 = vpop.xlane.xlu0 %1646
        %1648 = vadd.xlane.f32.xlu0 %v1278
        %v1649 = vpop.xlane.xlu0 %1648
        %1650 = vadd.xlane.f32.xlu0 %v1279
        %v1651 = vpop.xlane.xlu0 %1650
        %1652 = vadd.xlane.f32.xlu0 %v1280
        %v1653 = vpop.xlane.xlu0 %1652
        %1654 = vadd.xlane.f32.xlu0 %v1281
        %v1655 = vpop.xlane.xlu0 %1654
        %1656 = vadd.xlane.f32.xlu0 %v1282
        %v1657 = vpop.xlane.xlu0 %1656
        %1658 = vadd.xlane.f32.xlu0 %v1283
        %v1659 = vpop.xlane.xlu0 %1658
        %1660 = vadd.xlane.f32.xlu0 %v1284
        %v1661 = vpop.xlane.xlu0 %1660
        %1662 = vadd.xlane.f32.xlu0 %v1285
        %v1663 = vpop.xlane.xlu0 %1662
        %1664 = vadd.xlane.f32.xlu0 %v1286
        %v1665 = vpop.xlane.xlu0 %1664
        %1666 = vadd.xlane.f32.xlu0 %v1287
        %v1667 = vpop.xlane.xlu0 %1666
        %1668 = vadd.xlane.f32.xlu0 %v1288
        %v1669 = vpop.xlane.xlu0 %1668
        %1670 = vadd.xlane.f32.xlu0 %v1289
        %v1671 = vpop.xlane.xlu0 %1670
        %1672 = vadd.xlane.f32.xlu0 %v1290
        %v1673 = vpop.xlane.xlu0 %1672
        %1674 = vadd.xlane.f32.xlu0 %v1291
        %v1675 = vpop.xlane.xlu0 %1674
        %v1676 = vsub.f32 0.0, %v1293
        %v1677 = vsub.f32 0.0, %v1295
        %v1678 = vsub.f32 0.0, %v1297
        %v1679 = vsub.f32 0.0, %v1299
        %v1680 = vsub.f32 0.0, %v1301
        %v1681 = vsub.f32 0.0, %v1303
        %v1682 = vsub.f32 0.0, %v1305
        %v1683 = vsub.f32 0.0, %v1307
        %v1684 = vsub.f32 0.0, %v1309
        %v1685 = vsub.f32 0.0, %v1311
        %v1686 = vsub.f32 0.0, %v1313
        %v1687 = vsub.f32 0.0, %v1315
        %v1688 = vsub.f32 0.0, %v1317
        %v1689 = vsub.f32 0.0, %v1319
        %v1690 = vsub.f32 0.0, %v1321
        %v1691 = vsub.f32 0.0, %v1323
        %v1692 = vsub.f32 0.0, %v1325
        %v1693 = vsub.f32 0.0, %v1327
        %v1694 = vsub.f32 0.0, %v1329
        %v1695 = vsub.f32 0.0, %v1331
        %v1696 = vsub.f32 0.0, %v1333
        %v1697 = vsub.f32 0.0, %v1335
        %v1698 = vsub.f32 0.0, %v1337
        %v1699 = vsub.f32 0.0, %v1339
        %v1700 = vsub.f32 0.0, %v1341
        %v1701 = vsub.f32 0.0, %v1343
        %v1702 = vsub.f32 0.0, %v1345
        %v1703 = vsub.f32 0.0, %v1347
        %v1704 = vsub.f32 0.0, %v1349
        %v1705 = vsub.f32 0.0, %v1351
        %v1706 = vsub.f32 0.0, %v1353
        %v1707 = vsub.f32 0.0, %v1355
        %v1708 = vsub.f32 0.0, %v1357
        %v1709 = vsub.f32 0.0, %v1359
        %v1710 = vsub.f32 0.0, %v1361
        %v1711 = vsub.f32 0.0, %v1363
        %v1712 = vsub.f32 0.0, %v1365
        %v1713 = vsub.f32 0.0, %v1367
        %v1714 = vsub.f32 0.0, %v1369
        %v1715 = vsub.f32 0.0, %v1371
        %v1716 = vsub.f32 0.0, %v1373
        %v1717 = vsub.f32 0.0, %v1375
        %v1718 = vsub.f32 0.0, %v1377
        %v1719 = vsub.f32 0.0, %v1379
        %v1720 = vsub.f32 0.0, %v1381
        %v1721 = vsub.f32 0.0, %v1383
        %v1722 = vsub.f32 0.0, %v1385
        %v1723 = vsub.f32 0.0, %v1387
        %v1724 = vsub.f32 0.0, %v1389
        %v1725 = vsub.f32 0.0, %v1391
        %v1726 = vsub.f32 0.0, %v1393
        %v1727 = vsub.f32 0.0, %v1395
        %v1728 = vsub.f32 0.0, %v1397
        %v1729 = vsub.f32 0.0, %v1399
        %v1730 = vsub.f32 0.0, %v1401
        %v1731 = vsub.f32 0.0, %v1403
        %v1732 = vsub.f32 0.0, %v1405
        %v1733 = vsub.f32 0.0, %v1407
        %v1734 = vsub.f32 0.0, %v1409
        %v1735 = vsub.f32 0.0, %v1411
        %v1736 = vsub.f32 0.0, %v1413
        %v1737 = vsub.f32 0.0, %v1415
        %v1738 = vsub.f32 0.0, %v1417
        %v1739 = vsub.f32 0.0, %v1419
        %v1740 = vsub.f32 0.0, %v1421
        %v1741 = vsub.f32 0.0, %v1423
        %v1742 = vsub.f32 0.0, %v1425
        %v1743 = vsub.f32 0.0, %v1427
        %v1744 = vsub.f32 0.0, %v1429
        %v1745 = vsub.f32 0.0, %v1431
        %v1746 = vsub.f32 0.0, %v1433
        %v1747 = vsub.f32 0.0, %v1435
        %v1748 = vsub.f32 0.0, %v1437
        %v1749 = vsub.f32 0.0, %v1439
        %v1750 = vsub.f32 0.0, %v1441
        %v1751 = vsub.f32 0.0, %v1443
        %v1752 = vsub.f32 0.0, %v1445
        %v1753 = vsub.f32 0.0, %v1447
        %v1754 = vsub.f32 0.0, %v1449
        %v1755 = vsub.f32 0.0, %v1451
        %v1756 = vsub.f32 0.0, %v1453
        %v1757 = vsub.f32 0.0, %v1455
        %v1758 = vsub.f32 0.0, %v1457
        %v1759 = vsub.f32 0.0, %v1459
        %v1760 = vsub.f32 0.0, %v1461
        %v1761 = vsub.f32 0.0, %v1463
        %v1762 = vsub.f32 0.0, %v1465
        %v1763 = vsub.f32 0.0, %v1467
        %v1764 = vsub.f32 0.0, %v1469
        %v1765 = vsub.f32 0.0, %v1471
        %v1766 = vsub.f32 0.0, %v1473
        %v1767 = vsub.f32 0.0, %v1475
        %v1768 = vsub.f32 0.0, %v1477
        %v1769 = vsub.f32 0.0, %v1479
        %v1770 = vsub.f32 0.0, %v1481
        %v1771 = vsub.f32 0.0, %v1483
        %v1772 = vsub.f32 0.0, %v1485
        %v1773 = vsub.f32 0.0, %v1487
        %v1774 = vsub.f32 0.0, %v1489
        %v1775 = vsub.f32 0.0, %v1491
        %v1776 = vsub.f32 0.0, %v1493
        %v1777 = vsub.f32 0.0, %v1495
        %v1778 = vsub.f32 0.0, %v1497
        %v1779 = vsub.f32 0.0, %v1499
        %v1780 = vsub.f32 0.0, %v1501
        %v1781 = vsub.f32 0.0, %v1503
        %v1782 = vsub.f32 0.0, %v1505
        %v1783 = vsub.f32 0.0, %v1507
        %v1784 = vsub.f32 0.0, %v1509
        %v1785 = vsub.f32 0.0, %v1511
        %v1786 = vsub.f32 0.0, %v1513
        %v1787 = vsub.f32 0.0, %v1515
        %v1788 = vsub.f32 0.0, %v1517
        %v1789 = vsub.f32 0.0, %v1519
        %v1790 = vsub.f32 0.0, %v1521
        %v1791 = vsub.f32 0.0, %v1523
        %v1792 = vsub.f32 0.0, %v1525
        %v1793 = vsub.f32 0.0, %v1527
        %v1794 = vsub.f32 0.0, %v1529
        %v1795 = vsub.f32 0.0, %v1531
        %v1796 = vsub.f32 0.0, %v1533
        %v1797 = vsub.f32 0.0, %v1535
        %v1798 = vsub.f32 0.0, %v1537
        %v1799 = vsub.f32 0.0, %v1539
        %v1800 = vsub.f32 0.0, %v1541
        %v1801 = vsub.f32 0.0, %v1543
        %v1802 = vsub.f32 0.0, %v1545
        %v1803 = vsub.f32 0.0, %v1547
        %v1804 = vsub.f32 0.0, %v1549
        %v1805 = vsub.f32 0.0, %v1551
        %v1806 = vsub.f32 0.0, %v1553
        %v1807 = vsub.f32 0.0, %v1555
        %v1808 = vsub.f32 0.0, %v1557
        %v1809 = vsub.f32 0.0, %v1559
        %v1810 = vsub.f32 0.0, %v1561
        %v1811 = vsub.f32 0.0, %v1563
        %v1812 = vsub.f32 0.0, %v1565
        %v1813 = vsub.f32 0.0, %v1567
        %v1814 = vsub.f32 0.0, %v1569
        %v1815 = vsub.f32 0.0, %v1571
        %v1816 = vsub.f32 0.0, %v1573
        %v1817 = vsub.f32 0.0, %v1575
        %v1818 = vsub.f32 0.0, %v1577
        %v1819 = vsub.f32 0.0, %v1579
        %v1820 = vsub.f32 0.0, %v1581
        %v1821 = vsub.f32 0.0, %v1583
        %v1822 = vsub.f32 0.0, %v1585
        %v1823 = vsub.f32 0.0, %v1587
        %v1824 = vsub.f32 0.0, %v1589
        %v1825 = vsub.f32 0.0, %v1591
        %v1826 = vsub.f32 0.0, %v1593
        %v1827 = vsub.f32 0.0, %v1595
        %v1828 = vsub.f32 0.0, %v1597
        %v1829 = vsub.f32 0.0, %v1599
        %v1830 = vsub.f32 0.0, %v1601
        %v1831 = vsub.f32 0.0, %v1603
        %v1832 = vsub.f32 0.0, %v1605
        %v1833 = vsub.f32 0.0, %v1607
        %v1834 = vsub.f32 0.0, %v1609
        %v1835 = vsub.f32 0.0, %v1611
        %v1836 = vsub.f32 0.0, %v1613
        %v1837 = vsub.f32 0.0, %v1615
        %v1838 = vsub.f32 0.0, %v1617
        %v1839 = vsub.f32 0.0, %v1619
        %v1840 = vsub.f32 0.0, %v1621
        %v1841 = vsub.f32 0.0, %v1623
        %v1842 = vsub.f32 0.0, %v1625
        %v1843 = vsub.f32 0.0, %v1627
        %v1844 = vsub.f32 0.0, %v1629
        %v1845 = vsub.f32 0.0, %v1631
        %v1846 = vsub.f32 0.0, %v1633
        %v1847 = vsub.f32 0.0, %v1635
        %v1848 = vsub.f32 0.0, %v1637
        %v1849 = vsub.f32 0.0, %v1639
        %v1850 = vsub.f32 0.0, %v1641
        %v1851 = vsub.f32 0.0, %v1643
        %v1852 = vsub.f32 0.0, %v1645
        %v1853 = vsub.f32 0.0, %v1647
        %v1854 = vsub.f32 0.0, %v1649
        %v1855 = vsub.f32 0.0, %v1651
        %v1856 = vsub.f32 0.0, %v1653
        %v1857 = vsub.f32 0.0, %v1655
        %v1858 = vsub.f32 0.0, %v1657
        %v1859 = vsub.f32 0.0, %v1659
        %v1860 = vsub.f32 0.0, %v1661
        %v1861 = vsub.f32 0.0, %v1663
        %v1862 = vsub.f32 0.0, %v1665
        %v1863 = vsub.f32 0.0, %v1667
        %v1864 = vsub.f32 0.0, %v1669
        %v1865 = vsub.f32 0.0, %v1671
        %v1866 = vsub.f32 0.0, %v1673
        %v1867 = vsub.f32 0.0, %v1675
        %v2060 = vlaneseq
        %v2061 = vand.u32 %v2060, 127
        %v2062 = vlaneseq
        %v2063 = vshrl.u32 %v2062, 7
        %v2064 = vsub.s32 %v2061, %v2063
        %v2065 = vrot.slane %v1676, %v2064
        %v2066 = vadd.s32 %v2061, 4294967288
        %v2067 = vlaneseq
        %v2068 = vshrl.u32 %v2067, 7
        %v2069 = vsub.s32 %v2066, %v2068
        %v2070 = vrot.slane %v1677, %v2069
        %vm2071 = vcmask 130112
        %v2072 = vsel %vm2071, %v2070, %v2065
        %v2073 = vadd.s32 %v2061, 4294967280
        %v2074 = vlaneseq
        %v2075 = vshrl.u32 %v2074, 7
        %v2076 = vsub.s32 %v2073, %v2075
        %v2077 = vrot.slane %v1678, %v2076
        %vm2078 = vcmask 195712
        %v2079 = vsel %vm2078, %v2077, %v2072
        %v2080 = vadd.s32 %v2061, 4294967272
        %v2081 = vlaneseq
        %v2082 = vshrl.u32 %v2081, 7
        %v2083 = vsub.s32 %v2080, %v2082
        %v2084 = vrot.slane %v1679, %v2083
        %vm2085 = vcmask 261312
        %v2086 = vsel %vm2085, %v2084, %v2079
        %v2087 = vadd.s32 %v2061, 4294967264
        %v2088 = vlaneseq
        %v2089 = vshrl.u32 %v2088, 7
        %v2090 = vsub.s32 %v2087, %v2089
        %v2091 = vrot.slane %v1680, %v2090
        %vm2092 = vcmask 326912
        %v2093 = vsel %vm2092, %v2091, %v2086
        %v2094 = vadd.s32 %v2061, 4294967256
        %v2095 = vlaneseq
        %v2096 = vshrl.u32 %v2095, 7
        %v2097 = vsub.s32 %v2094, %v2096
        %v2098 = vrot.slane %v1681, %v2097
        %vm2099 = vcmask 392512
        %v2100 = vsel %vm2099, %v2098, %v2093
        %v2101 = vadd.s32 %v2061, 4294967248
        %v2102 = vlaneseq
        %v2103 = vshrl.u32 %v2102, 7
        %v2104 = vsub.s32 %v2101, %v2103
        %v2105 = vrot.slane %v1682, %v2104
        %vm2106 = vcmask 458112
        %v2107 = vsel %vm2106, %v2105, %v2100
        %v2108 = vadd.s32 %v2061, 4294967240
        %v2109 = vlaneseq
        %v2110 = vshrl.u32 %v2109, 7
        %v2111 = vsub.s32 %v2108, %v2110
        %v2112 = vrot.slane %v1683, %v2111
        %vm2113 = vcmask 523712
        %v2114 = vsel %vm2113, %v2112, %v2107
        %v2115 = vadd.s32 %v2061, 4294967232
        %v2116 = vlaneseq
        %v2117 = vshrl.u32 %v2116, 7
        %v2118 = vsub.s32 %v2115, %v2117
        %v2119 = vrot.slane %v1684, %v2118
        %vm2120 = vcmask 589312
        %v2121 = vsel %vm2120, %v2119, %v2114
        %v2122 = vadd.s32 %v2061, 4294967224
        %v2123 = vlaneseq
        %v2124 = vshrl.u32 %v2123, 7
        %v2125 = vsub.s32 %v2122, %v2124
        %v2126 = vrot.slane %v1685, %v2125
        %vm2127 = vcmask 654912
        %v2128 = vsel %vm2127, %v2126, %v2121
        %v2129 = vadd.s32 %v2061, 4294967216
        %v2130 = vlaneseq
        %v2131 = vshrl.u32 %v2130, 7
        %v2132 = vsub.s32 %v2129, %v2131
        %v2133 = vrot.slane %v1686, %v2132
        %vm2134 = vcmask 720512
        %v2135 = vsel %vm2134, %v2133, %v2128
        %v2136 = vadd.s32 %v2061, 4294967208
        %v2137 = vlaneseq
        %v2138 = vshrl.u32 %v2137, 7
        %v2139 = vsub.s32 %v2136, %v2138
        %v2140 = vrot.slane %v1687, %v2139
        %vm2141 = vcmask 786112
        %v2142 = vsel %vm2141, %v2140, %v2135
        %v2143 = vadd.s32 %v2061, 4294967200
        %v2144 = vlaneseq
        %v2145 = vshrl.u32 %v2144, 7
        %v2146 = vsub.s32 %v2143, %v2145
        %v2147 = vrot.slane %v1688, %v2146
        %vm2148 = vcmask 851712
        %v2149 = vsel %vm2148, %v2147, %v2142
        %v2150 = vadd.s32 %v2061, 4294967192
        %v2151 = vlaneseq
        %v2152 = vshrl.u32 %v2151, 7
        %v2153 = vsub.s32 %v2150, %v2152
        %v2154 = vrot.slane %v1689, %v2153
        %vm2155 = vcmask 917312
        %v2156 = vsel %vm2155, %v2154, %v2149
        %v2157 = vadd.s32 %v2061, 4294967184
        %v2158 = vlaneseq
        %v2159 = vshrl.u32 %v2158, 7
        %v2160 = vsub.s32 %v2157, %v2159
        %v2161 = vrot.slane %v1690, %v2160
        %vm2162 = vcmask 982912
        %v2163 = vsel %vm2162, %v2161, %v2156
        %v2164 = vadd.s32 %v2061, 4294967176
        %v2165 = vlaneseq
        %v2166 = vshrl.u32 %v2165, 7
        %v2167 = vsub.s32 %v2164, %v2166
        %v2168 = vrot.slane %v1691, %v2167
        %vm2169 = vcmask 1048512
        %v2170 = vsel %vm2169, %v2168, %v2163
        %v2171 = vlaneseq
        %v2172 = vshrl.u32 %v2171, 7
        %v2173 = vsub.s32 %v2061, %v2172
        %v2174 = vrot.slane %v1692, %v2173
        %v2175 = vlaneseq
        %v2176 = vshrl.u32 %v2175, 7
        %v2177 = vsub.s32 %v2066, %v2176
        %v2178 = vrot.slane %v1693, %v2177
        %v2179 = vsel %vm2071, %v2178, %v2174
        %v2180 = vlaneseq
        %v2181 = vshrl.u32 %v2180, 7
        %v2182 = vsub.s32 %v2073, %v2181
        %v2183 = vrot.slane %v1694, %v2182
        %v2184 = vsel %vm2078, %v2183, %v2179
        %v2185 = vlaneseq
        %v2186 = vshrl.u32 %v2185, 7
        %v2187 = vsub.s32 %v2080, %v2186
        %v2188 = vrot.slane %v1695, %v2187
        %v2189 = vsel %vm2085, %v2188, %v2184
        %v2190 = vlaneseq
        %v2191 = vshrl.u32 %v2190, 7
        %v2192 = vsub.s32 %v2087, %v2191
        %v2193 = vrot.slane %v1696, %v2192
        %v2194 = vsel %vm2092, %v2193, %v2189
        %v2195 = vlaneseq
        %v2196 = vshrl.u32 %v2195, 7
        %v2197 = vsub.s32 %v2094, %v2196
        %v2198 = vrot.slane %v1697, %v2197
        %v2199 = vsel %vm2099, %v2198, %v2194
        %v2200 = vlaneseq
        %v2201 = vshrl.u32 %v2200, 7
        %v2202 = vsub.s32 %v2101, %v2201
        %v2203 = vrot.slane %v1698, %v2202
        %v2204 = vsel %vm2106, %v2203, %v2199
        %v2205 = vlaneseq
        %v2206 = vshrl.u32 %v2205, 7
        %v2207 = vsub.s32 %v2108, %v2206
        %v2208 = vrot.slane %v1699, %v2207
        %v2209 = vsel %vm2113, %v2208, %v2204
        %v2210 = vlaneseq
        %v2211 = vshrl.u32 %v2210, 7
        %v2212 = vsub.s32 %v2115, %v2211
        %v2213 = vrot.slane %v1700, %v2212
        %v2214 = vsel %vm2120, %v2213, %v2209
        %v2215 = vlaneseq
        %v2216 = vshrl.u32 %v2215, 7
        %v2217 = vsub.s32 %v2122, %v2216
        %v2218 = vrot.slane %v1701, %v2217
        %v2219 = vsel %vm2127, %v2218, %v2214
        %v2220 = vlaneseq
        %v2221 = vshrl.u32 %v2220, 7
        %v2222 = vsub.s32 %v2129, %v2221
        %v2223 = vrot.slane %v1702, %v2222
        %v2224 = vsel %vm2134, %v2223, %v2219
        %v2225 = vlaneseq
        %v2226 = vshrl.u32 %v2225, 7
        %v2227 = vsub.s32 %v2136, %v2226
        %v2228 = vrot.slane %v1703, %v2227
        %v2229 = vsel %vm2141, %v2228, %v2224
        %v2230 = vlaneseq
        %v2231 = vshrl.u32 %v2230, 7
        %v2232 = vsub.s32 %v2143, %v2231
        %v2233 = vrot.slane %v1704, %v2232
        %v2234 = vsel %vm2148, %v2233, %v2229
        %v2235 = vlaneseq
        %v2236 = vshrl.u32 %v2235, 7
        %v2237 = vsub.s32 %v2150, %v2236
        %v2238 = vrot.slane %v1705, %v2237
        %v2239 = vsel %vm2155, %v2238, %v2234
        %v2240 = vlaneseq
        %v2241 = vshrl.u32 %v2240, 7
        %v2242 = vsub.s32 %v2157, %v2241
        %v2243 = vrot.slane %v1706, %v2242
        %v2244 = vsel %vm2162, %v2243, %v2239
        %v2245 = vlaneseq
        %v2246 = vshrl.u32 %v2245, 7
        %v2247 = vsub.s32 %v2164, %v2246
        %v2248 = vrot.slane %v1707, %v2247
        %v2249 = vsel %vm2169, %v2248, %v2244
        %v2250 = vlaneseq
        %v2251 = vshrl.u32 %v2250, 7
        %v2252 = vsub.s32 %v2061, %v2251
        %v2253 = vrot.slane %v1708, %v2252
        %v2254 = vlaneseq
        %v2255 = vshrl.u32 %v2254, 7
        %v2256 = vsub.s32 %v2066, %v2255
        %v2257 = vrot.slane %v1709, %v2256
        %v2258 = vsel %vm2071, %v2257, %v2253
        %v2259 = vlaneseq
        %v2260 = vshrl.u32 %v2259, 7
        %v2261 = vsub.s32 %v2073, %v2260
        %v2262 = vrot.slane %v1710, %v2261
        %v2263 = vsel %vm2078, %v2262, %v2258
        %v2264 = vlaneseq
        %v2265 = vshrl.u32 %v2264, 7
        %v2266 = vsub.s32 %v2080, %v2265
        %v2267 = vrot.slane %v1711, %v2266
        %v2268 = vsel %vm2085, %v2267, %v2263
        %v2269 = vlaneseq
        %v2270 = vshrl.u32 %v2269, 7
        %v2271 = vsub.s32 %v2087, %v2270
        %v2272 = vrot.slane %v1712, %v2271
        %v2273 = vsel %vm2092, %v2272, %v2268
        %v2274 = vlaneseq
        %v2275 = vshrl.u32 %v2274, 7
        %v2276 = vsub.s32 %v2094, %v2275
        %v2277 = vrot.slane %v1713, %v2276
        %v2278 = vsel %vm2099, %v2277, %v2273
        %v2279 = vlaneseq
        %v2280 = vshrl.u32 %v2279, 7
        %v2281 = vsub.s32 %v2101, %v2280
        %v2282 = vrot.slane %v1714, %v2281
        %v2283 = vsel %vm2106, %v2282, %v2278
        %v2284 = vlaneseq
        %v2285 = vshrl.u32 %v2284, 7
        %v2286 = vsub.s32 %v2108, %v2285
        %v2287 = vrot.slane %v1715, %v2286
        %v2288 = vsel %vm2113, %v2287, %v2283
        %v2289 = vlaneseq
        %v2290 = vshrl.u32 %v2289, 7
        %v2291 = vsub.s32 %v2115, %v2290
        %v2292 = vrot.slane %v1716, %v2291
        %v2293 = vsel %vm2120, %v2292, %v2288
        %v2294 = vlaneseq
        %v2295 = vshrl.u32 %v2294, 7
        %v2296 = vsub.s32 %v2122, %v2295
        %v2297 = vrot.slane %v1717, %v2296
        %v2298 = vsel %vm2127, %v2297, %v2293
        %v2299 = vlaneseq
        %v2300 = vshrl.u32 %v2299, 7
        %v2301 = vsub.s32 %v2129, %v2300
        %v2302 = vrot.slane %v1718, %v2301
        %v2303 = vsel %vm2134, %v2302, %v2298
        %v2304 = vlaneseq
        %v2305 = vshrl.u32 %v2304, 7
        %v2306 = vsub.s32 %v2136, %v2305
        %v2307 = vrot.slane %v1719, %v2306
        %v2308 = vsel %vm2141, %v2307, %v2303
        %v2309 = vlaneseq
        %v2310 = vshrl.u32 %v2309, 7
        %v2311 = vsub.s32 %v2143, %v2310
        %v2312 = vrot.slane %v1720, %v2311
        %v2313 = vsel %vm2148, %v2312, %v2308
        %v2314 = vlaneseq
        %v2315 = vshrl.u32 %v2314, 7
        %v2316 = vsub.s32 %v2150, %v2315
        %v2317 = vrot.slane %v1721, %v2316
        %v2318 = vsel %vm2155, %v2317, %v2313
        %v2319 = vlaneseq
        %v2320 = vshrl.u32 %v2319, 7
        %v2321 = vsub.s32 %v2157, %v2320
        %v2322 = vrot.slane %v1722, %v2321
        %v2323 = vsel %vm2162, %v2322, %v2318
        %v2324 = vlaneseq
        %v2325 = vshrl.u32 %v2324, 7
        %v2326 = vsub.s32 %v2164, %v2325
        %v2327 = vrot.slane %v1723, %v2326
        %v2328 = vsel %vm2169, %v2327, %v2323
        %v2329 = vlaneseq
        %v2330 = vshrl.u32 %v2329, 7
        %v2331 = vsub.s32 %v2061, %v2330
        %v2332 = vrot.slane %v1724, %v2331
        %v2333 = vlaneseq
        %v2334 = vshrl.u32 %v2333, 7
        %v2335 = vsub.s32 %v2066, %v2334
        %v2336 = vrot.slane %v1725, %v2335
        %v2337 = vsel %vm2071, %v2336, %v2332
        %v2338 = vlaneseq
        %v2339 = vshrl.u32 %v2338, 7
        %v2340 = vsub.s32 %v2073, %v2339
        %v2341 = vrot.slane %v1726, %v2340
        %v2342 = vsel %vm2078, %v2341, %v2337
        %v2343 = vlaneseq
        %v2344 = vshrl.u32 %v2343, 7
        %v2345 = vsub.s32 %v2080, %v2344
        %v2346 = vrot.slane %v1727, %v2345
        %v2347 = vsel %vm2085, %v2346, %v2342
        %v2348 = vlaneseq
        %v2349 = vshrl.u32 %v2348, 7
        %v2350 = vsub.s32 %v2087, %v2349
        %v2351 = vrot.slane %v1728, %v2350
        %v2352 = vsel %vm2092, %v2351, %v2347
        %v2353 = vlaneseq
        %v2354 = vshrl.u32 %v2353, 7
        %v2355 = vsub.s32 %v2094, %v2354
        %v2356 = vrot.slane %v1729, %v2355
        %v2357 = vsel %vm2099, %v2356, %v2352
        %v2358 = vlaneseq
        %v2359 = vshrl.u32 %v2358, 7
        %v2360 = vsub.s32 %v2101, %v2359
        %v2361 = vrot.slane %v1730, %v2360
        %v2362 = vsel %vm2106, %v2361, %v2357
        %v2363 = vlaneseq
        %v2364 = vshrl.u32 %v2363, 7
        %v2365 = vsub.s32 %v2108, %v2364
        %v2366 = vrot.slane %v1731, %v2365
        %v2367 = vsel %vm2113, %v2366, %v2362
        %v2368 = vlaneseq
        %v2369 = vshrl.u32 %v2368, 7
        %v2370 = vsub.s32 %v2115, %v2369
        %v2371 = vrot.slane %v1732, %v2370
        %v2372 = vsel %vm2120, %v2371, %v2367
        %v2373 = vlaneseq
        %v2374 = vshrl.u32 %v2373, 7
        %v2375 = vsub.s32 %v2122, %v2374
        %v2376 = vrot.slane %v1733, %v2375
        %v2377 = vsel %vm2127, %v2376, %v2372
        %v2378 = vlaneseq
        %v2379 = vshrl.u32 %v2378, 7
        %v2380 = vsub.s32 %v2129, %v2379
        %v2381 = vrot.slane %v1734, %v2380
        %v2382 = vsel %vm2134, %v2381, %v2377
        %v2383 = vlaneseq
        %v2384 = vshrl.u32 %v2383, 7
        %v2385 = vsub.s32 %v2136, %v2384
        %v2386 = vrot.slane %v1735, %v2385
        %v2387 = vsel %vm2141, %v2386, %v2382
        %v2388 = vlaneseq
        %v2389 = vshrl.u32 %v2388, 7
        %v2390 = vsub.s32 %v2143, %v2389
        %v2391 = vrot.slane %v1736, %v2390
        %v2392 = vsel %vm2148, %v2391, %v2387
        %v2393 = vlaneseq
        %v2394 = vshrl.u32 %v2393, 7
        %v2395 = vsub.s32 %v2150, %v2394
        %v2396 = vrot.slane %v1737, %v2395
        %v2397 = vsel %vm2155, %v2396, %v2392
        %v2398 = vlaneseq
        %v2399 = vshrl.u32 %v2398, 7
        %v2400 = vsub.s32 %v2157, %v2399
        %v2401 = vrot.slane %v1738, %v2400
        %v2402 = vsel %vm2162, %v2401, %v2397
        %v2403 = vlaneseq
        %v2404 = vshrl.u32 %v2403, 7
        %v2405 = vsub.s32 %v2164, %v2404
        %v2406 = vrot.slane %v1739, %v2405
        %v2407 = vsel %vm2169, %v2406, %v2402
        %v2408 = vlaneseq
        %v2409 = vshrl.u32 %v2408, 7
        %v2410 = vsub.s32 %v2061, %v2409
        %v2411 = vrot.slane %v1740, %v2410
        %v2412 = vlaneseq
        %v2413 = vshrl.u32 %v2412, 7
        %v2414 = vsub.s32 %v2066, %v2413
        %v2415 = vrot.slane %v1741, %v2414
        %v2416 = vsel %vm2071, %v2415, %v2411
        %v2417 = vlaneseq
        %v2418 = vshrl.u32 %v2417, 7
        %v2419 = vsub.s32 %v2073, %v2418
        %v2420 = vrot.slane %v1742, %v2419
        %v2421 = vsel %vm2078, %v2420, %v2416
        %v2422 = vlaneseq
        %v2423 = vshrl.u32 %v2422, 7
        %v2424 = vsub.s32 %v2080, %v2423
        %v2425 = vrot.slane %v1743, %v2424
        %v2426 = vsel %vm2085, %v2425, %v2421
        %v2427 = vlaneseq
        %v2428 = vshrl.u32 %v2427, 7
        %v2429 = vsub.s32 %v2087, %v2428
        %v2430 = vrot.slane %v1744, %v2429
        %v2431 = vsel %vm2092, %v2430, %v2426
        %v2432 = vlaneseq
        %v2433 = vshrl.u32 %v2432, 7
        %v2434 = vsub.s32 %v2094, %v2433
        %v2435 = vrot.slane %v1745, %v2434
        %v2436 = vsel %vm2099, %v2435, %v2431
        %v2437 = vlaneseq
        %v2438 = vshrl.u32 %v2437, 7
        %v2439 = vsub.s32 %v2101, %v2438
        %v2440 = vrot.slane %v1746, %v2439
        %v2441 = vsel %vm2106, %v2440, %v2436
        %v2442 = vlaneseq
        %v2443 = vshrl.u32 %v2442, 7
        %v2444 = vsub.s32 %v2108, %v2443
        %v2445 = vrot.slane %v1747, %v2444
        %v2446 = vsel %vm2113, %v2445, %v2441
        %v2447 = vlaneseq
        %v2448 = vshrl.u32 %v2447, 7
        %v2449 = vsub.s32 %v2115, %v2448
        %v2450 = vrot.slane %v1748, %v2449
        %v2451 = vsel %vm2120, %v2450, %v2446
        %v2452 = vlaneseq
        %v2453 = vshrl.u32 %v2452, 7
        %v2454 = vsub.s32 %v2122, %v2453
        %v2455 = vrot.slane %v1749, %v2454
        %v2456 = vsel %vm2127, %v2455, %v2451
        %v2457 = vlaneseq
        %v2458 = vshrl.u32 %v2457, 7
        %v2459 = vsub.s32 %v2129, %v2458
        %v2460 = vrot.slane %v1750, %v2459
        %v2461 = vsel %vm2134, %v2460, %v2456
        %v2462 = vlaneseq
        %v2463 = vshrl.u32 %v2462, 7
        %v2464 = vsub.s32 %v2136, %v2463
        %v2465 = vrot.slane %v1751, %v2464
        %v2466 = vsel %vm2141, %v2465, %v2461
        %v2467 = vlaneseq
        %v2468 = vshrl.u32 %v2467, 7
        %v2469 = vsub.s32 %v2143, %v2468
        %v2470 = vrot.slane %v1752, %v2469
        %v2471 = vsel %vm2148, %v2470, %v2466
        %v2472 = vlaneseq
        %v2473 = vshrl.u32 %v2472, 7
        %v2474 = vsub.s32 %v2150, %v2473
        %v2475 = vrot.slane %v1753, %v2474
        %v2476 = vsel %vm2155, %v2475, %v2471
        %v2477 = vlaneseq
        %v2478 = vshrl.u32 %v2477, 7
        %v2479 = vsub.s32 %v2157, %v2478
        %v2480 = vrot.slane %v1754, %v2479
        %v2481 = vsel %vm2162, %v2480, %v2476
        %v2482 = vlaneseq
        %v2483 = vshrl.u32 %v2482, 7
        %v2484 = vsub.s32 %v2164, %v2483
        %v2485 = vrot.slane %v1755, %v2484
        %v2486 = vsel %vm2169, %v2485, %v2481
        %v2487 = vlaneseq
        %v2488 = vshrl.u32 %v2487, 7
        %v2489 = vsub.s32 %v2061, %v2488
        %v2490 = vrot.slane %v1756, %v2489
        %v2491 = vlaneseq
        %v2492 = vshrl.u32 %v2491, 7
        %v2493 = vsub.s32 %v2066, %v2492
        %v2494 = vrot.slane %v1757, %v2493
        %v2495 = vsel %vm2071, %v2494, %v2490
        %v2496 = vlaneseq
        %v2497 = vshrl.u32 %v2496, 7
        %v2498 = vsub.s32 %v2073, %v2497
        %v2499 = vrot.slane %v1758, %v2498
        %v2500 = vsel %vm2078, %v2499, %v2495
        %v2501 = vlaneseq
        %v2502 = vshrl.u32 %v2501, 7
        %v2503 = vsub.s32 %v2080, %v2502
        %v2504 = vrot.slane %v1759, %v2503
        %v2505 = vsel %vm2085, %v2504, %v2500
        %v2506 = vlaneseq
        %v2507 = vshrl.u32 %v2506, 7
        %v2508 = vsub.s32 %v2087, %v2507
        %v2509 = vrot.slane %v1760, %v2508
        %v2510 = vsel %vm2092, %v2509, %v2505
        %v2511 = vlaneseq
        %v2512 = vshrl.u32 %v2511, 7
        %v2513 = vsub.s32 %v2094, %v2512
        %v2514 = vrot.slane %v1761, %v2513
        %v2515 = vsel %vm2099, %v2514, %v2510
        %v2516 = vlaneseq
        %v2517 = vshrl.u32 %v2516, 7
        %v2518 = vsub.s32 %v2101, %v2517
        %v2519 = vrot.slane %v1762, %v2518
        %v2520 = vsel %vm2106, %v2519, %v2515
        %v2521 = vlaneseq
        %v2522 = vshrl.u32 %v2521, 7
        %v2523 = vsub.s32 %v2108, %v2522
        %v2524 = vrot.slane %v1763, %v2523
        %v2525 = vsel %vm2113, %v2524, %v2520
        %v2526 = vlaneseq
        %v2527 = vshrl.u32 %v2526, 7
        %v2528 = vsub.s32 %v2115, %v2527
        %v2529 = vrot.slane %v1764, %v2528
        %v2530 = vsel %vm2120, %v2529, %v2525
        %v2531 = vlaneseq
        %v2532 = vshrl.u32 %v2531, 7
        %v2533 = vsub.s32 %v2122, %v2532
        %v2534 = vrot.slane %v1765, %v2533
        %v2535 = vsel %vm2127, %v2534, %v2530
        %v2536 = vlaneseq
        %v2537 = vshrl.u32 %v2536, 7
        %v2538 = vsub.s32 %v2129, %v2537
        %v2539 = vrot.slane %v1766, %v2538
        %v2540 = vsel %vm2134, %v2539, %v2535
        %v2541 = vlaneseq
        %v2542 = vshrl.u32 %v2541, 7
        %v2543 = vsub.s32 %v2136, %v2542
        %v2544 = vrot.slane %v1767, %v2543
        %v2545 = vsel %vm2141, %v2544, %v2540
        %v2546 = vlaneseq
        %v2547 = vshrl.u32 %v2546, 7
        %v2548 = vsub.s32 %v2143, %v2547
        %v2549 = vrot.slane %v1768, %v2548
        %v2550 = vsel %vm2148, %v2549, %v2545
        %v2551 = vlaneseq
        %v2552 = vshrl.u32 %v2551, 7
        %v2553 = vsub.s32 %v2150, %v2552
        %v2554 = vrot.slane %v1769, %v2553
        %v2555 = vsel %vm2155, %v2554, %v2550
        %v2556 = vlaneseq
        %v2557 = vshrl.u32 %v2556, 7
        %v2558 = vsub.s32 %v2157, %v2557
        %v2559 = vrot.slane %v1770, %v2558
        %v2560 = vsel %vm2162, %v2559, %v2555
        %v2561 = vlaneseq
        %v2562 = vshrl.u32 %v2561, 7
        %v2563 = vsub.s32 %v2164, %v2562
        %v2564 = vrot.slane %v1771, %v2563
        %v2565 = vsel %vm2169, %v2564, %v2560
        %v2566 = vlaneseq
        %v2567 = vshrl.u32 %v2566, 7
        %v2568 = vsub.s32 %v2061, %v2567
        %v2569 = vrot.slane %v1772, %v2568
        %v2570 = vlaneseq
        %v2571 = vshrl.u32 %v2570, 7
        %v2572 = vsub.s32 %v2066, %v2571
        %v2573 = vrot.slane %v1773, %v2572
        %v2574 = vsel %vm2071, %v2573, %v2569
        %v2575 = vlaneseq
        %v2576 = vshrl.u32 %v2575, 7
        %v2577 = vsub.s32 %v2073, %v2576
        %v2578 = vrot.slane %v1774, %v2577
        %v2579 = vsel %vm2078, %v2578, %v2574
        %v2580 = vlaneseq
        %v2581 = vshrl.u32 %v2580, 7
        %v2582 = vsub.s32 %v2080, %v2581
        %v2583 = vrot.slane %v1775, %v2582
        %v2584 = vsel %vm2085, %v2583, %v2579
        %v2585 = vlaneseq
        %v2586 = vshrl.u32 %v2585, 7
        %v2587 = vsub.s32 %v2087, %v2586
        %v2588 = vrot.slane %v1776, %v2587
        %v2589 = vsel %vm2092, %v2588, %v2584
        %v2590 = vlaneseq
        %v2591 = vshrl.u32 %v2590, 7
        %v2592 = vsub.s32 %v2094, %v2591
        %v2593 = vrot.slane %v1777, %v2592
        %v2594 = vsel %vm2099, %v2593, %v2589
        %v2595 = vlaneseq
        %v2596 = vshrl.u32 %v2595, 7
        %v2597 = vsub.s32 %v2101, %v2596
        %v2598 = vrot.slane %v1778, %v2597
        %v2599 = vsel %vm2106, %v2598, %v2594
        %v2600 = vlaneseq
        %v2601 = vshrl.u32 %v2600, 7
        %v2602 = vsub.s32 %v2108, %v2601
        %v2603 = vrot.slane %v1779, %v2602
        %v2604 = vsel %vm2113, %v2603, %v2599
        %v2605 = vlaneseq
        %v2606 = vshrl.u32 %v2605, 7
        %v2607 = vsub.s32 %v2115, %v2606
        %v2608 = vrot.slane %v1780, %v2607
        %v2609 = vsel %vm2120, %v2608, %v2604
        %v2610 = vlaneseq
        %v2611 = vshrl.u32 %v2610, 7
        %v2612 = vsub.s32 %v2122, %v2611
        %v2613 = vrot.slane %v1781, %v2612
        %v2614 = vsel %vm2127, %v2613, %v2609
        %v2615 = vlaneseq
        %v2616 = vshrl.u32 %v2615, 7
        %v2617 = vsub.s32 %v2129, %v2616
        %v2618 = vrot.slane %v1782, %v2617
        %v2619 = vsel %vm2134, %v2618, %v2614
        %v2620 = vlaneseq
        %v2621 = vshrl.u32 %v2620, 7
        %v2622 = vsub.s32 %v2136, %v2621
        %v2623 = vrot.slane %v1783, %v2622
        %v2624 = vsel %vm2141, %v2623, %v2619
        %v2625 = vlaneseq
        %v2626 = vshrl.u32 %v2625, 7
        %v2627 = vsub.s32 %v2143, %v2626
        %v2628 = vrot.slane %v1784, %v2627
        %v2629 = vsel %vm2148, %v2628, %v2624
        %v2630 = vlaneseq
        %v2631 = vshrl.u32 %v2630, 7
        %v2632 = vsub.s32 %v2150, %v2631
        %v2633 = vrot.slane %v1785, %v2632
        %v2634 = vsel %vm2155, %v2633, %v2629
        %v2635 = vlaneseq
        %v2636 = vshrl.u32 %v2635, 7
        %v2637 = vsub.s32 %v2157, %v2636
        %v2638 = vrot.slane %v1786, %v2637
        %v2639 = vsel %vm2162, %v2638, %v2634
        %v2640 = vlaneseq
        %v2641 = vshrl.u32 %v2640, 7
        %v2642 = vsub.s32 %v2164, %v2641
        %v2643 = vrot.slane %v1787, %v2642
        %v2644 = vsel %vm2169, %v2643, %v2639
        %v2645 = vlaneseq
        %v2646 = vshrl.u32 %v2645, 7
        %v2647 = vsub.s32 %v2061, %v2646
        %v2648 = vrot.slane %v1788, %v2647
        %v2649 = vlaneseq
        %v2650 = vshrl.u32 %v2649, 7
        %v2651 = vsub.s32 %v2066, %v2650
        %v2652 = vrot.slane %v1789, %v2651
        %v2653 = vsel %vm2071, %v2652, %v2648
        %v2654 = vlaneseq
        %v2655 = vshrl.u32 %v2654, 7
        %v2656 = vsub.s32 %v2073, %v2655
        %v2657 = vrot.slane %v1790, %v2656
        %v2658 = vsel %vm2078, %v2657, %v2653
        %v2659 = vlaneseq
        %v2660 = vshrl.u32 %v2659, 7
        %v2661 = vsub.s32 %v2080, %v2660
        %v2662 = vrot.slane %v1791, %v2661
        %v2663 = vsel %vm2085, %v2662, %v2658
        %v2664 = vlaneseq
        %v2665 = vshrl.u32 %v2664, 7
        %v2666 = vsub.s32 %v2087, %v2665
        %v2667 = vrot.slane %v1792, %v2666
        %v2668 = vsel %vm2092, %v2667, %v2663
        %v2669 = vlaneseq
        %v2670 = vshrl.u32 %v2669, 7
        %v2671 = vsub.s32 %v2094, %v2670
        %v2672 = vrot.slane %v1793, %v2671
        %v2673 = vsel %vm2099, %v2672, %v2668
        %v2674 = vlaneseq
        %v2675 = vshrl.u32 %v2674, 7
        %v2676 = vsub.s32 %v2101, %v2675
        %v2677 = vrot.slane %v1794, %v2676
        %v2678 = vsel %vm2106, %v2677, %v2673
        %v2679 = vlaneseq
        %v2680 = vshrl.u32 %v2679, 7
        %v2681 = vsub.s32 %v2108, %v2680
        %v2682 = vrot.slane %v1795, %v2681
        %v2683 = vsel %vm2113, %v2682, %v2678
        %v2684 = vlaneseq
        %v2685 = vshrl.u32 %v2684, 7
        %v2686 = vsub.s32 %v2115, %v2685
        %v2687 = vrot.slane %v1796, %v2686
        %v2688 = vsel %vm2120, %v2687, %v2683
        %v2689 = vlaneseq
        %v2690 = vshrl.u32 %v2689, 7
        %v2691 = vsub.s32 %v2122, %v2690
        %v2692 = vrot.slane %v1797, %v2691
        %v2693 = vsel %vm2127, %v2692, %v2688
        %v2694 = vlaneseq
        %v2695 = vshrl.u32 %v2694, 7
        %v2696 = vsub.s32 %v2129, %v2695
        %v2697 = vrot.slane %v1798, %v2696
        %v2698 = vsel %vm2134, %v2697, %v2693
        %v2699 = vlaneseq
        %v2700 = vshrl.u32 %v2699, 7
        %v2701 = vsub.s32 %v2136, %v2700
        %v2702 = vrot.slane %v1799, %v2701
        %v2703 = vsel %vm2141, %v2702, %v2698
        %v2704 = vlaneseq
        %v2705 = vshrl.u32 %v2704, 7
        %v2706 = vsub.s32 %v2143, %v2705
        %v2707 = vrot.slane %v1800, %v2706
        %v2708 = vsel %vm2148, %v2707, %v2703
        %v2709 = vlaneseq
        %v2710 = vshrl.u32 %v2709, 7
        %v2711 = vsub.s32 %v2150, %v2710
        %v2712 = vrot.slane %v1801, %v2711
        %v2713 = vsel %vm2155, %v2712, %v2708
        %v2714 = vlaneseq
        %v2715 = vshrl.u32 %v2714, 7
        %v2716 = vsub.s32 %v2157, %v2715
        %v2717 = vrot.slane %v1802, %v2716
        %v2718 = vsel %vm2162, %v2717, %v2713
        %v2719 = vlaneseq
        %v2720 = vshrl.u32 %v2719, 7
        %v2721 = vsub.s32 %v2164, %v2720
        %v2722 = vrot.slane %v1803, %v2721
        %v2723 = vsel %vm2169, %v2722, %v2718
        %v2724 = vlaneseq
        %v2725 = vshrl.u32 %v2724, 7
        %v2726 = vsub.s32 %v2061, %v2725
        %v2727 = vrot.slane %v1804, %v2726
        %v2728 = vlaneseq
        %v2729 = vshrl.u32 %v2728, 7
        %v2730 = vsub.s32 %v2066, %v2729
        %v2731 = vrot.slane %v1805, %v2730
        %v2732 = vsel %vm2071, %v2731, %v2727
        %v2733 = vlaneseq
        %v2734 = vshrl.u32 %v2733, 7
        %v2735 = vsub.s32 %v2073, %v2734
        %v2736 = vrot.slane %v1806, %v2735
        %v2737 = vsel %vm2078, %v2736, %v2732
        %v2738 = vlaneseq
        %v2739 = vshrl.u32 %v2738, 7
        %v2740 = vsub.s32 %v2080, %v2739
        %v2741 = vrot.slane %v1807, %v2740
        %v2742 = vsel %vm2085, %v2741, %v2737
        %v2743 = vlaneseq
        %v2744 = vshrl.u32 %v2743, 7
        %v2745 = vsub.s32 %v2087, %v2744
        %v2746 = vrot.slane %v1808, %v2745
        %v2747 = vsel %vm2092, %v2746, %v2742
        %v2748 = vlaneseq
        %v2749 = vshrl.u32 %v2748, 7
        %v2750 = vsub.s32 %v2094, %v2749
        %v2751 = vrot.slane %v1809, %v2750
        %v2752 = vsel %vm2099, %v2751, %v2747
        %v2753 = vlaneseq
        %v2754 = vshrl.u32 %v2753, 7
        %v2755 = vsub.s32 %v2101, %v2754
        %v2756 = vrot.slane %v1810, %v2755
        %v2757 = vsel %vm2106, %v2756, %v2752
        %v2758 = vlaneseq
        %v2759 = vshrl.u32 %v2758, 7
        %v2760 = vsub.s32 %v2108, %v2759
        %v2761 = vrot.slane %v1811, %v2760
        %v2762 = vsel %vm2113, %v2761, %v2757
        %v2763 = vlaneseq
        %v2764 = vshrl.u32 %v2763, 7
        %v2765 = vsub.s32 %v2115, %v2764
        %v2766 = vrot.slane %v1812, %v2765
        %v2767 = vsel %vm2120, %v2766, %v2762
        %v2768 = vlaneseq
        %v2769 = vshrl.u32 %v2768, 7
        %v2770 = vsub.s32 %v2122, %v2769
        %v2771 = vrot.slane %v1813, %v2770
        %v2772 = vsel %vm2127, %v2771, %v2767
        %v2773 = vlaneseq
        %v2774 = vshrl.u32 %v2773, 7
        %v2775 = vsub.s32 %v2129, %v2774
        %v2776 = vrot.slane %v1814, %v2775
        %v2777 = vsel %vm2134, %v2776, %v2772
        %v2778 = vlaneseq
        %v2779 = vshrl.u32 %v2778, 7
        %v2780 = vsub.s32 %v2136, %v2779
        %v2781 = vrot.slane %v1815, %v2780
        %v2782 = vsel %vm2141, %v2781, %v2777
        %v2783 = vlaneseq
        %v2784 = vshrl.u32 %v2783, 7
        %v2785 = vsub.s32 %v2143, %v2784
        %v2786 = vrot.slane %v1816, %v2785
        %v2787 = vsel %vm2148, %v2786, %v2782
        %v2788 = vlaneseq
        %v2789 = vshrl.u32 %v2788, 7
        %v2790 = vsub.s32 %v2150, %v2789
        %v2791 = vrot.slane %v1817, %v2790
        %v2792 = vsel %vm2155, %v2791, %v2787
        %v2793 = vlaneseq
        %v2794 = vshrl.u32 %v2793, 7
        %v2795 = vsub.s32 %v2157, %v2794
        %v2796 = vrot.slane %v1818, %v2795
        %v2797 = vsel %vm2162, %v2796, %v2792
        %v2798 = vlaneseq
        %v2799 = vshrl.u32 %v2798, 7
        %v2800 = vsub.s32 %v2164, %v2799
        %v2801 = vrot.slane %v1819, %v2800
        %v2802 = vsel %vm2169, %v2801, %v2797
        %v2803 = vlaneseq
        %v2804 = vshrl.u32 %v2803, 7
        %v2805 = vsub.s32 %v2061, %v2804
        %v2806 = vrot.slane %v1820, %v2805
        %v2807 = vlaneseq
        %v2808 = vshrl.u32 %v2807, 7
        %v2809 = vsub.s32 %v2066, %v2808
        %v2810 = vrot.slane %v1821, %v2809
        %v2811 = vsel %vm2071, %v2810, %v2806
        %v2812 = vlaneseq
        %v2813 = vshrl.u32 %v2812, 7
        %v2814 = vsub.s32 %v2073, %v2813
        %v2815 = vrot.slane %v1822, %v2814
        %v2816 = vsel %vm2078, %v2815, %v2811
        %v2817 = vlaneseq
        %v2818 = vshrl.u32 %v2817, 7
        %v2819 = vsub.s32 %v2080, %v2818
        %v2820 = vrot.slane %v1823, %v2819
        %v2821 = vsel %vm2085, %v2820, %v2816
        %v2822 = vlaneseq
        %v2823 = vshrl.u32 %v2822, 7
        %v2824 = vsub.s32 %v2087, %v2823
        %v2825 = vrot.slane %v1824, %v2824
        %v2826 = vsel %vm2092, %v2825, %v2821
        %v2827 = vlaneseq
        %v2828 = vshrl.u32 %v2827, 7
        %v2829 = vsub.s32 %v2094, %v2828
        %v2830 = vrot.slane %v1825, %v2829
        %v2831 = vsel %vm2099, %v2830, %v2826
        %v2832 = vlaneseq
        %v2833 = vshrl.u32 %v2832, 7
        %v2834 = vsub.s32 %v2101, %v2833
        %v2835 = vrot.slane %v1826, %v2834
        %v2836 = vsel %vm2106, %v2835, %v2831
        %v2837 = vlaneseq
        %v2838 = vshrl.u32 %v2837, 7
        %v2839 = vsub.s32 %v2108, %v2838
        %v2840 = vrot.slane %v1827, %v2839
        %v2841 = vsel %vm2113, %v2840, %v2836
        %v2842 = vlaneseq
        %v2843 = vshrl.u32 %v2842, 7
        %v2844 = vsub.s32 %v2115, %v2843
        %v2845 = vrot.slane %v1828, %v2844
        %v2846 = vsel %vm2120, %v2845, %v2841
        %v2847 = vlaneseq
        %v2848 = vshrl.u32 %v2847, 7
        %v2849 = vsub.s32 %v2122, %v2848
        %v2850 = vrot.slane %v1829, %v2849
        %v2851 = vsel %vm2127, %v2850, %v2846
        %v2852 = vlaneseq
        %v2853 = vshrl.u32 %v2852, 7
        %v2854 = vsub.s32 %v2129, %v2853
        %v2855 = vrot.slane %v1830, %v2854
        %v2856 = vsel %vm2134, %v2855, %v2851
        %v2857 = vlaneseq
        %v2858 = vshrl.u32 %v2857, 7
        %v2859 = vsub.s32 %v2136, %v2858
        %v2860 = vrot.slane %v1831, %v2859
        %v2861 = vsel %vm2141, %v2860, %v2856
        %v2862 = vlaneseq
        %v2863 = vshrl.u32 %v2862, 7
        %v2864 = vsub.s32 %v2143, %v2863
        %v2865 = vrot.slane %v1832, %v2864
        %v2866 = vsel %vm2148, %v2865, %v2861
        %v2867 = vlaneseq
        %v2868 = vshrl.u32 %v2867, 7
        %v2869 = vsub.s32 %v2150, %v2868
        %v2870 = vrot.slane %v1833, %v2869
        %v2871 = vsel %vm2155, %v2870, %v2866
        %v2872 = vlaneseq
        %v2873 = vshrl.u32 %v2872, 7
        %v2874 = vsub.s32 %v2157, %v2873
        %v2875 = vrot.slane %v1834, %v2874
        %v2876 = vsel %vm2162, %v2875, %v2871
        %v2877 = vlaneseq
        %v2878 = vshrl.u32 %v2877, 7
        %v2879 = vsub.s32 %v2164, %v2878
        %v2880 = vrot.slane %v1835, %v2879
        %v2881 = vsel %vm2169, %v2880, %v2876
        %v2882 = vlaneseq
        %v2883 = vshrl.u32 %v2882, 7
        %v2884 = vsub.s32 %v2061, %v2883
        %v2885 = vrot.slane %v1836, %v2884
        %v2886 = vlaneseq
        %v2887 = vshrl.u32 %v2886, 7
        %v2888 = vsub.s32 %v2066, %v2887
        %v2889 = vrot.slane %v1837, %v2888
        %v2890 = vsel %vm2071, %v2889, %v2885
        %v2891 = vlaneseq
        %v2892 = vshrl.u32 %v2891, 7
        %v2893 = vsub.s32 %v2073, %v2892
        %v2894 = vrot.slane %v1838, %v2893
        %v2895 = vsel %vm2078, %v2894, %v2890
        %v2896 = vlaneseq
        %v2897 = vshrl.u32 %v2896, 7
        %v2898 = vsub.s32 %v2080, %v2897
        %v2899 = vrot.slane %v1839, %v2898
        %v2900 = vsel %vm2085, %v2899, %v2895
        %v2901 = vlaneseq
        %v2902 = vshrl.u32 %v2901, 7
        %v2903 = vsub.s32 %v2087, %v2902
        %v2904 = vrot.slane %v1840, %v2903
        %v2905 = vsel %vm2092, %v2904, %v2900
        %v2906 = vlaneseq
        %v2907 = vshrl.u32 %v2906, 7
        %v2908 = vsub.s32 %v2094, %v2907
        %v2909 = vrot.slane %v1841, %v2908
        %v2910 = vsel %vm2099, %v2909, %v2905
        %v2911 = vlaneseq
        %v2912 = vshrl.u32 %v2911, 7
        %v2913 = vsub.s32 %v2101, %v2912
        %v2914 = vrot.slane %v1842, %v2913
        %v2915 = vsel %vm2106, %v2914, %v2910
        %v2916 = vlaneseq
        %v2917 = vshrl.u32 %v2916, 7
        %v2918 = vsub.s32 %v2108, %v2917
        %v2919 = vrot.slane %v1843, %v2918
        %v2920 = vsel %vm2113, %v2919, %v2915
        %v2921 = vlaneseq
        %v2922 = vshrl.u32 %v2921, 7
        %v2923 = vsub.s32 %v2115, %v2922
        %v2924 = vrot.slane %v1844, %v2923
        %v2925 = vsel %vm2120, %v2924, %v2920
        %v2926 = vlaneseq
        %v2927 = vshrl.u32 %v2926, 7
        %v2928 = vsub.s32 %v2122, %v2927
        %v2929 = vrot.slane %v1845, %v2928
        %v2930 = vsel %vm2127, %v2929, %v2925
        %v2931 = vlaneseq
        %v2932 = vshrl.u32 %v2931, 7
        %v2933 = vsub.s32 %v2129, %v2932
        %v2934 = vrot.slane %v1846, %v2933
        %v2935 = vsel %vm2134, %v2934, %v2930
        %v2936 = vlaneseq
        %v2937 = vshrl.u32 %v2936, 7
        %v2938 = vsub.s32 %v2136, %v2937
        %v2939 = vrot.slane %v1847, %v2938
        %v2940 = vsel %vm2141, %v2939, %v2935
        %v2941 = vlaneseq
        %v2942 = vshrl.u32 %v2941, 7
        %v2943 = vsub.s32 %v2143, %v2942
        %v2944 = vrot.slane %v1848, %v2943
        %v2945 = vsel %vm2148, %v2944, %v2940
        %v2946 = vlaneseq
        %v2947 = vshrl.u32 %v2946, 7
        %v2948 = vsub.s32 %v2150, %v2947
        %v2949 = vrot.slane %v1849, %v2948
        %v2950 = vsel %vm2155, %v2949, %v2945
        %v2951 = vlaneseq
        %v2952 = vshrl.u32 %v2951, 7
        %v2953 = vsub.s32 %v2157, %v2952
        %v2954 = vrot.slane %v1850, %v2953
        %v2955 = vsel %vm2162, %v2954, %v2950
        %v2956 = vlaneseq
        %v2957 = vshrl.u32 %v2956, 7
        %v2958 = vsub.s32 %v2164, %v2957
        %v2959 = vrot.slane %v1851, %v2958
        %v2960 = vsel %vm2169, %v2959, %v2955
        %v2961 = vlaneseq
        %v2962 = vshrl.u32 %v2961, 7
        %v2963 = vsub.s32 %v2061, %v2962
        %v2964 = vrot.slane %v1852, %v2963
        %v2965 = vlaneseq
        %v2966 = vshrl.u32 %v2965, 7
        %v2967 = vsub.s32 %v2066, %v2966
        %v2968 = vrot.slane %v1853, %v2967
        %v2969 = vsel %vm2071, %v2968, %v2964
        %v2970 = vlaneseq
        %v2971 = vshrl.u32 %v2970, 7
        %v2972 = vsub.s32 %v2073, %v2971
        %v2973 = vrot.slane %v1854, %v2972
        %v2974 = vsel %vm2078, %v2973, %v2969
        %v2975 = vlaneseq
        %v2976 = vshrl.u32 %v2975, 7
        %v2977 = vsub.s32 %v2080, %v2976
        %v2978 = vrot.slane %v1855, %v2977
        %v2979 = vsel %vm2085, %v2978, %v2974
        %v2980 = vlaneseq
        %v2981 = vshrl.u32 %v2980, 7
        %v2982 = vsub.s32 %v2087, %v2981
        %v2983 = vrot.slane %v1856, %v2982
        %v2984 = vsel %vm2092, %v2983, %v2979
        %v2985 = vlaneseq
        %v2986 = vshrl.u32 %v2985, 7
        %v2987 = vsub.s32 %v2094, %v2986
        %v2988 = vrot.slane %v1857, %v2987
        %v2989 = vsel %vm2099, %v2988, %v2984
        %v2990 = vlaneseq
        %v2991 = vshrl.u32 %v2990, 7
        %v2992 = vsub.s32 %v2101, %v2991
        %v2993 = vrot.slane %v1858, %v2992
        %v2994 = vsel %vm2106, %v2993, %v2989
        %v2995 = vlaneseq
        %v2996 = vshrl.u32 %v2995, 7
        %v2997 = vsub.s32 %v2108, %v2996
        %v2998 = vrot.slane %v1859, %v2997
        %v2999 = vsel %vm2113, %v2998, %v2994
        %v3000 = vlaneseq
        %v3001 = vshrl.u32 %v3000, 7
        %v3002 = vsub.s32 %v2115, %v3001
        %v3003 = vrot.slane %v1860, %v3002
        %v3004 = vsel %vm2120, %v3003, %v2999
        %v3005 = vlaneseq
        %v3006 = vshrl.u32 %v3005, 7
        %v3007 = vsub.s32 %v2122, %v3006
        %v3008 = vrot.slane %v1861, %v3007
        %v3009 = vsel %vm2127, %v3008, %v3004
        %v3010 = vlaneseq
        %v3011 = vshrl.u32 %v3010, 7
        %v3012 = vsub.s32 %v2129, %v3011
        %v3013 = vrot.slane %v1862, %v3012
        %v3014 = vsel %vm2134, %v3013, %v3009
        %v3015 = vlaneseq
        %v3016 = vshrl.u32 %v3015, 7
        %v3017 = vsub.s32 %v2136, %v3016
        %v3018 = vrot.slane %v1863, %v3017
        %v3019 = vsel %vm2141, %v3018, %v3014
        %v3020 = vlaneseq
        %v3021 = vshrl.u32 %v3020, 7
        %v3022 = vsub.s32 %v2143, %v3021
        %v3023 = vrot.slane %v1864, %v3022
        %v3024 = vsel %vm2148, %v3023, %v3019
        %v3025 = vlaneseq
        %v3026 = vshrl.u32 %v3025, 7
        %v3027 = vsub.s32 %v2150, %v3026
        %v3028 = vrot.slane %v1865, %v3027
        %v3029 = vsel %vm2155, %v3028, %v3024
        %v3030 = vlaneseq
        %v3031 = vshrl.u32 %v3030, 7
        %v3032 = vsub.s32 %v2157, %v3031
        %v3033 = vrot.slane %v1866, %v3032
        %v3034 = vsel %vm2162, %v3033, %v3029
        %v3035 = vlaneseq
        %v3036 = vshrl.u32 %v3035, 7
        %v3037 = vsub.s32 %v2164, %v3036
        %v3038 = vrot.slane %v1867, %v3037
        %v3039 = vsel %vm2169, %v3038, %v3034
        %vm3040 = vcmask 1041409
        %v3041 = vsel %vm3040, %v2249, %v2170
        %vm3042 = vcmask 1042434
        %v3043 = vsel %vm3042, %v2328, %v3041
        %vm3044 = vcmask 1043459
        %v3045 = vsel %vm3044, %v2407, %v3043
        %vm3046 = vcmask 1044484
        %v3047 = vsel %vm3046, %v2486, %v3045
        %vm3048 = vcmask 1045509
        %v3049 = vsel %vm3048, %v2565, %v3047
        %vm3050 = vcmask 1046534
        %v3051 = vsel %vm3050, %v2644, %v3049
        %vm3052 = vcmask 1047559
        %v3053 = vsel %vm3052, %v2723, %v3051
        %v3054 = vsel %vm3040, %v2881, %v2802
        %v3055 = vsel %vm3042, %v2960, %v3054
        %v3056 = vsel %vm3044, %v3039, %v3055
        %3059 = vmin.xlane.f32.xlu0 %v3053
        %v3060 = vpop.xlane.xlu0 %3059
        %vm3061 = vcmask 1043456
        %v3062 = vsel %vm3061, %v3056, inf
        %3063 = vmin.xlane.f32.xlu0 %v3062
        %v3064 = vpop.xlane.xlu0 %3063
        %v3065 = vmul.f32 %v3060, 0.14285715
        %v3066 = vmul.f32 %v3064, 0.14285715
        %v3067 = vsub.f32 %v3065, 0.9
        %v3068 = vsub.f32 %v3066, 0.9
        %v3069 = vmax.f32 %v3067, 0.0
        %v3070 = vmax.f32 %v3068, 0.0
        %v3071 = vmul.f32 %v3069, 10.0
        %v3072 = vmul.f32 %v3070, 10.0
        %3073 = vxpose.xlu0.b32.start [1/16] %v139, 128
        %3074 = vxpose.xlu0.b32.cont [2/16] %v140, 128
        %3075 = vxpose.xlu0.b32.cont [3/16] %v141, 128
        %3076 = vxpose.xlu0.b32.cont [4/16] %v142, 128
        %3077 = vxpose.xlu0.b32.cont [5/16] %v143, 128
        %3078 = vxpose.xlu0.b32.cont [6/16] %v144, 128
        %3079 = vxpose.xlu0.b32.cont [7/16] %v145, 128
        %3080 = vxpose.xlu0.b32.cont [8/16] %v146, 128
        %3081 = vxpose.xlu0.b32.cont [9/16] %v147, 128
        %3082 = vxpose.xlu0.b32.cont [10/16] %v148, 128
        %3083 = vxpose.xlu0.b32.cont [11/16] %v149, 128
        %3084 = vxpose.xlu0.b32.cont [12/16] %v150, 128
        %3085 = vxpose.xlu0.b32.cont [13/16] %v151, 128
        %3086 = vxpose.xlu0.b32.cont [14/16] %v152, 128
        %3087 = vxpose.xlu0.b32.cont [15/16] %v153, 128
        %3088 = vxpose.xlu0.b32.end [16/16] %v154, 128
        %v3089 = vpop.trf.xlu0
        %v3090 = vpop.trf.xlu0
        %v3091 = vpop.trf.xlu0
        %v3092 = vpop.trf.xlu0
        %v3093 = vpop.trf.xlu0
        %v3094 = vpop.trf.xlu0
        %v3095 = vpop.trf.xlu0
        %v3096 = vpop.trf.xlu0
        %v3097 = vpop.trf.xlu0
        %v3098 = vpop.trf.xlu0
        %v3099 = vpop.trf.xlu0
        %v3100 = vpop.trf.xlu0
        %v3101 = vpop.trf.xlu0
        %v3102 = vpop.trf.xlu0
        %v3103 = vpop.trf.xlu0
        %v3104 = vpop.trf.xlu0
        %3105 = vxpose.xlu0.b32.start [1/16] %v155, 128
        %3106 = vxpose.xlu0.b32.cont [2/16] %v156, 128
        %3107 = vxpose.xlu0.b32.cont [3/16] %v157, 128
        %3108 = vxpose.xlu0.b32.cont [4/16] %v158, 128
        %3109 = vxpose.xlu0.b32.cont [5/16] %v159, 128
        %3110 = vxpose.xlu0.b32.cont [6/16] %v160, 128
        %3111 = vxpose.xlu0.b32.cont [7/16] %v161, 128
        %3112 = vxpose.xlu0.b32.cont [8/16] %v162, 128
        %3113 = vxpose.xlu0.b32.cont [9/16] %v163, 128
        %3114 = vxpose.xlu0.b32.cont [10/16] %v164, 128
        %3115 = vxpose.xlu0.b32.cont [11/16] %v165, 128
        %3116 = vxpose.xlu0.b32.cont [12/16] %v166, 128
        %3117 = vxpose.xlu0.b32.cont [13/16] %v167, 128
        %3118 = vxpose.xlu0.b32.cont [14/16] %v168, 128
        %3119 = vxpose.xlu0.b32.cont [15/16] %v169, 128
        %3120 = vxpose.xlu0.b32.end [16/16] %v170, 128
        %v3121 = vpop.trf.xlu0
        %v3122 = vpop.trf.xlu0
        %v3123 = vpop.trf.xlu0
        %v3124 = vpop.trf.xlu0
        %v3125 = vpop.trf.xlu0
        %v3126 = vpop.trf.xlu0
        %v3127 = vpop.trf.xlu0
        %v3128 = vpop.trf.xlu0
        %v3129 = vpop.trf.xlu0
        %v3130 = vpop.trf.xlu0
        %v3131 = vpop.trf.xlu0
        %v3132 = vpop.trf.xlu0
        %v3133 = vpop.trf.xlu0
        %v3134 = vpop.trf.xlu0
        %v3135 = vpop.trf.xlu0
        %v3136 = vpop.trf.xlu0
        %3137 = vxpose.xlu0.b32.start [1/16] %v171, 128
        %3138 = vxpose.xlu0.b32.cont [2/16] %v172, 128
        %3139 = vxpose.xlu0.b32.cont [3/16] %v173, 128
        %3140 = vxpose.xlu0.b32.cont [4/16] %v174, 128
        %3141 = vxpose.xlu0.b32.cont [5/16] %v175, 128
        %3142 = vxpose.xlu0.b32.cont [6/16] %v176, 128
        %3143 = vxpose.xlu0.b32.cont [7/16] %v177, 128
        %3144 = vxpose.xlu0.b32.cont [8/16] %v178, 128
        %3145 = vxpose.xlu0.b32.cont [9/16] %v179, 128
        %3146 = vxpose.xlu0.b32.cont [10/16] %v180, 128
        %3147 = vxpose.xlu0.b32.cont [11/16] %v181, 128
        %3148 = vxpose.xlu0.b32.cont [12/16] %v182, 128
        %3149 = vxpose.xlu0.b32.cont [13/16] %v183, 128
        %3150 = vxpose.xlu0.b32.cont [14/16] %v184, 128
        %3151 = vxpose.xlu0.b32.cont [15/16] %v185, 128
        %3152 = vxpose.xlu0.b32.end [16/16] %v186, 128
        %v3153 = vpop.trf.xlu0
        %v3154 = vpop.trf.xlu0
        %v3155 = vpop.trf.xlu0
        %v3156 = vpop.trf.xlu0
        %v3157 = vpop.trf.xlu0
        %v3158 = vpop.trf.xlu0
        %v3159 = vpop.trf.xlu0
        %v3160 = vpop.trf.xlu0
        %v3161 = vpop.trf.xlu0
        %v3162 = vpop.trf.xlu0
        %v3163 = vpop.trf.xlu0
        %v3164 = vpop.trf.xlu0
        %v3165 = vpop.trf.xlu0
        %v3166 = vpop.trf.xlu0
        %v3167 = vpop.trf.xlu0
        %v3168 = vpop.trf.xlu0
        %3169 = vxpose.xlu0.b32.start [1/16] %v187, 128
        %3170 = vxpose.xlu0.b32.cont [2/16] %v188, 128
        %3171 = vxpose.xlu0.b32.cont [3/16] %v189, 128
        %3172 = vxpose.xlu0.b32.cont [4/16] %v190, 128
        %3173 = vxpose.xlu0.b32.cont [5/16] %v191, 128
        %3174 = vxpose.xlu0.b32.cont [6/16] %v192, 128
        %3175 = vxpose.xlu0.b32.cont [7/16] %v193, 128
        %3176 = vxpose.xlu0.b32.cont [8/16] %v194, 128
        %3177 = vxpose.xlu0.b32.cont [9/16] %v195, 128
        %3178 = vxpose.xlu0.b32.cont [10/16] %v196, 128
        %3179 = vxpose.xlu0.b32.cont [11/16] %v197, 128
        %3180 = vxpose.xlu0.b32.cont [12/16] %v198, 128
        %3181 = vxpose.xlu0.b32.cont [13/16] %v199, 128
        %3182 = vxpose.xlu0.b32.cont [14/16] %v200, 128
        %3183 = vxpose.xlu0.b32.cont [15/16] %v201, 128
        %3184 = vxpose.xlu0.b32.end [16/16] %v202, 128
        %v3185 = vpop.trf.xlu0
        %v3186 = vpop.trf.xlu0
        %v3187 = vpop.trf.xlu0
        %v3188 = vpop.trf.xlu0
        %v3189 = vpop.trf.xlu0
        %v3190 = vpop.trf.xlu0
        %v3191 = vpop.trf.xlu0
        %v3192 = vpop.trf.xlu0
        %v3193 = vpop.trf.xlu0
        %v3194 = vpop.trf.xlu0
        %v3195 = vpop.trf.xlu0
        %v3196 = vpop.trf.xlu0
        %v3197 = vpop.trf.xlu0
        %v3198 = vpop.trf.xlu0
        %v3199 = vpop.trf.xlu0
        %v3200 = vpop.trf.xlu0
        %3201 = vxpose.xlu0.b32.start [1/16] %v203, 128
        %3202 = vxpose.xlu0.b32.cont [2/16] %v204, 128
        %3203 = vxpose.xlu0.b32.cont [3/16] %v205, 128
        %3204 = vxpose.xlu0.b32.cont [4/16] %v206, 128
        %3205 = vxpose.xlu0.b32.cont [5/16] %v207, 128
        %3206 = vxpose.xlu0.b32.cont [6/16] %v208, 128
        %3207 = vxpose.xlu0.b32.cont [7/16] %v209, 128
        %3208 = vxpose.xlu0.b32.cont [8/16] %v210, 128
        %3209 = vxpose.xlu0.b32.cont [9/16] %v211, 128
        %3210 = vxpose.xlu0.b32.cont [10/16] %v212, 128
        %3211 = vxpose.xlu0.b32.cont [11/16] %v213, 128
        %3212 = vxpose.xlu0.b32.cont [12/16] %v214, 128
        %3213 = vxpose.xlu0.b32.cont [13/16] %v215, 128
        %3214 = vxpose.xlu0.b32.cont [14/16] %v216, 128
        %3215 = vxpose.xlu0.b32.cont [15/16] %v217, 128
        %3216 = vxpose.xlu0.b32.end [16/16] %v218, 128
        %v3217 = vpop.trf.xlu0
        %v3218 = vpop.trf.xlu0
        %v3219 = vpop.trf.xlu0
        %v3220 = vpop.trf.xlu0
        %v3221 = vpop.trf.xlu0
        %v3222 = vpop.trf.xlu0
        %v3223 = vpop.trf.xlu0
        %v3224 = vpop.trf.xlu0
        %v3225 = vpop.trf.xlu0
        %v3226 = vpop.trf.xlu0
        %v3227 = vpop.trf.xlu0
        %v3228 = vpop.trf.xlu0
        %v3229 = vpop.trf.xlu0
        %v3230 = vpop.trf.xlu0
        %v3231 = vpop.trf.xlu0
        %v3232 = vpop.trf.xlu0
        %3233 = vxpose.xlu0.b32.start [1/16] %v219, 128
        %3234 = vxpose.xlu0.b32.cont [2/16] %v220, 128
        %3235 = vxpose.xlu0.b32.cont [3/16] %v221, 128
        %3236 = vxpose.xlu0.b32.cont [4/16] %v222, 128
        %3237 = vxpose.xlu0.b32.cont [5/16] %v223, 128
        %3238 = vxpose.xlu0.b32.cont [6/16] %v224, 128
        %3239 = vxpose.xlu0.b32.cont [7/16] %v225, 128
        %3240 = vxpose.xlu0.b32.cont [8/16] %v226, 128
        %3241 = vxpose.xlu0.b32.cont [9/16] %v227, 128
        %3242 = vxpose.xlu0.b32.cont [10/16] %v228, 128
        %3243 = vxpose.xlu0.b32.cont [11/16] %v229, 128
        %3244 = vxpose.xlu0.b32.cont [12/16] %v230, 128
        %3245 = vxpose.xlu0.b32.cont [13/16] %v231, 128
        %3246 = vxpose.xlu0.b32.cont [14/16] %v232, 128
        %3247 = vxpose.xlu0.b32.cont [15/16] %v233, 128
        %3248 = vxpose.xlu0.b32.end [16/16] %v234, 128
        %v3249 = vpop.trf.xlu0
        %v3250 = vpop.trf.xlu0
        %v3251 = vpop.trf.xlu0
        %v3252 = vpop.trf.xlu0
        %v3253 = vpop.trf.xlu0
        %v3254 = vpop.trf.xlu0
        %v3255 = vpop.trf.xlu0
        %v3256 = vpop.trf.xlu0
        %v3257 = vpop.trf.xlu0
        %v3258 = vpop.trf.xlu0
        %v3259 = vpop.trf.xlu0
        %v3260 = vpop.trf.xlu0
        %v3261 = vpop.trf.xlu0
        %v3262 = vpop.trf.xlu0
        %v3263 = vpop.trf.xlu0
        %v3264 = vpop.trf.xlu0
        %3265 = vxpose.xlu0.b32.start [1/16] %v235, 128
        %3266 = vxpose.xlu0.b32.cont [2/16] %v236, 128
        %3267 = vxpose.xlu0.b32.cont [3/16] %v237, 128
        %3268 = vxpose.xlu0.b32.cont [4/16] %v238, 128
        %3269 = vxpose.xlu0.b32.cont [5/16] %v239, 128
        %3270 = vxpose.xlu0.b32.cont [6/16] %v240, 128
        %3271 = vxpose.xlu0.b32.cont [7/16] %v241, 128
        %3272 = vxpose.xlu0.b32.cont [8/16] %v242, 128
        %3273 = vxpose.xlu0.b32.cont [9/16] %v243, 128
        %3274 = vxpose.xlu0.b32.cont [10/16] %v244, 128
        %3275 = vxpose.xlu0.b32.cont [11/16] %v245, 128
        %3276 = vxpose.xlu0.b32.cont [12/16] %v246, 128
        %3277 = vxpose.xlu0.b32.cont [13/16] %v247, 128
        %3278 = vxpose.xlu0.b32.cont [14/16] %v248, 128
        %3279 = vxpose.xlu0.b32.cont [15/16] %v249, 128
        %3280 = vxpose.xlu0.b32.end [16/16] %v250, 128
        %v3281 = vpop.trf.xlu0
        %v3282 = vpop.trf.xlu0
        %v3283 = vpop.trf.xlu0
        %v3284 = vpop.trf.xlu0
        %v3285 = vpop.trf.xlu0
        %v3286 = vpop.trf.xlu0
        %v3287 = vpop.trf.xlu0
        %v3288 = vpop.trf.xlu0
        %v3289 = vpop.trf.xlu0
        %v3290 = vpop.trf.xlu0
        %v3291 = vpop.trf.xlu0
        %v3292 = vpop.trf.xlu0
        %v3293 = vpop.trf.xlu0
        %v3294 = vpop.trf.xlu0
        %v3295 = vpop.trf.xlu0
        %v3296 = vpop.trf.xlu0
        %3297 = vxpose.xlu0.b32.start [1/16] %v251, 128
        %3298 = vxpose.xlu0.b32.cont [2/16] %v252, 128
        %3299 = vxpose.xlu0.b32.cont [3/16] %v253, 128
        %3300 = vxpose.xlu0.b32.cont [4/16] %v254, 128
        %3301 = vxpose.xlu0.b32.cont [5/16] %v255, 128
        %3302 = vxpose.xlu0.b32.cont [6/16] %v256, 128
        %3303 = vxpose.xlu0.b32.cont [7/16] %v257, 128
        %3304 = vxpose.xlu0.b32.cont [8/16] %v258, 128
        %3305 = vxpose.xlu0.b32.cont [9/16] %v259, 128
        %3306 = vxpose.xlu0.b32.cont [10/16] %v260, 128
        %3307 = vxpose.xlu0.b32.cont [11/16] %v261, 128
        %3308 = vxpose.xlu0.b32.cont [12/16] %v262, 128
        %3309 = vxpose.xlu0.b32.cont [13/16] %v263, 128
        %3310 = vxpose.xlu0.b32.cont [14/16] %v264, 128
        %3311 = vxpose.xlu0.b32.cont [15/16] %v265, 128
        %3312 = vxpose.xlu0.b32.end [16/16] %v266, 128
        %v3313 = vpop.trf.xlu0
        %v3314 = vpop.trf.xlu0
        %v3315 = vpop.trf.xlu0
        %v3316 = vpop.trf.xlu0
        %v3317 = vpop.trf.xlu0
        %v3318 = vpop.trf.xlu0
        %v3319 = vpop.trf.xlu0
        %v3320 = vpop.trf.xlu0
        %v3321 = vpop.trf.xlu0
        %v3322 = vpop.trf.xlu0
        %v3323 = vpop.trf.xlu0
        %v3324 = vpop.trf.xlu0
        %v3325 = vpop.trf.xlu0
        %v3326 = vpop.trf.xlu0
        %v3327 = vpop.trf.xlu0
        %v3328 = vpop.trf.xlu0
        %3329 = vxpose.xlu0.b32.start [1/16] %v267, 128
        %3330 = vxpose.xlu0.b32.cont [2/16] %v268, 128
        %3331 = vxpose.xlu0.b32.cont [3/16] %v269, 128
        %3332 = vxpose.xlu0.b32.cont [4/16] %v270, 128
        %3333 = vxpose.xlu0.b32.cont [5/16] %v271, 128
        %3334 = vxpose.xlu0.b32.cont [6/16] %v272, 128
        %3335 = vxpose.xlu0.b32.cont [7/16] %v273, 128
        %3336 = vxpose.xlu0.b32.cont [8/16] %v274, 128
        %3337 = vxpose.xlu0.b32.cont [9/16] %v275, 128
        %3338 = vxpose.xlu0.b32.cont [10/16] %v276, 128
        %3339 = vxpose.xlu0.b32.cont [11/16] %v277, 128
        %3340 = vxpose.xlu0.b32.cont [12/16] %v278, 128
        %3341 = vxpose.xlu0.b32.cont [13/16] %v279, 128
        %3342 = vxpose.xlu0.b32.cont [14/16] %v280, 128
        %3343 = vxpose.xlu0.b32.cont [15/16] %v281, 128
        %3344 = vxpose.xlu0.b32.end [16/16] %v282, 128
        %v3345 = vpop.trf.xlu0
        %v3346 = vpop.trf.xlu0
        %v3347 = vpop.trf.xlu0
        %v3348 = vpop.trf.xlu0
        %v3349 = vpop.trf.xlu0
        %v3350 = vpop.trf.xlu0
        %v3351 = vpop.trf.xlu0
        %v3352 = vpop.trf.xlu0
        %v3353 = vpop.trf.xlu0
        %v3354 = vpop.trf.xlu0
        %v3355 = vpop.trf.xlu0
        %v3356 = vpop.trf.xlu0
        %v3357 = vpop.trf.xlu0
        %v3358 = vpop.trf.xlu0
        %v3359 = vpop.trf.xlu0
        %v3360 = vpop.trf.xlu0
        %3361 = vxpose.xlu0.b32.start [1/16] %v283, 128
        %3362 = vxpose.xlu0.b32.cont [2/16] %v284, 128
        %3363 = vxpose.xlu0.b32.cont [3/16] %v285, 128
        %3364 = vxpose.xlu0.b32.cont [4/16] %v286, 128
        %3365 = vxpose.xlu0.b32.cont [5/16] %v287, 128
        %3366 = vxpose.xlu0.b32.cont [6/16] %v288, 128
        %3367 = vxpose.xlu0.b32.cont [7/16] %v289, 128
        %3368 = vxpose.xlu0.b32.cont [8/16] %v290, 128
        %3369 = vxpose.xlu0.b32.cont [9/16] %v291, 128
        %3370 = vxpose.xlu0.b32.cont [10/16] %v292, 128
        %3371 = vxpose.xlu0.b32.cont [11/16] %v293, 128
        %3372 = vxpose.xlu0.b32.cont [12/16] %v294, 128
        %3373 = vxpose.xlu0.b32.cont [13/16] %v295, 128
        %3374 = vxpose.xlu0.b32.cont [14/16] %v296, 128
        %3375 = vxpose.xlu0.b32.cont [15/16] %v297, 128
        %3376 = vxpose.xlu0.b32.end [16/16] %v298, 128
        %v3377 = vpop.trf.xlu0
        %v3378 = vpop.trf.xlu0
        %v3379 = vpop.trf.xlu0
        %v3380 = vpop.trf.xlu0
        %v3381 = vpop.trf.xlu0
        %v3382 = vpop.trf.xlu0
        %v3383 = vpop.trf.xlu0
        %v3384 = vpop.trf.xlu0
        %v3385 = vpop.trf.xlu0
        %v3386 = vpop.trf.xlu0
        %v3387 = vpop.trf.xlu0
        %v3388 = vpop.trf.xlu0
        %v3389 = vpop.trf.xlu0
        %v3390 = vpop.trf.xlu0
        %v3391 = vpop.trf.xlu0
        %v3392 = vpop.trf.xlu0
        %3393 = vxpose.xlu0.b32.start [1/16] %v299, 128
        %3394 = vxpose.xlu0.b32.cont [2/16] %v300, 128
        %3395 = vxpose.xlu0.b32.cont [3/16] %v301, 128
        %3396 = vxpose.xlu0.b32.cont [4/16] %v302, 128
        %3397 = vxpose.xlu0.b32.cont [5/16] %v303, 128
        %3398 = vxpose.xlu0.b32.cont [6/16] %v304, 128
        %3399 = vxpose.xlu0.b32.cont [7/16] %v305, 128
        %3400 = vxpose.xlu0.b32.cont [8/16] %v306, 128
        %3401 = vxpose.xlu0.b32.cont [9/16] %v307, 128
        %3402 = vxpose.xlu0.b32.cont [10/16] %v308, 128
        %3403 = vxpose.xlu0.b32.cont [11/16] %v309, 128
        %3404 = vxpose.xlu0.b32.cont [12/16] %v310, 128
        %3405 = vxpose.xlu0.b32.cont [13/16] %v311, 128
        %3406 = vxpose.xlu0.b32.cont [14/16] %v312, 128
        %3407 = vxpose.xlu0.b32.cont [15/16] %v313, 128
        %3408 = vxpose.xlu0.b32.end [16/16] %v314, 128
        %v3409 = vpop.trf.xlu0
        %v3410 = vpop.trf.xlu0
        %v3411 = vpop.trf.xlu0
        %v3412 = vpop.trf.xlu0
        %v3413 = vpop.trf.xlu0
        %v3414 = vpop.trf.xlu0
        %v3415 = vpop.trf.xlu0
        %v3416 = vpop.trf.xlu0
        %v3417 = vpop.trf.xlu0
        %v3418 = vpop.trf.xlu0
        %v3419 = vpop.trf.xlu0
        %v3420 = vpop.trf.xlu0
        %v3421 = vpop.trf.xlu0
        %v3422 = vpop.trf.xlu0
        %v3423 = vpop.trf.xlu0
        %v3424 = vpop.trf.xlu0
        %3425 = vxpose.xlu0.b32.start [1/16] %v315, 128
        %3426 = vxpose.xlu0.b32.cont [2/16] %v316, 128
        %3427 = vxpose.xlu0.b32.cont [3/16] %v317, 128
        %3428 = vxpose.xlu0.b32.cont [4/16] %v318, 128
        %3429 = vxpose.xlu0.b32.cont [5/16] %v319, 128
        %3430 = vxpose.xlu0.b32.cont [6/16] %v320, 128
        %3431 = vxpose.xlu0.b32.cont [7/16] %v321, 128
        %3432 = vxpose.xlu0.b32.cont [8/16] %v322, 128
        %3433 = vxpose.xlu0.b32.cont [9/16] %v323, 128
        %3434 = vxpose.xlu0.b32.cont [10/16] %v324, 128
        %3435 = vxpose.xlu0.b32.cont [11/16] %v325, 128
        %3436 = vxpose.xlu0.b32.cont [12/16] %v326, 128
        %3437 = vxpose.xlu0.b32.cont [13/16] %v327, 128
        %3438 = vxpose.xlu0.b32.cont [14/16] %v328, 128
        %3439 = vxpose.xlu0.b32.cont [15/16] %v329, 128
        %3440 = vxpose.xlu0.b32.end [16/16] %v330, 128
        %v3441 = vpop.trf.xlu0
        %v3442 = vpop.trf.xlu0
        %v3443 = vpop.trf.xlu0
        %v3444 = vpop.trf.xlu0
        %v3445 = vpop.trf.xlu0
        %v3446 = vpop.trf.xlu0
        %v3447 = vpop.trf.xlu0
        %v3448 = vpop.trf.xlu0
        %v3449 = vpop.trf.xlu0
        %v3450 = vpop.trf.xlu0
        %v3451 = vpop.trf.xlu0
        %v3452 = vpop.trf.xlu0
        %v3453 = vpop.trf.xlu0
        %v3454 = vpop.trf.xlu0
        %v3455 = vpop.trf.xlu0
        %v3456 = vpop.trf.xlu0
        %v3457 = vsub.f32 %v139, %v3089
        %v3458 = vsub.f32 %v140, %v3090
        %v3459 = vsub.f32 %v141, %v3091
        %v3460 = vsub.f32 %v142, %v3092
        %v3461 = vsub.f32 %v143, %v3093
        %v3462 = vsub.f32 %v144, %v3094
        %v3463 = vsub.f32 %v145, %v3095
        %v3464 = vsub.f32 %v146, %v3096
        %v3465 = vsub.f32 %v147, %v3097
        %v3466 = vsub.f32 %v148, %v3098
        %v3467 = vsub.f32 %v149, %v3099
        %v3468 = vsub.f32 %v150, %v3100
        %v3469 = vsub.f32 %v151, %v3101
        %v3470 = vsub.f32 %v152, %v3102
        %v3471 = vsub.f32 %v153, %v3103
        %v3472 = vsub.f32 %v154, %v3104
        %v3473 = vsub.f32 %v155, %v3121
        %v3474 = vsub.f32 %v156, %v3122
        %v3475 = vsub.f32 %v157, %v3123
        %v3476 = vsub.f32 %v158, %v3124
        %v3477 = vsub.f32 %v159, %v3125
        %v3478 = vsub.f32 %v160, %v3126
        %v3479 = vsub.f32 %v161, %v3127
        %v3480 = vsub.f32 %v162, %v3128
        %v3481 = vsub.f32 %v163, %v3129
        %v3482 = vsub.f32 %v164, %v3130
        %v3483 = vsub.f32 %v165, %v3131
        %v3484 = vsub.f32 %v166, %v3132
        %v3485 = vsub.f32 %v167, %v3133
        %v3486 = vsub.f32 %v168, %v3134
        %v3487 = vsub.f32 %v169, %v3135
        %v3488 = vsub.f32 %v170, %v3136
        %v3489 = vsub.f32 %v171, %v3153
        %v3490 = vsub.f32 %v172, %v3154
        %v3491 = vsub.f32 %v173, %v3155
        %v3492 = vsub.f32 %v174, %v3156
        %v3493 = vsub.f32 %v175, %v3157
        %v3494 = vsub.f32 %v176, %v3158
        %v3495 = vsub.f32 %v177, %v3159
        %v3496 = vsub.f32 %v178, %v3160
        %v3497 = vsub.f32 %v179, %v3161
        %v3498 = vsub.f32 %v180, %v3162
        %v3499 = vsub.f32 %v181, %v3163
        %v3500 = vsub.f32 %v182, %v3164
        %v3501 = vsub.f32 %v183, %v3165
        %v3502 = vsub.f32 %v184, %v3166
        %v3503 = vsub.f32 %v185, %v3167
        %v3504 = vsub.f32 %v186, %v3168
        %v3505 = vsub.f32 %v187, %v3185
        %v3506 = vsub.f32 %v188, %v3186
        %v3507 = vsub.f32 %v189, %v3187
        %v3508 = vsub.f32 %v190, %v3188
        %v3509 = vsub.f32 %v191, %v3189
        %v3510 = vsub.f32 %v192, %v3190
        %v3511 = vsub.f32 %v193, %v3191
        %v3512 = vsub.f32 %v194, %v3192
        %v3513 = vsub.f32 %v195, %v3193
        %v3514 = vsub.f32 %v196, %v3194
        %v3515 = vsub.f32 %v197, %v3195
        %v3516 = vsub.f32 %v198, %v3196
        %v3517 = vsub.f32 %v199, %v3197
        %v3518 = vsub.f32 %v200, %v3198
        %v3519 = vsub.f32 %v201, %v3199
        %v3520 = vsub.f32 %v202, %v3200
        %v3521 = vsub.f32 %v203, %v3217
        %v3522 = vsub.f32 %v204, %v3218
        %v3523 = vsub.f32 %v205, %v3219
        %v3524 = vsub.f32 %v206, %v3220
        %v3525 = vsub.f32 %v207, %v3221
        %v3526 = vsub.f32 %v208, %v3222
        %v3527 = vsub.f32 %v209, %v3223
        %v3528 = vsub.f32 %v210, %v3224
        %v3529 = vsub.f32 %v211, %v3225
        %v3530 = vsub.f32 %v212, %v3226
        %v3531 = vsub.f32 %v213, %v3227
        %v3532 = vsub.f32 %v214, %v3228
        %v3533 = vsub.f32 %v215, %v3229
        %v3534 = vsub.f32 %v216, %v3230
        %v3535 = vsub.f32 %v217, %v3231
        %v3536 = vsub.f32 %v218, %v3232
        %v3537 = vsub.f32 %v219, %v3249
        %v3538 = vsub.f32 %v220, %v3250
        %v3539 = vsub.f32 %v221, %v3251
        %v3540 = vsub.f32 %v222, %v3252
        %v3541 = vsub.f32 %v223, %v3253
        %v3542 = vsub.f32 %v224, %v3254
        %v3543 = vsub.f32 %v225, %v3255
        %v3544 = vsub.f32 %v226, %v3256
        %v3545 = vsub.f32 %v227, %v3257
        %v3546 = vsub.f32 %v228, %v3258
        %v3547 = vsub.f32 %v229, %v3259
        %v3548 = vsub.f32 %v230, %v3260
        %v3549 = vsub.f32 %v231, %v3261
        %v3550 = vsub.f32 %v232, %v3262
        %v3551 = vsub.f32 %v233, %v3263
        %v3552 = vsub.f32 %v234, %v3264
        %v3553 = vsub.f32 %v235, %v3281
        %v3554 = vsub.f32 %v236, %v3282
        %v3555 = vsub.f32 %v237, %v3283
        %v3556 = vsub.f32 %v238, %v3284
        %v3557 = vsub.f32 %v239, %v3285
        %v3558 = vsub.f32 %v240, %v3286
        %v3559 = vsub.f32 %v241, %v3287
        %v3560 = vsub.f32 %v242, %v3288
        %v3561 = vsub.f32 %v243, %v3289
        %v3562 = vsub.f32 %v244, %v3290
        %v3563 = vsub.f32 %v245, %v3291
        %v3564 = vsub.f32 %v246, %v3292
        %v3565 = vsub.f32 %v247, %v3293
        %v3566 = vsub.f32 %v248, %v3294
        %v3567 = vsub.f32 %v249, %v3295
        %v3568 = vsub.f32 %v250, %v3296
        %v3569 = vsub.f32 %v251, %v3313
        %v3570 = vsub.f32 %v252, %v3314
        %v3571 = vsub.f32 %v253, %v3315
        %v3572 = vsub.f32 %v254, %v3316
        %v3573 = vsub.f32 %v255, %v3317
        %v3574 = vsub.f32 %v256, %v3318
        %v3575 = vsub.f32 %v257, %v3319
        %v3576 = vsub.f32 %v258, %v3320
        %v3577 = vsub.f32 %v259, %v3321
        %v3578 = vsub.f32 %v260, %v3322
        %v3579 = vsub.f32 %v261, %v3323
        %v3580 = vsub.f32 %v262, %v3324
        %v3581 = vsub.f32 %v263, %v3325
        %v3582 = vsub.f32 %v264, %v3326
        %v3583 = vsub.f32 %v265, %v3327
        %v3584 = vsub.f32 %v266, %v3328
        %v3585 = vsub.f32 %v267, %v3345
        %v3586 = vsub.f32 %v268, %v3346
        %v3587 = vsub.f32 %v269, %v3347
        %v3588 = vsub.f32 %v270, %v3348
        %v3589 = vsub.f32 %v271, %v3349
        %v3590 = vsub.f32 %v272, %v3350
        %v3591 = vsub.f32 %v273, %v3351
        %v3592 = vsub.f32 %v274, %v3352
        %v3593 = vsub.f32 %v275, %v3353
        %v3594 = vsub.f32 %v276, %v3354
        %v3595 = vsub.f32 %v277, %v3355
        %v3596 = vsub.f32 %v278, %v3356
        %v3597 = vsub.f32 %v279, %v3357
        %v3598 = vsub.f32 %v280, %v3358
        %v3599 = vsub.f32 %v281, %v3359
        %v3600 = vsub.f32 %v282, %v3360
        %v3601 = vsub.f32 %v283, %v3377
        %v3602 = vsub.f32 %v284, %v3378
        %v3603 = vsub.f32 %v285, %v3379
        %v3604 = vsub.f32 %v286, %v3380
        %v3605 = vsub.f32 %v287, %v3381
        %v3606 = vsub.f32 %v288, %v3382
        %v3607 = vsub.f32 %v289, %v3383
        %v3608 = vsub.f32 %v290, %v3384
        %v3609 = vsub.f32 %v291, %v3385
        %v3610 = vsub.f32 %v292, %v3386
        %v3611 = vsub.f32 %v293, %v3387
        %v3612 = vsub.f32 %v294, %v3388
        %v3613 = vsub.f32 %v295, %v3389
        %v3614 = vsub.f32 %v296, %v3390
        %v3615 = vsub.f32 %v297, %v3391
        %v3616 = vsub.f32 %v298, %v3392
        %v3617 = vsub.f32 %v299, %v3409
        %v3618 = vsub.f32 %v300, %v3410
        %v3619 = vsub.f32 %v301, %v3411
        %v3620 = vsub.f32 %v302, %v3412
        %v3621 = vsub.f32 %v303, %v3413
        %v3622 = vsub.f32 %v304, %v3414
        %v3623 = vsub.f32 %v305, %v3415
        %v3624 = vsub.f32 %v306, %v3416
        %v3625 = vsub.f32 %v307, %v3417
        %v3626 = vsub.f32 %v308, %v3418
        %v3627 = vsub.f32 %v309, %v3419
        %v3628 = vsub.f32 %v310, %v3420
        %v3629 = vsub.f32 %v311, %v3421
        %v3630 = vsub.f32 %v312, %v3422
        %v3631 = vsub.f32 %v313, %v3423
        %v3632 = vsub.f32 %v314, %v3424
        %v3633 = vsub.f32 %v315, %v3441
        %v3634 = vsub.f32 %v316, %v3442
        %v3635 = vsub.f32 %v317, %v3443
        %v3636 = vsub.f32 %v318, %v3444
        %v3637 = vsub.f32 %v319, %v3445
        %v3638 = vsub.f32 %v320, %v3446
        %v3639 = vsub.f32 %v321, %v3447
        %v3640 = vsub.f32 %v322, %v3448
        %v3641 = vsub.f32 %v323, %v3449
        %v3642 = vsub.f32 %v324, %v3450
        %v3643 = vsub.f32 %v325, %v3451
        %v3644 = vsub.f32 %v326, %v3452
        %v3645 = vsub.f32 %v327, %v3453
        %v3646 = vsub.f32 %v328, %v3454
        %v3647 = vsub.f32 %v329, %v3455
        %v3648 = vsub.f32 %v330, %v3456
        %v3649 = vand.u32 2147483647, %v3457
        %v3650 = vand.u32 2147483647, %v3458
        %v3651 = vand.u32 2147483647, %v3459
        %v3652 = vand.u32 2147483647, %v3460
        %v3653 = vand.u32 2147483647, %v3461
        %v3654 = vand.u32 2147483647, %v3462
        %v3655 = vand.u32 2147483647, %v3463
        %v3656 = vand.u32 2147483647, %v3464
        %v3657 = vand.u32 2147483647, %v3465
        %v3658 = vand.u32 2147483647, %v3466
        %v3659 = vand.u32 2147483647, %v3467
        %v3660 = vand.u32 2147483647, %v3468
        %v3661 = vand.u32 2147483647, %v3469
        %v3662 = vand.u32 2147483647, %v3470
        %v3663 = vand.u32 2147483647, %v3471
        %v3664 = vand.u32 2147483647, %v3472
        %v3665 = vand.u32 2147483647, %v3473
        %v3666 = vand.u32 2147483647, %v3474
        %v3667 = vand.u32 2147483647, %v3475
        %v3668 = vand.u32 2147483647, %v3476
        %v3669 = vand.u32 2147483647, %v3477
        %v3670 = vand.u32 2147483647, %v3478
        %v3671 = vand.u32 2147483647, %v3479
        %v3672 = vand.u32 2147483647, %v3480
        %v3673 = vand.u32 2147483647, %v3481
        %v3674 = vand.u32 2147483647, %v3482
        %v3675 = vand.u32 2147483647, %v3483
        %v3676 = vand.u32 2147483647, %v3484
        %v3677 = vand.u32 2147483647, %v3485
        %v3678 = vand.u32 2147483647, %v3486
        %v3679 = vand.u32 2147483647, %v3487
        %v3680 = vand.u32 2147483647, %v3488
        %v3681 = vand.u32 2147483647, %v3489
        %v3682 = vand.u32 2147483647, %v3490
        %v3683 = vand.u32 2147483647, %v3491
        %v3684 = vand.u32 2147483647, %v3492
        %v3685 = vand.u32 2147483647, %v3493
        %v3686 = vand.u32 2147483647, %v3494
        %v3687 = vand.u32 2147483647, %v3495
        %v3688 = vand.u32 2147483647, %v3496
        %v3689 = vand.u32 2147483647, %v3497
        %v3690 = vand.u32 2147483647, %v3498
        %v3691 = vand.u32 2147483647, %v3499
        %v3692 = vand.u32 2147483647, %v3500
        %v3693 = vand.u32 2147483647, %v3501
        %v3694 = vand.u32 2147483647, %v3502
        %v3695 = vand.u32 2147483647, %v3503
        %v3696 = vand.u32 2147483647, %v3504
        %v3697 = vand.u32 2147483647, %v3505
        %v3698 = vand.u32 2147483647, %v3506
        %v3699 = vand.u32 2147483647, %v3507
        %v3700 = vand.u32 2147483647, %v3508
        %v3701 = vand.u32 2147483647, %v3509
        %v3702 = vand.u32 2147483647, %v3510
        %v3703 = vand.u32 2147483647, %v3511
        %v3704 = vand.u32 2147483647, %v3512
        %v3705 = vand.u32 2147483647, %v3513
        %v3706 = vand.u32 2147483647, %v3514
        %v3707 = vand.u32 2147483647, %v3515
        %v3708 = vand.u32 2147483647, %v3516
        %v3709 = vand.u32 2147483647, %v3517
        %v3710 = vand.u32 2147483647, %v3518
        %v3711 = vand.u32 2147483647, %v3519
        %v3712 = vand.u32 2147483647, %v3520
        %v3713 = vand.u32 2147483647, %v3521
        %v3714 = vand.u32 2147483647, %v3522
        %v3715 = vand.u32 2147483647, %v3523
        %v3716 = vand.u32 2147483647, %v3524
        %v3717 = vand.u32 2147483647, %v3525
        %v3718 = vand.u32 2147483647, %v3526
        %v3719 = vand.u32 2147483647, %v3527
        %v3720 = vand.u32 2147483647, %v3528
        %v3721 = vand.u32 2147483647, %v3529
        %v3722 = vand.u32 2147483647, %v3530
        %v3723 = vand.u32 2147483647, %v3531
        %v3724 = vand.u32 2147483647, %v3532
        %v3725 = vand.u32 2147483647, %v3533
        %v3726 = vand.u32 2147483647, %v3534
        %v3727 = vand.u32 2147483647, %v3535
        %v3728 = vand.u32 2147483647, %v3536
        %v3729 = vand.u32 2147483647, %v3537
        %v3730 = vand.u32 2147483647, %v3538
        %v3731 = vand.u32 2147483647, %v3539
        %v3732 = vand.u32 2147483647, %v3540
        %v3733 = vand.u32 2147483647, %v3541
        %v3734 = vand.u32 2147483647, %v3542
        %v3735 = vand.u32 2147483647, %v3543
        %v3736 = vand.u32 2147483647, %v3544
        %v3737 = vand.u32 2147483647, %v3545
        %v3738 = vand.u32 2147483647, %v3546
        %v3739 = vand.u32 2147483647, %v3547
        %v3740 = vand.u32 2147483647, %v3548
        %v3741 = vand.u32 2147483647, %v3549
        %v3742 = vand.u32 2147483647, %v3550
        %v3743 = vand.u32 2147483647, %v3551
        %v3744 = vand.u32 2147483647, %v3552
        %v3745 = vand.u32 2147483647, %v3553
        %v3746 = vand.u32 2147483647, %v3554
        %v3747 = vand.u32 2147483647, %v3555
        %v3748 = vand.u32 2147483647, %v3556
        %v3749 = vand.u32 2147483647, %v3557
        %v3750 = vand.u32 2147483647, %v3558
        %v3751 = vand.u32 2147483647, %v3559
        %v3752 = vand.u32 2147483647, %v3560
        %v3753 = vand.u32 2147483647, %v3561
        %v3754 = vand.u32 2147483647, %v3562
        %v3755 = vand.u32 2147483647, %v3563
        %v3756 = vand.u32 2147483647, %v3564
        %v3757 = vand.u32 2147483647, %v3565
        %v3758 = vand.u32 2147483647, %v3566
        %v3759 = vand.u32 2147483647, %v3567
        %v3760 = vand.u32 2147483647, %v3568
        %v3761 = vand.u32 2147483647, %v3569
        %v3762 = vand.u32 2147483647, %v3570
        %v3763 = vand.u32 2147483647, %v3571
        %v3764 = vand.u32 2147483647, %v3572
        %v3765 = vand.u32 2147483647, %v3573
        %v3766 = vand.u32 2147483647, %v3574
        %v3767 = vand.u32 2147483647, %v3575
        %v3768 = vand.u32 2147483647, %v3576
        %v3769 = vand.u32 2147483647, %v3577
        %v3770 = vand.u32 2147483647, %v3578
        %v3771 = vand.u32 2147483647, %v3579
        %v3772 = vand.u32 2147483647, %v3580
        %v3773 = vand.u32 2147483647, %v3581
        %v3774 = vand.u32 2147483647, %v3582
        %v3775 = vand.u32 2147483647, %v3583
        %v3776 = vand.u32 2147483647, %v3584
        %v3777 = vand.u32 2147483647, %v3585
        %v3778 = vand.u32 2147483647, %v3586
        %v3779 = vand.u32 2147483647, %v3587
        %v3780 = vand.u32 2147483647, %v3588
        %v3781 = vand.u32 2147483647, %v3589
        %v3782 = vand.u32 2147483647, %v3590
        %v3783 = vand.u32 2147483647, %v3591
        %v3784 = vand.u32 2147483647, %v3592
        %v3785 = vand.u32 2147483647, %v3593
        %v3786 = vand.u32 2147483647, %v3594
        %v3787 = vand.u32 2147483647, %v3595
        %v3788 = vand.u32 2147483647, %v3596
        %v3789 = vand.u32 2147483647, %v3597
        %v3790 = vand.u32 2147483647, %v3598
        %v3791 = vand.u32 2147483647, %v3599
        %v3792 = vand.u32 2147483647, %v3600
        %v3793 = vand.u32 2147483647, %v3601
        %v3794 = vand.u32 2147483647, %v3602
        %v3795 = vand.u32 2147483647, %v3603
        %v3796 = vand.u32 2147483647, %v3604
        %v3797 = vand.u32 2147483647, %v3605
        %v3798 = vand.u32 2147483647, %v3606
        %v3799 = vand.u32 2147483647, %v3607
        %v3800 = vand.u32 2147483647, %v3608
        %v3801 = vand.u32 2147483647, %v3609
        %v3802 = vand.u32 2147483647, %v3610
        %v3803 = vand.u32 2147483647, %v3611
        %v3804 = vand.u32 2147483647, %v3612
        %v3805 = vand.u32 2147483647, %v3613
        %v3806 = vand.u32 2147483647, %v3614
        %v3807 = vand.u32 2147483647, %v3615
        %v3808 = vand.u32 2147483647, %v3616
        %v3809 = vand.u32 2147483647, %v3617
        %v3810 = vand.u32 2147483647, %v3618
        %v3811 = vand.u32 2147483647, %v3619
        %v3812 = vand.u32 2147483647, %v3620
        %v3813 = vand.u32 2147483647, %v3621
        %v3814 = vand.u32 2147483647, %v3622
        %v3815 = vand.u32 2147483647, %v3623
        %v3816 = vand.u32 2147483647, %v3624
        %v3817 = vand.u32 2147483647, %v3625
        %v3818 = vand.u32 2147483647, %v3626
        %v3819 = vand.u32 2147483647, %v3627
        %v3820 = vand.u32 2147483647, %v3628
        %v3821 = vand.u32 2147483647, %v3629
        %v3822 = vand.u32 2147483647, %v3630
        %v3823 = vand.u32 2147483647, %v3631
        %v3824 = vand.u32 2147483647, %v3632
        %v3825 = vand.u32 2147483647, %v3633
        %v3826 = vand.u32 2147483647, %v3634
        %v3827 = vand.u32 2147483647, %v3635
        %v3828 = vand.u32 2147483647, %v3636
        %v3829 = vand.u32 2147483647, %v3637
        %v3830 = vand.u32 2147483647, %v3638
        %v3831 = vand.u32 2147483647, %v3639
        %v3832 = vand.u32 2147483647, %v3640
        %v3833 = vand.u32 2147483647, %v3641
        %v3834 = vand.u32 2147483647, %v3642
        %v3835 = vand.u32 2147483647, %v3643
        %v3836 = vand.u32 2147483647, %v3644
        %v3837 = vand.u32 2147483647, %v3645
        %v3838 = vand.u32 2147483647, %v3646
        %v3839 = vand.u32 2147483647, %v3647
        %v3840 = vand.u32 2147483647, %v3648
        %v3841 = vmin.f32 %v3649, 0.0078125
        %v3842 = vmin.f32 %v3650, 0.0078125
        %v3843 = vmin.f32 %v3651, 0.0078125
        %v3844 = vmin.f32 %v3652, 0.0078125
        %v3845 = vmin.f32 %v3653, 0.0078125
        %v3846 = vmin.f32 %v3654, 0.0078125
        %v3847 = vmin.f32 %v3655, 0.0078125
        %v3848 = vmin.f32 %v3656, 0.0078125
        %v3849 = vmin.f32 %v3657, 0.0078125
        %v3850 = vmin.f32 %v3658, 0.0078125
        %v3851 = vmin.f32 %v3659, 0.0078125
        %v3852 = vmin.f32 %v3660, 0.0078125
        %v3853 = vmin.f32 %v3661, 0.0078125
        %v3854 = vmin.f32 %v3662, 0.0078125
        %v3855 = vmin.f32 %v3663, 0.0078125
        %v3856 = vmin.f32 %v3664, 0.0078125
        %v3857 = vmin.f32 %v3665, 0.0078125
        %v3858 = vmin.f32 %v3666, 0.0078125
        %v3859 = vmin.f32 %v3667, 0.0078125
        %v3860 = vmin.f32 %v3668, 0.0078125
        %v3861 = vmin.f32 %v3669, 0.0078125
        %v3862 = vmin.f32 %v3670, 0.0078125
        %v3863 = vmin.f32 %v3671, 0.0078125
        %v3864 = vmin.f32 %v3672, 0.0078125
        %v3865 = vmin.f32 %v3673, 0.0078125
        %v3866 = vmin.f32 %v3674, 0.0078125
        %v3867 = vmin.f32 %v3675, 0.0078125
        %v3868 = vmin.f32 %v3676, 0.0078125
        %v3869 = vmin.f32 %v3677, 0.0078125
        %v3870 = vmin.f32 %v3678, 0.0078125
        %v3871 = vmin.f32 %v3679, 0.0078125
        %v3872 = vmin.f32 %v3680, 0.0078125
        %v3873 = vmin.f32 %v3681, 0.0078125
        %v3874 = vmin.f32 %v3682, 0.0078125
        %v3875 = vmin.f32 %v3683, 0.0078125
        %v3876 = vmin.f32 %v3684, 0.0078125
        %v3877 = vmin.f32 %v3685, 0.0078125
        %v3878 = vmin.f32 %v3686, 0.0078125
        %v3879 = vmin.f32 %v3687, 0.0078125
        %v3880 = vmin.f32 %v3688, 0.0078125
        %v3881 = vmin.f32 %v3689, 0.0078125
        %v3882 = vmin.f32 %v3690, 0.0078125
        %v3883 = vmin.f32 %v3691, 0.0078125
        %v3884 = vmin.f32 %v3692, 0.0078125
        %v3885 = vmin.f32 %v3693, 0.0078125
        %v3886 = vmin.f32 %v3694, 0.0078125
        %v3887 = vmin.f32 %v3695, 0.0078125
        %v3888 = vmin.f32 %v3696, 0.0078125
        %v3889 = vmin.f32 %v3697, 0.0078125
        %v3890 = vmin.f32 %v3698, 0.0078125
        %v3891 = vmin.f32 %v3699, 0.0078125
        %v3892 = vmin.f32 %v3700, 0.0078125
        %v3893 = vmin.f32 %v3701, 0.0078125
        %v3894 = vmin.f32 %v3702, 0.0078125
        %v3895 = vmin.f32 %v3703, 0.0078125
        %v3896 = vmin.f32 %v3704, 0.0078125
        %v3897 = vmin.f32 %v3705, 0.0078125
        %v3898 = vmin.f32 %v3706, 0.0078125
        %v3899 = vmin.f32 %v3707, 0.0078125
        %v3900 = vmin.f32 %v3708, 0.0078125
        %v3901 = vmin.f32 %v3709, 0.0078125
        %v3902 = vmin.f32 %v3710, 0.0078125
        %v3903 = vmin.f32 %v3711, 0.0078125
        %v3904 = vmin.f32 %v3712, 0.0078125
        %v3905 = vmin.f32 %v3713, 0.0078125
        %v3906 = vmin.f32 %v3714, 0.0078125
        %v3907 = vmin.f32 %v3715, 0.0078125
        %v3908 = vmin.f32 %v3716, 0.0078125
        %v3909 = vmin.f32 %v3717, 0.0078125
        %v3910 = vmin.f32 %v3718, 0.0078125
        %v3911 = vmin.f32 %v3719, 0.0078125
        %v3912 = vmin.f32 %v3720, 0.0078125
        %v3913 = vmin.f32 %v3721, 0.0078125
        %v3914 = vmin.f32 %v3722, 0.0078125
        %v3915 = vmin.f32 %v3723, 0.0078125
        %v3916 = vmin.f32 %v3724, 0.0078125
        %v3917 = vmin.f32 %v3725, 0.0078125
        %v3918 = vmin.f32 %v3726, 0.0078125
        %v3919 = vmin.f32 %v3727, 0.0078125
        %v3920 = vmin.f32 %v3728, 0.0078125
        %v3921 = vmin.f32 %v3729, 0.0078125
        %v3922 = vmin.f32 %v3730, 0.0078125
        %v3923 = vmin.f32 %v3731, 0.0078125
        %v3924 = vmin.f32 %v3732, 0.0078125
        %v3925 = vmin.f32 %v3733, 0.0078125
        %v3926 = vmin.f32 %v3734, 0.0078125
        %v3927 = vmin.f32 %v3735, 0.0078125
        %v3928 = vmin.f32 %v3736, 0.0078125
        %v3929 = vmin.f32 %v3737, 0.0078125
        %v3930 = vmin.f32 %v3738, 0.0078125
        %v3931 = vmin.f32 %v3739, 0.0078125
        %v3932 = vmin.f32 %v3740, 0.0078125
        %v3933 = vmin.f32 %v3741, 0.0078125
        %v3934 = vmin.f32 %v3742, 0.0078125
        %v3935 = vmin.f32 %v3743, 0.0078125
        %v3936 = vmin.f32 %v3744, 0.0078125
        %v3937 = vmin.f32 %v3745, 0.0078125
        %v3938 = vmin.f32 %v3746, 0.0078125
        %v3939 = vmin.f32 %v3747, 0.0078125
        %v3940 = vmin.f32 %v3748, 0.0078125
        %v3941 = vmin.f32 %v3749, 0.0078125
        %v3942 = vmin.f32 %v3750, 0.0078125
        %v3943 = vmin.f32 %v3751, 0.0078125
        %v3944 = vmin.f32 %v3752, 0.0078125
        %v3945 = vmin.f32 %v3753, 0.0078125
        %v3946 = vmin.f32 %v3754, 0.0078125
        %v3947 = vmin.f32 %v3755, 0.0078125
        %v3948 = vmin.f32 %v3756, 0.0078125
        %v3949 = vmin.f32 %v3757, 0.0078125
        %v3950 = vmin.f32 %v3758, 0.0078125
        %v3951 = vmin.f32 %v3759, 0.0078125
        %v3952 = vmin.f32 %v3760, 0.0078125
        %v3953 = vmin.f32 %v3761, 0.0078125
        %v3954 = vmin.f32 %v3762, 0.0078125
        %v3955 = vmin.f32 %v3763, 0.0078125
        %v3956 = vmin.f32 %v3764, 0.0078125
        %v3957 = vmin.f32 %v3765, 0.0078125
        %v3958 = vmin.f32 %v3766, 0.0078125
        %v3959 = vmin.f32 %v3767, 0.0078125
        %v3960 = vmin.f32 %v3768, 0.0078125
        %v3961 = vmin.f32 %v3769, 0.0078125
        %v3962 = vmin.f32 %v3770, 0.0078125
        %v3963 = vmin.f32 %v3771, 0.0078125
        %v3964 = vmin.f32 %v3772, 0.0078125
        %v3965 = vmin.f32 %v3773, 0.0078125
        %v3966 = vmin.f32 %v3774, 0.0078125
        %v3967 = vmin.f32 %v3775, 0.0078125
        %v3968 = vmin.f32 %v3776, 0.0078125
        %v3969 = vmin.f32 %v3777, 0.0078125
        %v3970 = vmin.f32 %v3778, 0.0078125
        %v3971 = vmin.f32 %v3779, 0.0078125
        %v3972 = vmin.f32 %v3780, 0.0078125
        %v3973 = vmin.f32 %v3781, 0.0078125
        %v3974 = vmin.f32 %v3782, 0.0078125
        %v3975 = vmin.f32 %v3783, 0.0078125
        %v3976 = vmin.f32 %v3784, 0.0078125
        %v3977 = vmin.f32 %v3785, 0.0078125
        %v3978 = vmin.f32 %v3786, 0.0078125
        %v3979 = vmin.f32 %v3787, 0.0078125
        %v3980 = vmin.f32 %v3788, 0.0078125
        %v3981 = vmin.f32 %v3789, 0.0078125
        %v3982 = vmin.f32 %v3790, 0.0078125
        %v3983 = vmin.f32 %v3791, 0.0078125
        %v3984 = vmin.f32 %v3792, 0.0078125
        %v3985 = vmin.f32 %v3793, 0.0078125
        %v3986 = vmin.f32 %v3794, 0.0078125
        %v3987 = vmin.f32 %v3795, 0.0078125
        %v3988 = vmin.f32 %v3796, 0.0078125
        %v3989 = vmin.f32 %v3797, 0.0078125
        %v3990 = vmin.f32 %v3798, 0.0078125
        %v3991 = vmin.f32 %v3799, 0.0078125
        %v3992 = vmin.f32 %v3800, 0.0078125
        %v3993 = vmin.f32 %v3801, 0.0078125
        %v3994 = vmin.f32 %v3802, 0.0078125
        %v3995 = vmin.f32 %v3803, 0.0078125
        %v3996 = vmin.f32 %v3804, 0.0078125
        %v3997 = vmin.f32 %v3805, 0.0078125
        %v3998 = vmin.f32 %v3806, 0.0078125
        %v3999 = vmin.f32 %v3807, 0.0078125
        %v4000 = vmin.f32 %v3808, 0.0078125
        %v4001 = vmin.f32 %v3809, 0.0078125
        %v4002 = vmin.f32 %v3810, 0.0078125
        %v4003 = vmin.f32 %v3811, 0.0078125
        %v4004 = vmin.f32 %v3812, 0.0078125
        %v4005 = vmin.f32 %v3813, 0.0078125
        %v4006 = vmin.f32 %v3814, 0.0078125
        %v4007 = vmin.f32 %v3815, 0.0078125
        %v4008 = vmin.f32 %v3816, 0.0078125
        %v4009 = vmin.f32 %v3817, 0.0078125
        %v4010 = vmin.f32 %v3818, 0.0078125
        %v4011 = vmin.f32 %v3819, 0.0078125
        %v4012 = vmin.f32 %v3820, 0.0078125
        %v4013 = vmin.f32 %v3821, 0.0078125
        %v4014 = vmin.f32 %v3822, 0.0078125
        %v4015 = vmin.f32 %v3823, 0.0078125
        %v4016 = vmin.f32 %v3824, 0.0078125
        %v4017 = vmin.f32 %v3825, 0.0078125
        %v4018 = vmin.f32 %v3826, 0.0078125
        %v4019 = vmin.f32 %v3827, 0.0078125
        %v4020 = vmin.f32 %v3828, 0.0078125
        %v4021 = vmin.f32 %v3829, 0.0078125
        %v4022 = vmin.f32 %v3830, 0.0078125
        %v4023 = vmin.f32 %v3831, 0.0078125
        %v4024 = vmin.f32 %v3832, 0.0078125
        %v4025 = vmin.f32 %v3833, 0.0078125
        %v4026 = vmin.f32 %v3834, 0.0078125
        %v4027 = vmin.f32 %v3835, 0.0078125
        %v4028 = vmin.f32 %v3836, 0.0078125
        %v4029 = vmin.f32 %v3837, 0.0078125
        %v4030 = vmin.f32 %v3838, 0.0078125
        %v4031 = vmin.f32 %v3839, 0.0078125
        %v4032 = vmin.f32 %v3840, 0.0078125
        %v4033 = vadd.f32 %v3649, %v3649
        %v4034 = vadd.f32 %v3650, %v3650
        %v4035 = vadd.f32 %v3651, %v3651
        %v4036 = vadd.f32 %v3652, %v3652
        %v4037 = vadd.f32 %v3653, %v3653
        %v4038 = vadd.f32 %v3654, %v3654
        %v4039 = vadd.f32 %v3655, %v3655
        %v4040 = vadd.f32 %v3656, %v3656
        %v4041 = vadd.f32 %v3657, %v3657
        %v4042 = vadd.f32 %v3658, %v3658
        %v4043 = vadd.f32 %v3659, %v3659
        %v4044 = vadd.f32 %v3660, %v3660
        %v4045 = vadd.f32 %v3661, %v3661
        %v4046 = vadd.f32 %v3662, %v3662
        %v4047 = vadd.f32 %v3663, %v3663
        %v4048 = vadd.f32 %v3664, %v3664
        %v4049 = vadd.f32 %v3665, %v3665
        %v4050 = vadd.f32 %v3666, %v3666
        %v4051 = vadd.f32 %v3667, %v3667
        %v4052 = vadd.f32 %v3668, %v3668
        %v4053 = vadd.f32 %v3669, %v3669
        %v4054 = vadd.f32 %v3670, %v3670
        %v4055 = vadd.f32 %v3671, %v3671
        %v4056 = vadd.f32 %v3672, %v3672
        %v4057 = vadd.f32 %v3673, %v3673
        %v4058 = vadd.f32 %v3674, %v3674
        %v4059 = vadd.f32 %v3675, %v3675
        %v4060 = vadd.f32 %v3676, %v3676
        %v4061 = vadd.f32 %v3677, %v3677
        %v4062 = vadd.f32 %v3678, %v3678
        %v4063 = vadd.f32 %v3679, %v3679
        %v4064 = vadd.f32 %v3680, %v3680
        %v4065 = vadd.f32 %v3681, %v3681
        %v4066 = vadd.f32 %v3682, %v3682
        %v4067 = vadd.f32 %v3683, %v3683
        %v4068 = vadd.f32 %v3684, %v3684
        %v4069 = vadd.f32 %v3685, %v3685
        %v4070 = vadd.f32 %v3686, %v3686
        %v4071 = vadd.f32 %v3687, %v3687
        %v4072 = vadd.f32 %v3688, %v3688
        %v4073 = vadd.f32 %v3689, %v3689
        %v4074 = vadd.f32 %v3690, %v3690
        %v4075 = vadd.f32 %v3691, %v3691
        %v4076 = vadd.f32 %v3692, %v3692
        %v4077 = vadd.f32 %v3693, %v3693
        %v4078 = vadd.f32 %v3694, %v3694
        %v4079 = vadd.f32 %v3695, %v3695
        %v4080 = vadd.f32 %v3696, %v3696
        %v4081 = vadd.f32 %v3697, %v3697
        %v4082 = vadd.f32 %v3698, %v3698
        %v4083 = vadd.f32 %v3699, %v3699
        %v4084 = vadd.f32 %v3700, %v3700
        %v4085 = vadd.f32 %v3701, %v3701
        %v4086 = vadd.f32 %v3702, %v3702
        %v4087 = vadd.f32 %v3703, %v3703
        %v4088 = vadd.f32 %v3704, %v3704
        %v4089 = vadd.f32 %v3705, %v3705
        %v4090 = vadd.f32 %v3706, %v3706
        %v4091 = vadd.f32 %v3707, %v3707
        %v4092 = vadd.f32 %v3708, %v3708
        %v4093 = vadd.f32 %v3709, %v3709
        %v4094 = vadd.f32 %v3710, %v3710
        %v4095 = vadd.f32 %v3711, %v3711
        %v4096 = vadd.f32 %v3712, %v3712
        %v4097 = vadd.f32 %v3713, %v3713
        %v4098 = vadd.f32 %v3714, %v3714
        %v4099 = vadd.f32 %v3715, %v3715
        %v4100 = vadd.f32 %v3716, %v3716
        %v4101 = vadd.f32 %v3717, %v3717
        %v4102 = vadd.f32 %v3718, %v3718
        %v4103 = vadd.f32 %v3719, %v3719
        %v4104 = vadd.f32 %v3720, %v3720
        %v4105 = vadd.f32 %v3721, %v3721
        %v4106 = vadd.f32 %v3722, %v3722
        %v4107 = vadd.f32 %v3723, %v3723
        %v4108 = vadd.f32 %v3724, %v3724
        %v4109 = vadd.f32 %v3725, %v3725
        %v4110 = vadd.f32 %v3726, %v3726
        %v4111 = vadd.f32 %v3727, %v3727
        %v4112 = vadd.f32 %v3728, %v3728
        %v4113 = vadd.f32 %v3729, %v3729
        %v4114 = vadd.f32 %v3730, %v3730
        %v4115 = vadd.f32 %v3731, %v3731
        %v4116 = vadd.f32 %v3732, %v3732
        %v4117 = vadd.f32 %v3733, %v3733
        %v4118 = vadd.f32 %v3734, %v3734
        %v4119 = vadd.f32 %v3735, %v3735
        %v4120 = vadd.f32 %v3736, %v3736
        %v4121 = vadd.f32 %v3737, %v3737
        %v4122 = vadd.f32 %v3738, %v3738
        %v4123 = vadd.f32 %v3739, %v3739
        %v4124 = vadd.f32 %v3740, %v3740
        %v4125 = vadd.f32 %v3741, %v3741
        %v4126 = vadd.f32 %v3742, %v3742
        %v4127 = vadd.f32 %v3743, %v3743
        %v4128 = vadd.f32 %v3744, %v3744
        %v4129 = vadd.f32 %v3745, %v3745
        %v4130 = vadd.f32 %v3746, %v3746
        %v4131 = vadd.f32 %v3747, %v3747
        %v4132 = vadd.f32 %v3748, %v3748
        %v4133 = vadd.f32 %v3749, %v3749
        %v4134 = vadd.f32 %v3750, %v3750
        %v4135 = vadd.f32 %v3751, %v3751
        %v4136 = vadd.f32 %v3752, %v3752
        %v4137 = vadd.f32 %v3753, %v3753
        %v4138 = vadd.f32 %v3754, %v3754
        %v4139 = vadd.f32 %v3755, %v3755
        %v4140 = vadd.f32 %v3756, %v3756
        %v4141 = vadd.f32 %v3757, %v3757
        %v4142 = vadd.f32 %v3758, %v3758
        %v4143 = vadd.f32 %v3759, %v3759
        %v4144 = vadd.f32 %v3760, %v3760
        %v4145 = vadd.f32 %v3761, %v3761
        %v4146 = vadd.f32 %v3762, %v3762
        %v4147 = vadd.f32 %v3763, %v3763
        %v4148 = vadd.f32 %v3764, %v3764
        %v4149 = vadd.f32 %v3765, %v3765
        %v4150 = vadd.f32 %v3766, %v3766
        %v4151 = vadd.f32 %v3767, %v3767
        %v4152 = vadd.f32 %v3768, %v3768
        %v4153 = vadd.f32 %v3769, %v3769
        %v4154 = vadd.f32 %v3770, %v3770
        %v4155 = vadd.f32 %v3771, %v3771
        %v4156 = vadd.f32 %v3772, %v3772
        %v4157 = vadd.f32 %v3773, %v3773
        %v4158 = vadd.f32 %v3774, %v3774
        %v4159 = vadd.f32 %v3775, %v3775
        %v4160 = vadd.f32 %v3776, %v3776
        %v4161 = vadd.f32 %v3777, %v3777
        %v4162 = vadd.f32 %v3778, %v3778
        %v4163 = vadd.f32 %v3779, %v3779
        %v4164 = vadd.f32 %v3780, %v3780
        %v4165 = vadd.f32 %v3781, %v3781
        %v4166 = vadd.f32 %v3782, %v3782
        %v4167 = vadd.f32 %v3783, %v3783
        %v4168 = vadd.f32 %v3784, %v3784
        %v4169 = vadd.f32 %v3785, %v3785
        %v4170 = vadd.f32 %v3786, %v3786
        %v4171 = vadd.f32 %v3787, %v3787
        %v4172 = vadd.f32 %v3788, %v3788
        %v4173 = vadd.f32 %v3789, %v3789
        %v4174 = vadd.f32 %v3790, %v3790
        %v4175 = vadd.f32 %v3791, %v3791
        %v4176 = vadd.f32 %v3792, %v3792
        %v4177 = vadd.f32 %v3793, %v3793
        %v4178 = vadd.f32 %v3794, %v3794
        %v4179 = vadd.f32 %v3795, %v3795
        %v4180 = vadd.f32 %v3796, %v3796
        %v4181 = vadd.f32 %v3797, %v3797
        %v4182 = vadd.f32 %v3798, %v3798
        %v4183 = vadd.f32 %v3799, %v3799
        %v4184 = vadd.f32 %v3800, %v3800
        %v4185 = vadd.f32 %v3801, %v3801
        %v4186 = vadd.f32 %v3802, %v3802
        %v4187 = vadd.f32 %v3803, %v3803
        %v4188 = vadd.f32 %v3804, %v3804
        %v4189 = vadd.f32 %v3805, %v3805
        %v4190 = vadd.f32 %v3806, %v3806
        %v4191 = vadd.f32 %v3807, %v3807
        %v4192 = vadd.f32 %v3808, %v3808
        %v4193 = vadd.f32 %v3809, %v3809
        %v4194 = vadd.f32 %v3810, %v3810
        %v4195 = vadd.f32 %v3811, %v3811
        %v4196 = vadd.f32 %v3812, %v3812
        %v4197 = vadd.f32 %v3813, %v3813
        %v4198 = vadd.f32 %v3814, %v3814
        %v4199 = vadd.f32 %v3815, %v3815
        %v4200 = vadd.f32 %v3816, %v3816
        %v4201 = vadd.f32 %v3817, %v3817
        %v4202 = vadd.f32 %v3818, %v3818
        %v4203 = vadd.f32 %v3819, %v3819
        %v4204 = vadd.f32 %v3820, %v3820
        %v4205 = vadd.f32 %v3821, %v3821
        %v4206 = vadd.f32 %v3822, %v3822
        %v4207 = vadd.f32 %v3823, %v3823
        %v4208 = vadd.f32 %v3824, %v3824
        %v4209 = vadd.f32 %v3825, %v3825
        %v4210 = vadd.f32 %v3826, %v3826
        %v4211 = vadd.f32 %v3827, %v3827
        %v4212 = vadd.f32 %v3828, %v3828
        %v4213 = vadd.f32 %v3829, %v3829
        %v4214 = vadd.f32 %v3830, %v3830
        %v4215 = vadd.f32 %v3831, %v3831
        %v4216 = vadd.f32 %v3832, %v3832
        %v4217 = vadd.f32 %v3833, %v3833
        %v4218 = vadd.f32 %v3834, %v3834
        %v4219 = vadd.f32 %v3835, %v3835
        %v4220 = vadd.f32 %v3836, %v3836
        %v4221 = vadd.f32 %v3837, %v3837
        %v4222 = vadd.f32 %v3838, %v3838
        %v4223 = vadd.f32 %v3839, %v3839
        %v4224 = vadd.f32 %v3840, %v3840
        %v4225 = vsub.f32 %v4033, %v3841
        %v4226 = vsub.f32 %v4034, %v3842
        %v4227 = vsub.f32 %v4035, %v3843
        %v4228 = vsub.f32 %v4036, %v3844
        %v4229 = vsub.f32 %v4037, %v3845
        %v4230 = vsub.f32 %v4038, %v3846
        %v4231 = vsub.f32 %v4039, %v3847
        %v4232 = vsub.f32 %v4040, %v3848
        %v4233 = vsub.f32 %v4041, %v3849
        %v4234 = vsub.f32 %v4042, %v3850
        %v4235 = vsub.f32 %v4043, %v3851
        %v4236 = vsub.f32 %v4044, %v3852
        %v4237 = vsub.f32 %v4045, %v3853
        %v4238 = vsub.f32 %v4046, %v3854
        %v4239 = vsub.f32 %v4047, %v3855
        %v4240 = vsub.f32 %v4048, %v3856
        %v4241 = vsub.f32 %v4049, %v3857
        %v4242 = vsub.f32 %v4050, %v3858
        %v4243 = vsub.f32 %v4051, %v3859
        %v4244 = vsub.f32 %v4052, %v3860
        %v4245 = vsub.f32 %v4053, %v3861
        %v4246 = vsub.f32 %v4054, %v3862
        %v4247 = vsub.f32 %v4055, %v3863
        %v4248 = vsub.f32 %v4056, %v3864
        %v4249 = vsub.f32 %v4057, %v3865
        %v4250 = vsub.f32 %v4058, %v3866
        %v4251 = vsub.f32 %v4059, %v3867
        %v4252 = vsub.f32 %v4060, %v3868
        %v4253 = vsub.f32 %v4061, %v3869
        %v4254 = vsub.f32 %v4062, %v3870
        %v4255 = vsub.f32 %v4063, %v3871
        %v4256 = vsub.f32 %v4064, %v3872
        %v4257 = vsub.f32 %v4065, %v3873
        %v4258 = vsub.f32 %v4066, %v3874
        %v4259 = vsub.f32 %v4067, %v3875
        %v4260 = vsub.f32 %v4068, %v3876
        %v4261 = vsub.f32 %v4069, %v3877
        %v4262 = vsub.f32 %v4070, %v3878
        %v4263 = vsub.f32 %v4071, %v3879
        %v4264 = vsub.f32 %v4072, %v3880
        %v4265 = vsub.f32 %v4073, %v3881
        %v4266 = vsub.f32 %v4074, %v3882
        %v4267 = vsub.f32 %v4075, %v3883
        %v4268 = vsub.f32 %v4076, %v3884
        %v4269 = vsub.f32 %v4077, %v3885
        %v4270 = vsub.f32 %v4078, %v3886
        %v4271 = vsub.f32 %v4079, %v3887
        %v4272 = vsub.f32 %v4080, %v3888
        %v4273 = vsub.f32 %v4081, %v3889
        %v4274 = vsub.f32 %v4082, %v3890
        %v4275 = vsub.f32 %v4083, %v3891
        %v4276 = vsub.f32 %v4084, %v3892
        %v4277 = vsub.f32 %v4085, %v3893
        %v4278 = vsub.f32 %v4086, %v3894
        %v4279 = vsub.f32 %v4087, %v3895
        %v4280 = vsub.f32 %v4088, %v3896
        %v4281 = vsub.f32 %v4089, %v3897
        %v4282 = vsub.f32 %v4090, %v3898
        %v4283 = vsub.f32 %v4091, %v3899
        %v4284 = vsub.f32 %v4092, %v3900
        %v4285 = vsub.f32 %v4093, %v3901
        %v4286 = vsub.f32 %v4094, %v3902
        %v4287 = vsub.f32 %v4095, %v3903
        %v4288 = vsub.f32 %v4096, %v3904
        %v4289 = vsub.f32 %v4097, %v3905
        %v4290 = vsub.f32 %v4098, %v3906
        %v4291 = vsub.f32 %v4099, %v3907
        %v4292 = vsub.f32 %v4100, %v3908
        %v4293 = vsub.f32 %v4101, %v3909
        %v4294 = vsub.f32 %v4102, %v3910
        %v4295 = vsub.f32 %v4103, %v3911
        %v4296 = vsub.f32 %v4104, %v3912
        %v4297 = vsub.f32 %v4105, %v3913
        %v4298 = vsub.f32 %v4106, %v3914
        %v4299 = vsub.f32 %v4107, %v3915
        %v4300 = vsub.f32 %v4108, %v3916
        %v4301 = vsub.f32 %v4109, %v3917
        %v4302 = vsub.f32 %v4110, %v3918
        %v4303 = vsub.f32 %v4111, %v3919
        %v4304 = vsub.f32 %v4112, %v3920
        %v4305 = vsub.f32 %v4113, %v3921
        %v4306 = vsub.f32 %v4114, %v3922
        %v4307 = vsub.f32 %v4115, %v3923
        %v4308 = vsub.f32 %v4116, %v3924
        %v4309 = vsub.f32 %v4117, %v3925
        %v4310 = vsub.f32 %v4118, %v3926
        %v4311 = vsub.f32 %v4119, %v3927
        %v4312 = vsub.f32 %v4120, %v3928
        %v4313 = vsub.f32 %v4121, %v3929
        %v4314 = vsub.f32 %v4122, %v3930
        %v4315 = vsub.f32 %v4123, %v3931
        %v4316 = vsub.f32 %v4124, %v3932
        %v4317 = vsub.f32 %v4125, %v3933
        %v4318 = vsub.f32 %v4126, %v3934
        %v4319 = vsub.f32 %v4127, %v3935
        %v4320 = vsub.f32 %v4128, %v3936
        %v4321 = vsub.f32 %v4129, %v3937
        %v4322 = vsub.f32 %v4130, %v3938
        %v4323 = vsub.f32 %v4131, %v3939
        %v4324 = vsub.f32 %v4132, %v3940
        %v4325 = vsub.f32 %v4133, %v3941
        %v4326 = vsub.f32 %v4134, %v3942
        %v4327 = vsub.f32 %v4135, %v3943
        %v4328 = vsub.f32 %v4136, %v3944
        %v4329 = vsub.f32 %v4137, %v3945
        %v4330 = vsub.f32 %v4138, %v3946
        %v4331 = vsub.f32 %v4139, %v3947
        %v4332 = vsub.f32 %v4140, %v3948
        %v4333 = vsub.f32 %v4141, %v3949
        %v4334 = vsub.f32 %v4142, %v3950
        %v4335 = vsub.f32 %v4143, %v3951
        %v4336 = vsub.f32 %v4144, %v3952
        %v4337 = vsub.f32 %v4145, %v3953
        %v4338 = vsub.f32 %v4146, %v3954
        %v4339 = vsub.f32 %v4147, %v3955
        %v4340 = vsub.f32 %v4148, %v3956
        %v4341 = vsub.f32 %v4149, %v3957
        %v4342 = vsub.f32 %v4150, %v3958
        %v4343 = vsub.f32 %v4151, %v3959
        %v4344 = vsub.f32 %v4152, %v3960
        %v4345 = vsub.f32 %v4153, %v3961
        %v4346 = vsub.f32 %v4154, %v3962
        %v4347 = vsub.f32 %v4155, %v3963
        %v4348 = vsub.f32 %v4156, %v3964
        %v4349 = vsub.f32 %v4157, %v3965
        %v4350 = vsub.f32 %v4158, %v3966
        %v4351 = vsub.f32 %v4159, %v3967
        %v4352 = vsub.f32 %v4160, %v3968
        %v4353 = vsub.f32 %v4161, %v3969
        %v4354 = vsub.f32 %v4162, %v3970
        %v4355 = vsub.f32 %v4163, %v3971
        %v4356 = vsub.f32 %v4164, %v3972
        %v4357 = vsub.f32 %v4165, %v3973
        %v4358 = vsub.f32 %v4166, %v3974
        %v4359 = vsub.f32 %v4167, %v3975
        %v4360 = vsub.f32 %v4168, %v3976
        %v4361 = vsub.f32 %v4169, %v3977
        %v4362 = vsub.f32 %v4170, %v3978
        %v4363 = vsub.f32 %v4171, %v3979
        %v4364 = vsub.f32 %v4172, %v3980
        %v4365 = vsub.f32 %v4173, %v3981
        %v4366 = vsub.f32 %v4174, %v3982
        %v4367 = vsub.f32 %v4175, %v3983
        %v4368 = vsub.f32 %v4176, %v3984
        %v4369 = vsub.f32 %v4177, %v3985
        %v4370 = vsub.f32 %v4178, %v3986
        %v4371 = vsub.f32 %v4179, %v3987
        %v4372 = vsub.f32 %v4180, %v3988
        %v4373 = vsub.f32 %v4181, %v3989
        %v4374 = vsub.f32 %v4182, %v3990
        %v4375 = vsub.f32 %v4183, %v3991
        %v4376 = vsub.f32 %v4184, %v3992
        %v4377 = vsub.f32 %v4185, %v3993
        %v4378 = vsub.f32 %v4186, %v3994
        %v4379 = vsub.f32 %v4187, %v3995
        %v4380 = vsub.f32 %v4188, %v3996
        %v4381 = vsub.f32 %v4189, %v3997
        %v4382 = vsub.f32 %v4190, %v3998
        %v4383 = vsub.f32 %v4191, %v3999
        %v4384 = vsub.f32 %v4192, %v4000
        %v4385 = vsub.f32 %v4193, %v4001
        %v4386 = vsub.f32 %v4194, %v4002
        %v4387 = vsub.f32 %v4195, %v4003
        %v4388 = vsub.f32 %v4196, %v4004
        %v4389 = vsub.f32 %v4197, %v4005
        %v4390 = vsub.f32 %v4198, %v4006
        %v4391 = vsub.f32 %v4199, %v4007
        %v4392 = vsub.f32 %v4200, %v4008
        %v4393 = vsub.f32 %v4201, %v4009
        %v4394 = vsub.f32 %v4202, %v4010
        %v4395 = vsub.f32 %v4203, %v4011
        %v4396 = vsub.f32 %v4204, %v4012
        %v4397 = vsub.f32 %v4205, %v4013
        %v4398 = vsub.f32 %v4206, %v4014
        %v4399 = vsub.f32 %v4207, %v4015
        %v4400 = vsub.f32 %v4208, %v4016
        %v4401 = vsub.f32 %v4209, %v4017
        %v4402 = vsub.f32 %v4210, %v4018
        %v4403 = vsub.f32 %v4211, %v4019
        %v4404 = vsub.f32 %v4212, %v4020
        %v4405 = vsub.f32 %v4213, %v4021
        %v4406 = vsub.f32 %v4214, %v4022
        %v4407 = vsub.f32 %v4215, %v4023
        %v4408 = vsub.f32 %v4216, %v4024
        %v4409 = vsub.f32 %v4217, %v4025
        %v4410 = vsub.f32 %v4218, %v4026
        %v4411 = vsub.f32 %v4219, %v4027
        %v4412 = vsub.f32 %v4220, %v4028
        %v4413 = vsub.f32 %v4221, %v4029
        %v4414 = vsub.f32 %v4222, %v4030
        %v4415 = vsub.f32 %v4223, %v4031
        %v4416 = vsub.f32 %v4224, %v4032
        %v4417 = vmul.f32 %v3841, %v4225
        %v4418 = vmul.f32 %v3842, %v4226
        %v4419 = vmul.f32 %v3843, %v4227
        %v4420 = vmul.f32 %v3844, %v4228
        %v4421 = vmul.f32 %v3845, %v4229
        %v4422 = vmul.f32 %v3846, %v4230
        %v4423 = vmul.f32 %v3847, %v4231
        %v4424 = vmul.f32 %v3848, %v4232
        %v4425 = vmul.f32 %v3849, %v4233
        %v4426 = vmul.f32 %v3850, %v4234
        %v4427 = vmul.f32 %v3851, %v4235
        %v4428 = vmul.f32 %v3852, %v4236
        %v4429 = vmul.f32 %v3853, %v4237
        %v4430 = vmul.f32 %v3854, %v4238
        %v4431 = vmul.f32 %v3855, %v4239
        %v4432 = vmul.f32 %v3856, %v4240
        %v4433 = vmul.f32 %v3857, %v4241
        %v4434 = vmul.f32 %v3858, %v4242
        %v4435 = vmul.f32 %v3859, %v4243
        %v4436 = vmul.f32 %v3860, %v4244
        %v4437 = vmul.f32 %v3861, %v4245
        %v4438 = vmul.f32 %v3862, %v4246
        %v4439 = vmul.f32 %v3863, %v4247
        %v4440 = vmul.f32 %v3864, %v4248
        %v4441 = vmul.f32 %v3865, %v4249
        %v4442 = vmul.f32 %v3866, %v4250
        %v4443 = vmul.f32 %v3867, %v4251
        %v4444 = vmul.f32 %v3868, %v4252
        %v4445 = vmul.f32 %v3869, %v4253
        %v4446 = vmul.f32 %v3870, %v4254
        %v4447 = vmul.f32 %v3871, %v4255
        %v4448 = vmul.f32 %v3872, %v4256
        %v4449 = vmul.f32 %v3873, %v4257
        %v4450 = vmul.f32 %v3874, %v4258
        %v4451 = vmul.f32 %v3875, %v4259
        %v4452 = vmul.f32 %v3876, %v4260
        %v4453 = vmul.f32 %v3877, %v4261
        %v4454 = vmul.f32 %v3878, %v4262
        %v4455 = vmul.f32 %v3879, %v4263
        %v4456 = vmul.f32 %v3880, %v4264
        %v4457 = vmul.f32 %v3881, %v4265
        %v4458 = vmul.f32 %v3882, %v4266
        %v4459 = vmul.f32 %v3883, %v4267
        %v4460 = vmul.f32 %v3884, %v4268
        %v4461 = vmul.f32 %v3885, %v4269
        %v4462 = vmul.f32 %v3886, %v4270
        %v4463 = vmul.f32 %v3887, %v4271
        %v4464 = vmul.f32 %v3888, %v4272
        %v4465 = vmul.f32 %v3889, %v4273
        %v4466 = vmul.f32 %v3890, %v4274
        %v4467 = vmul.f32 %v3891, %v4275
        %v4468 = vmul.f32 %v3892, %v4276
        %v4469 = vmul.f32 %v3893, %v4277
        %v4470 = vmul.f32 %v3894, %v4278
        %v4471 = vmul.f32 %v3895, %v4279
        %v4472 = vmul.f32 %v3896, %v4280
        %v4473 = vmul.f32 %v3897, %v4281
        %v4474 = vmul.f32 %v3898, %v4282
        %v4475 = vmul.f32 %v3899, %v4283
        %v4476 = vmul.f32 %v3900, %v4284
        %v4477 = vmul.f32 %v3901, %v4285
        %v4478 = vmul.f32 %v3902, %v4286
        %v4479 = vmul.f32 %v3903, %v4287
        %v4480 = vmul.f32 %v3904, %v4288
        %v4481 = vmul.f32 %v3905, %v4289
        %v4482 = vmul.f32 %v3906, %v4290
        %v4483 = vmul.f32 %v3907, %v4291
        %v4484 = vmul.f32 %v3908, %v4292
        %v4485 = vmul.f32 %v3909, %v4293
        %v4486 = vmul.f32 %v3910, %v4294
        %v4487 = vmul.f32 %v3911, %v4295
        %v4488 = vmul.f32 %v3912, %v4296
        %v4489 = vmul.f32 %v3913, %v4297
        %v4490 = vmul.f32 %v3914, %v4298
        %v4491 = vmul.f32 %v3915, %v4299
        %v4492 = vmul.f32 %v3916, %v4300
        %v4493 = vmul.f32 %v3917, %v4301
        %v4494 = vmul.f32 %v3918, %v4302
        %v4495 = vmul.f32 %v3919, %v4303
        %v4496 = vmul.f32 %v3920, %v4304
        %v4497 = vmul.f32 %v3921, %v4305
        %v4498 = vmul.f32 %v3922, %v4306
        %v4499 = vmul.f32 %v3923, %v4307
        %v4500 = vmul.f32 %v3924, %v4308
        %v4501 = vmul.f32 %v3925, %v4309
        %v4502 = vmul.f32 %v3926, %v4310
        %v4503 = vmul.f32 %v3927, %v4311
        %v4504 = vmul.f32 %v3928, %v4312
        %v4505 = vmul.f32 %v3929, %v4313
        %v4506 = vmul.f32 %v3930, %v4314
        %v4507 = vmul.f32 %v3931, %v4315
        %v4508 = vmul.f32 %v3932, %v4316
        %v4509 = vmul.f32 %v3933, %v4317
        %v4510 = vmul.f32 %v3934, %v4318
        %v4511 = vmul.f32 %v3935, %v4319
        %v4512 = vmul.f32 %v3936, %v4320
        %v4513 = vmul.f32 %v3937, %v4321
        %v4514 = vmul.f32 %v3938, %v4322
        %v4515 = vmul.f32 %v3939, %v4323
        %v4516 = vmul.f32 %v3940, %v4324
        %v4517 = vmul.f32 %v3941, %v4325
        %v4518 = vmul.f32 %v3942, %v4326
        %v4519 = vmul.f32 %v3943, %v4327
        %v4520 = vmul.f32 %v3944, %v4328
        %v4521 = vmul.f32 %v3945, %v4329
        %v4522 = vmul.f32 %v3946, %v4330
        %v4523 = vmul.f32 %v3947, %v4331
        %v4524 = vmul.f32 %v3948, %v4332
        %v4525 = vmul.f32 %v3949, %v4333
        %v4526 = vmul.f32 %v3950, %v4334
        %v4527 = vmul.f32 %v3951, %v4335
        %v4528 = vmul.f32 %v3952, %v4336
        %v4529 = vmul.f32 %v3953, %v4337
        %v4530 = vmul.f32 %v3954, %v4338
        %v4531 = vmul.f32 %v3955, %v4339
        %v4532 = vmul.f32 %v3956, %v4340
        %v4533 = vmul.f32 %v3957, %v4341
        %v4534 = vmul.f32 %v3958, %v4342
        %v4535 = vmul.f32 %v3959, %v4343
        %v4536 = vmul.f32 %v3960, %v4344
        %v4537 = vmul.f32 %v3961, %v4345
        %v4538 = vmul.f32 %v3962, %v4346
        %v4539 = vmul.f32 %v3963, %v4347
        %v4540 = vmul.f32 %v3964, %v4348
        %v4541 = vmul.f32 %v3965, %v4349
        %v4542 = vmul.f32 %v3966, %v4350
        %v4543 = vmul.f32 %v3967, %v4351
        %v4544 = vmul.f32 %v3968, %v4352
        %v4545 = vmul.f32 %v3969, %v4353
        %v4546 = vmul.f32 %v3970, %v4354
        %v4547 = vmul.f32 %v3971, %v4355
        %v4548 = vmul.f32 %v3972, %v4356
        %v4549 = vmul.f32 %v3973, %v4357
        %v4550 = vmul.f32 %v3974, %v4358
        %v4551 = vmul.f32 %v3975, %v4359
        %v4552 = vmul.f32 %v3976, %v4360
        %v4553 = vmul.f32 %v3977, %v4361
        %v4554 = vmul.f32 %v3978, %v4362
        %v4555 = vmul.f32 %v3979, %v4363
        %v4556 = vmul.f32 %v3980, %v4364
        %v4557 = vmul.f32 %v3981, %v4365
        %v4558 = vmul.f32 %v3982, %v4366
        %v4559 = vmul.f32 %v3983, %v4367
        %v4560 = vmul.f32 %v3984, %v4368
        %v4561 = vmul.f32 %v3985, %v4369
        %v4562 = vmul.f32 %v3986, %v4370
        %v4563 = vmul.f32 %v3987, %v4371
        %v4564 = vmul.f32 %v3988, %v4372
        %v4565 = vmul.f32 %v3989, %v4373
        %v4566 = vmul.f32 %v3990, %v4374
        %v4567 = vmul.f32 %v3991, %v4375
        %v4568 = vmul.f32 %v3992, %v4376
        %v4569 = vmul.f32 %v3993, %v4377
        %v4570 = vmul.f32 %v3994, %v4378
        %v4571 = vmul.f32 %v3995, %v4379
        %v4572 = vmul.f32 %v3996, %v4380
        %v4573 = vmul.f32 %v3997, %v4381
        %v4574 = vmul.f32 %v3998, %v4382
        %v4575 = vmul.f32 %v3999, %v4383
        %v4576 = vmul.f32 %v4000, %v4384
        %v4577 = vmul.f32 %v4001, %v4385
        %v4578 = vmul.f32 %v4002, %v4386
        %v4579 = vmul.f32 %v4003, %v4387
        %v4580 = vmul.f32 %v4004, %v4388
        %v4581 = vmul.f32 %v4005, %v4389
        %v4582 = vmul.f32 %v4006, %v4390
        %v4583 = vmul.f32 %v4007, %v4391
        %v4584 = vmul.f32 %v4008, %v4392
        %v4585 = vmul.f32 %v4009, %v4393
        %v4586 = vmul.f32 %v4010, %v4394
        %v4587 = vmul.f32 %v4011, %v4395
        %v4588 = vmul.f32 %v4012, %v4396
        %v4589 = vmul.f32 %v4013, %v4397
        %v4590 = vmul.f32 %v4014, %v4398
        %v4591 = vmul.f32 %v4015, %v4399
        %v4592 = vmul.f32 %v4016, %v4400
        %v4593 = vmul.f32 %v4017, %v4401
        %v4594 = vmul.f32 %v4018, %v4402
        %v4595 = vmul.f32 %v4019, %v4403
        %v4596 = vmul.f32 %v4020, %v4404
        %v4597 = vmul.f32 %v4021, %v4405
        %v4598 = vmul.f32 %v4022, %v4406
        %v4599 = vmul.f32 %v4023, %v4407
        %v4600 = vmul.f32 %v4024, %v4408
        %v4601 = vmul.f32 %v4025, %v4409
        %v4602 = vmul.f32 %v4026, %v4410
        %v4603 = vmul.f32 %v4027, %v4411
        %v4604 = vmul.f32 %v4028, %v4412
        %v4605 = vmul.f32 %v4029, %v4413
        %v4606 = vmul.f32 %v4030, %v4414
        %v4607 = vmul.f32 %v4031, %v4415
        %v4608 = vmul.f32 %v4032, %v4416
        %4609 = vadd.xlane.f32.xlu0 %v4417
        %v4610 = vpop.xlane.xlu0 %4609
        %4611 = vadd.xlane.f32.xlu0 %v4418
        %v4612 = vpop.xlane.xlu0 %4611
        %4613 = vadd.xlane.f32.xlu0 %v4419
        %v4614 = vpop.xlane.xlu0 %4613
        %4615 = vadd.xlane.f32.xlu0 %v4420
        %v4616 = vpop.xlane.xlu0 %4615
        %4617 = vadd.xlane.f32.xlu0 %v4421
        %v4618 = vpop.xlane.xlu0 %4617
        %4619 = vadd.xlane.f32.xlu0 %v4422
        %v4620 = vpop.xlane.xlu0 %4619
        %4621 = vadd.xlane.f32.xlu0 %v4423
        %v4622 = vpop.xlane.xlu0 %4621
        %4623 = vadd.xlane.f32.xlu0 %v4424
        %v4624 = vpop.xlane.xlu0 %4623
        %4625 = vadd.xlane.f32.xlu0 %v4425
        %v4626 = vpop.xlane.xlu0 %4625
        %4627 = vadd.xlane.f32.xlu0 %v4426
        %v4628 = vpop.xlane.xlu0 %4627
        %4629 = vadd.xlane.f32.xlu0 %v4427
        %v4630 = vpop.xlane.xlu0 %4629
        %4631 = vadd.xlane.f32.xlu0 %v4428
        %v4632 = vpop.xlane.xlu0 %4631
        %4633 = vadd.xlane.f32.xlu0 %v4429
        %v4634 = vpop.xlane.xlu0 %4633
        %4635 = vadd.xlane.f32.xlu0 %v4430
        %v4636 = vpop.xlane.xlu0 %4635
        %4637 = vadd.xlane.f32.xlu0 %v4431
        %v4638 = vpop.xlane.xlu0 %4637
        %4639 = vadd.xlane.f32.xlu0 %v4432
        %v4640 = vpop.xlane.xlu0 %4639
        %4641 = vadd.xlane.f32.xlu0 %v4433
        %v4642 = vpop.xlane.xlu0 %4641
        %4643 = vadd.xlane.f32.xlu0 %v4434
        %v4644 = vpop.xlane.xlu0 %4643
        %4645 = vadd.xlane.f32.xlu0 %v4435
        %v4646 = vpop.xlane.xlu0 %4645
        %4647 = vadd.xlane.f32.xlu0 %v4436
        %v4648 = vpop.xlane.xlu0 %4647
        %4649 = vadd.xlane.f32.xlu0 %v4437
        %v4650 = vpop.xlane.xlu0 %4649
        %4651 = vadd.xlane.f32.xlu0 %v4438
        %v4652 = vpop.xlane.xlu0 %4651
        %4653 = vadd.xlane.f32.xlu0 %v4439
        %v4654 = vpop.xlane.xlu0 %4653
        %4655 = vadd.xlane.f32.xlu0 %v4440
        %v4656 = vpop.xlane.xlu0 %4655
        %4657 = vadd.xlane.f32.xlu0 %v4441
        %v4658 = vpop.xlane.xlu0 %4657
        %4659 = vadd.xlane.f32.xlu0 %v4442
        %v4660 = vpop.xlane.xlu0 %4659
        %4661 = vadd.xlane.f32.xlu0 %v4443
        %v4662 = vpop.xlane.xlu0 %4661
        %4663 = vadd.xlane.f32.xlu0 %v4444
        %v4664 = vpop.xlane.xlu0 %4663
        %4665 = vadd.xlane.f32.xlu0 %v4445
        %v4666 = vpop.xlane.xlu0 %4665
        %4667 = vadd.xlane.f32.xlu0 %v4446
        %v4668 = vpop.xlane.xlu0 %4667
        %4669 = vadd.xlane.f32.xlu0 %v4447
        %v4670 = vpop.xlane.xlu0 %4669
        %4671 = vadd.xlane.f32.xlu0 %v4448
        %v4672 = vpop.xlane.xlu0 %4671
        %4673 = vadd.xlane.f32.xlu0 %v4449
        %v4674 = vpop.xlane.xlu0 %4673
        %4675 = vadd.xlane.f32.xlu0 %v4450
        %v4676 = vpop.xlane.xlu0 %4675
        %4677 = vadd.xlane.f32.xlu0 %v4451
        %v4678 = vpop.xlane.xlu0 %4677
        %4679 = vadd.xlane.f32.xlu0 %v4452
        %v4680 = vpop.xlane.xlu0 %4679
        %4681 = vadd.xlane.f32.xlu0 %v4453
        %v4682 = vpop.xlane.xlu0 %4681
        %4683 = vadd.xlane.f32.xlu0 %v4454
        %v4684 = vpop.xlane.xlu0 %4683
        %4685 = vadd.xlane.f32.xlu0 %v4455
        %v4686 = vpop.xlane.xlu0 %4685
        %4687 = vadd.xlane.f32.xlu0 %v4456
        %v4688 = vpop.xlane.xlu0 %4687
        %4689 = vadd.xlane.f32.xlu0 %v4457
        %v4690 = vpop.xlane.xlu0 %4689
        %4691 = vadd.xlane.f32.xlu0 %v4458
        %v4692 = vpop.xlane.xlu0 %4691
        %4693 = vadd.xlane.f32.xlu0 %v4459
        %v4694 = vpop.xlane.xlu0 %4693
        %4695 = vadd.xlane.f32.xlu0 %v4460
        %v4696 = vpop.xlane.xlu0 %4695
        %4697 = vadd.xlane.f32.xlu0 %v4461
        %v4698 = vpop.xlane.xlu0 %4697
        %4699 = vadd.xlane.f32.xlu0 %v4462
        %v4700 = vpop.xlane.xlu0 %4699
        %4701 = vadd.xlane.f32.xlu0 %v4463
        %v4702 = vpop.xlane.xlu0 %4701
        %4703 = vadd.xlane.f32.xlu0 %v4464
        %v4704 = vpop.xlane.xlu0 %4703
        %4705 = vadd.xlane.f32.xlu0 %v4465
        %v4706 = vpop.xlane.xlu0 %4705
        %4707 = vadd.xlane.f32.xlu0 %v4466
        %v4708 = vpop.xlane.xlu0 %4707
        %4709 = vadd.xlane.f32.xlu0 %v4467
        %v4710 = vpop.xlane.xlu0 %4709
        %4711 = vadd.xlane.f32.xlu0 %v4468
        %v4712 = vpop.xlane.xlu0 %4711
        %4713 = vadd.xlane.f32.xlu0 %v4469
        %v4714 = vpop.xlane.xlu0 %4713
        %4715 = vadd.xlane.f32.xlu0 %v4470
        %v4716 = vpop.xlane.xlu0 %4715
        %4717 = vadd.xlane.f32.xlu0 %v4471
        %v4718 = vpop.xlane.xlu0 %4717
        %4719 = vadd.xlane.f32.xlu0 %v4472
        %v4720 = vpop.xlane.xlu0 %4719
        %4721 = vadd.xlane.f32.xlu0 %v4473
        %v4722 = vpop.xlane.xlu0 %4721
        %4723 = vadd.xlane.f32.xlu0 %v4474
        %v4724 = vpop.xlane.xlu0 %4723
        %4725 = vadd.xlane.f32.xlu0 %v4475
        %v4726 = vpop.xlane.xlu0 %4725
        %4727 = vadd.xlane.f32.xlu0 %v4476
        %v4728 = vpop.xlane.xlu0 %4727
        %4729 = vadd.xlane.f32.xlu0 %v4477
        %v4730 = vpop.xlane.xlu0 %4729
        %4731 = vadd.xlane.f32.xlu0 %v4478
        %v4732 = vpop.xlane.xlu0 %4731
        %4733 = vadd.xlane.f32.xlu0 %v4479
        %v4734 = vpop.xlane.xlu0 %4733
        %4735 = vadd.xlane.f32.xlu0 %v4480
        %v4736 = vpop.xlane.xlu0 %4735
        %4737 = vadd.xlane.f32.xlu0 %v4481
        %v4738 = vpop.xlane.xlu0 %4737
        %4739 = vadd.xlane.f32.xlu0 %v4482
        %v4740 = vpop.xlane.xlu0 %4739
        %4741 = vadd.xlane.f32.xlu0 %v4483
        %v4742 = vpop.xlane.xlu0 %4741
        %4743 = vadd.xlane.f32.xlu0 %v4484
        %v4744 = vpop.xlane.xlu0 %4743
        %4745 = vadd.xlane.f32.xlu0 %v4485
        %v4746 = vpop.xlane.xlu0 %4745
        %4747 = vadd.xlane.f32.xlu0 %v4486
        %v4748 = vpop.xlane.xlu0 %4747
        %4749 = vadd.xlane.f32.xlu0 %v4487
        %v4750 = vpop.xlane.xlu0 %4749
        %4751 = vadd.xlane.f32.xlu0 %v4488
        %v4752 = vpop.xlane.xlu0 %4751
        %4753 = vadd.xlane.f32.xlu0 %v4489
        %v4754 = vpop.xlane.xlu0 %4753
        %4755 = vadd.xlane.f32.xlu0 %v4490
        %v4756 = vpop.xlane.xlu0 %4755
        %4757 = vadd.xlane.f32.xlu0 %v4491
        %v4758 = vpop.xlane.xlu0 %4757
        %4759 = vadd.xlane.f32.xlu0 %v4492
        %v4760 = vpop.xlane.xlu0 %4759
        %4761 = vadd.xlane.f32.xlu0 %v4493
        %v4762 = vpop.xlane.xlu0 %4761
        %4763 = vadd.xlane.f32.xlu0 %v4494
        %v4764 = vpop.xlane.xlu0 %4763
        %4765 = vadd.xlane.f32.xlu0 %v4495
        %v4766 = vpop.xlane.xlu0 %4765
        %4767 = vadd.xlane.f32.xlu0 %v4496
        %v4768 = vpop.xlane.xlu0 %4767
        %4769 = vadd.xlane.f32.xlu0 %v4497
        %v4770 = vpop.xlane.xlu0 %4769
        %4771 = vadd.xlane.f32.xlu0 %v4498
        %v4772 = vpop.xlane.xlu0 %4771
        %4773 = vadd.xlane.f32.xlu0 %v4499
        %v4774 = vpop.xlane.xlu0 %4773
        %4775 = vadd.xlane.f32.xlu0 %v4500
        %v4776 = vpop.xlane.xlu0 %4775
        %4777 = vadd.xlane.f32.xlu0 %v4501
        %v4778 = vpop.xlane.xlu0 %4777
        %4779 = vadd.xlane.f32.xlu0 %v4502
        %v4780 = vpop.xlane.xlu0 %4779
        %4781 = vadd.xlane.f32.xlu0 %v4503
        %v4782 = vpop.xlane.xlu0 %4781
        %4783 = vadd.xlane.f32.xlu0 %v4504
        %v4784 = vpop.xlane.xlu0 %4783
        %4785 = vadd.xlane.f32.xlu0 %v4505
        %v4786 = vpop.xlane.xlu0 %4785
        %4787 = vadd.xlane.f32.xlu0 %v4506
        %v4788 = vpop.xlane.xlu0 %4787
        %4789 = vadd.xlane.f32.xlu0 %v4507
        %v4790 = vpop.xlane.xlu0 %4789
        %4791 = vadd.xlane.f32.xlu0 %v4508
        %v4792 = vpop.xlane.xlu0 %4791
        %4793 = vadd.xlane.f32.xlu0 %v4509
        %v4794 = vpop.xlane.xlu0 %4793
        %4795 = vadd.xlane.f32.xlu0 %v4510
        %v4796 = vpop.xlane.xlu0 %4795
        %4797 = vadd.xlane.f32.xlu0 %v4511
        %v4798 = vpop.xlane.xlu0 %4797
        %4799 = vadd.xlane.f32.xlu0 %v4512
        %v4800 = vpop.xlane.xlu0 %4799
        %4801 = vadd.xlane.f32.xlu0 %v4513
        %v4802 = vpop.xlane.xlu0 %4801
        %4803 = vadd.xlane.f32.xlu0 %v4514
        %v4804 = vpop.xlane.xlu0 %4803
        %4805 = vadd.xlane.f32.xlu0 %v4515
        %v4806 = vpop.xlane.xlu0 %4805
        %4807 = vadd.xlane.f32.xlu0 %v4516
        %v4808 = vpop.xlane.xlu0 %4807
        %4809 = vadd.xlane.f32.xlu0 %v4517
        %v4810 = vpop.xlane.xlu0 %4809
        %4811 = vadd.xlane.f32.xlu0 %v4518
        %v4812 = vpop.xlane.xlu0 %4811
        %4813 = vadd.xlane.f32.xlu0 %v4519
        %v4814 = vpop.xlane.xlu0 %4813
        %4815 = vadd.xlane.f32.xlu0 %v4520
        %v4816 = vpop.xlane.xlu0 %4815
        %4817 = vadd.xlane.f32.xlu0 %v4521
        %v4818 = vpop.xlane.xlu0 %4817
        %4819 = vadd.xlane.f32.xlu0 %v4522
        %v4820 = vpop.xlane.xlu0 %4819
        %4821 = vadd.xlane.f32.xlu0 %v4523
        %v4822 = vpop.xlane.xlu0 %4821
        %4823 = vadd.xlane.f32.xlu0 %v4524
        %v4824 = vpop.xlane.xlu0 %4823
        %4825 = vadd.xlane.f32.xlu0 %v4525
        %v4826 = vpop.xlane.xlu0 %4825
        %4827 = vadd.xlane.f32.xlu0 %v4526
        %v4828 = vpop.xlane.xlu0 %4827
        %4829 = vadd.xlane.f32.xlu0 %v4527
        %v4830 = vpop.xlane.xlu0 %4829
        %4831 = vadd.xlane.f32.xlu0 %v4528
        %v4832 = vpop.xlane.xlu0 %4831
        %4833 = vadd.xlane.f32.xlu0 %v4529
        %v4834 = vpop.xlane.xlu0 %4833
        %4835 = vadd.xlane.f32.xlu0 %v4530
        %v4836 = vpop.xlane.xlu0 %4835
        %4837 = vadd.xlane.f32.xlu0 %v4531
        %v4838 = vpop.xlane.xlu0 %4837
        %4839 = vadd.xlane.f32.xlu0 %v4532
        %v4840 = vpop.xlane.xlu0 %4839
        %4841 = vadd.xlane.f32.xlu0 %v4533
        %v4842 = vpop.xlane.xlu0 %4841
        %4843 = vadd.xlane.f32.xlu0 %v4534
        %v4844 = vpop.xlane.xlu0 %4843
        %4845 = vadd.xlane.f32.xlu0 %v4535
        %v4846 = vpop.xlane.xlu0 %4845
        %4847 = vadd.xlane.f32.xlu0 %v4536
        %v4848 = vpop.xlane.xlu0 %4847
        %4849 = vadd.xlane.f32.xlu0 %v4537
        %v4850 = vpop.xlane.xlu0 %4849
        %4851 = vadd.xlane.f32.xlu0 %v4538
        %v4852 = vpop.xlane.xlu0 %4851
        %4853 = vadd.xlane.f32.xlu0 %v4539
        %v4854 = vpop.xlane.xlu0 %4853
        %4855 = vadd.xlane.f32.xlu0 %v4540
        %v4856 = vpop.xlane.xlu0 %4855
        %4857 = vadd.xlane.f32.xlu0 %v4541
        %v4858 = vpop.xlane.xlu0 %4857
        %4859 = vadd.xlane.f32.xlu0 %v4542
        %v4860 = vpop.xlane.xlu0 %4859
        %4861 = vadd.xlane.f32.xlu0 %v4543
        %v4862 = vpop.xlane.xlu0 %4861
        %4863 = vadd.xlane.f32.xlu0 %v4544
        %v4864 = vpop.xlane.xlu0 %4863
        %4865 = vadd.xlane.f32.xlu0 %v4545
        %v4866 = vpop.xlane.xlu0 %4865
        %4867 = vadd.xlane.f32.xlu0 %v4546
        %v4868 = vpop.xlane.xlu0 %4867
        %4869 = vadd.xlane.f32.xlu0 %v4547
        %v4870 = vpop.xlane.xlu0 %4869
        %4871 = vadd.xlane.f32.xlu0 %v4548
        %v4872 = vpop.xlane.xlu0 %4871
        %4873 = vadd.xlane.f32.xlu0 %v4549
        %v4874 = vpop.xlane.xlu0 %4873
        %4875 = vadd.xlane.f32.xlu0 %v4550
        %v4876 = vpop.xlane.xlu0 %4875
        %4877 = vadd.xlane.f32.xlu0 %v4551
        %v4878 = vpop.xlane.xlu0 %4877
        %4879 = vadd.xlane.f32.xlu0 %v4552
        %v4880 = vpop.xlane.xlu0 %4879
        %4881 = vadd.xlane.f32.xlu0 %v4553
        %v4882 = vpop.xlane.xlu0 %4881
        %4883 = vadd.xlane.f32.xlu0 %v4554
        %v4884 = vpop.xlane.xlu0 %4883
        %4885 = vadd.xlane.f32.xlu0 %v4555
        %v4886 = vpop.xlane.xlu0 %4885
        %4887 = vadd.xlane.f32.xlu0 %v4556
        %v4888 = vpop.xlane.xlu0 %4887
        %4889 = vadd.xlane.f32.xlu0 %v4557
        %v4890 = vpop.xlane.xlu0 %4889
        %4891 = vadd.xlane.f32.xlu0 %v4558
        %v4892 = vpop.xlane.xlu0 %4891
        %4893 = vadd.xlane.f32.xlu0 %v4559
        %v4894 = vpop.xlane.xlu0 %4893
        %4895 = vadd.xlane.f32.xlu0 %v4560
        %v4896 = vpop.xlane.xlu0 %4895
        %4897 = vadd.xlane.f32.xlu0 %v4561
        %v4898 = vpop.xlane.xlu0 %4897
        %4899 = vadd.xlane.f32.xlu0 %v4562
        %v4900 = vpop.xlane.xlu0 %4899
        %4901 = vadd.xlane.f32.xlu0 %v4563
        %v4902 = vpop.xlane.xlu0 %4901
        %4903 = vadd.xlane.f32.xlu0 %v4564
        %v4904 = vpop.xlane.xlu0 %4903
        %4905 = vadd.xlane.f32.xlu0 %v4565
        %v4906 = vpop.xlane.xlu0 %4905
        %4907 = vadd.xlane.f32.xlu0 %v4566
        %v4908 = vpop.xlane.xlu0 %4907
        %4909 = vadd.xlane.f32.xlu0 %v4567
        %v4910 = vpop.xlane.xlu0 %4909
        %4911 = vadd.xlane.f32.xlu0 %v4568
        %v4912 = vpop.xlane.xlu0 %4911
        %4913 = vadd.xlane.f32.xlu0 %v4569
        %v4914 = vpop.xlane.xlu0 %4913
        %4915 = vadd.xlane.f32.xlu0 %v4570
        %v4916 = vpop.xlane.xlu0 %4915
        %4917 = vadd.xlane.f32.xlu0 %v4571
        %v4918 = vpop.xlane.xlu0 %4917
        %4919 = vadd.xlane.f32.xlu0 %v4572
        %v4920 = vpop.xlane.xlu0 %4919
        %4921 = vadd.xlane.f32.xlu0 %v4573
        %v4922 = vpop.xlane.xlu0 %4921
        %4923 = vadd.xlane.f32.xlu0 %v4574
        %v4924 = vpop.xlane.xlu0 %4923
        %4925 = vadd.xlane.f32.xlu0 %v4575
        %v4926 = vpop.xlane.xlu0 %4925
        %4927 = vadd.xlane.f32.xlu0 %v4576
        %v4928 = vpop.xlane.xlu0 %4927
        %4929 = vadd.xlane.f32.xlu0 %v4577
        %v4930 = vpop.xlane.xlu0 %4929
        %4931 = vadd.xlane.f32.xlu0 %v4578
        %v4932 = vpop.xlane.xlu0 %4931
        %4933 = vadd.xlane.f32.xlu0 %v4579
        %v4934 = vpop.xlane.xlu0 %4933
        %4935 = vadd.xlane.f32.xlu0 %v4580
        %v4936 = vpop.xlane.xlu0 %4935
        %4937 = vadd.xlane.f32.xlu0 %v4581
        %v4938 = vpop.xlane.xlu0 %4937
        %4939 = vadd.xlane.f32.xlu0 %v4582
        %v4940 = vpop.xlane.xlu0 %4939
        %4941 = vadd.xlane.f32.xlu0 %v4583
        %v4942 = vpop.xlane.xlu0 %4941
        %4943 = vadd.xlane.f32.xlu0 %v4584
        %v4944 = vpop.xlane.xlu0 %4943
        %4945 = vadd.xlane.f32.xlu0 %v4585
        %v4946 = vpop.xlane.xlu0 %4945
        %4947 = vadd.xlane.f32.xlu0 %v4586
        %v4948 = vpop.xlane.xlu0 %4947
        %4949 = vadd.xlane.f32.xlu0 %v4587
        %v4950 = vpop.xlane.xlu0 %4949
        %4951 = vadd.xlane.f32.xlu0 %v4588
        %v4952 = vpop.xlane.xlu0 %4951
        %4953 = vadd.xlane.f32.xlu0 %v4589
        %v4954 = vpop.xlane.xlu0 %4953
        %4955 = vadd.xlane.f32.xlu0 %v4590
        %v4956 = vpop.xlane.xlu0 %4955
        %4957 = vadd.xlane.f32.xlu0 %v4591
        %v4958 = vpop.xlane.xlu0 %4957
        %4959 = vadd.xlane.f32.xlu0 %v4592
        %v4960 = vpop.xlane.xlu0 %4959
        %4961 = vadd.xlane.f32.xlu0 %v4593
        %v4962 = vpop.xlane.xlu0 %4961
        %4963 = vadd.xlane.f32.xlu0 %v4594
        %v4964 = vpop.xlane.xlu0 %4963
        %4965 = vadd.xlane.f32.xlu0 %v4595
        %v4966 = vpop.xlane.xlu0 %4965
        %4967 = vadd.xlane.f32.xlu0 %v4596
        %v4968 = vpop.xlane.xlu0 %4967
        %4969 = vadd.xlane.f32.xlu0 %v4597
        %v4970 = vpop.xlane.xlu0 %4969
        %4971 = vadd.xlane.f32.xlu0 %v4598
        %v4972 = vpop.xlane.xlu0 %4971
        %4973 = vadd.xlane.f32.xlu0 %v4599
        %v4974 = vpop.xlane.xlu0 %4973
        %4975 = vadd.xlane.f32.xlu0 %v4600
        %v4976 = vpop.xlane.xlu0 %4975
        %4977 = vadd.xlane.f32.xlu0 %v4601
        %v4978 = vpop.xlane.xlu0 %4977
        %4979 = vadd.xlane.f32.xlu0 %v4602
        %v4980 = vpop.xlane.xlu0 %4979
        %4981 = vadd.xlane.f32.xlu0 %v4603
        %v4982 = vpop.xlane.xlu0 %4981
        %4983 = vadd.xlane.f32.xlu0 %v4604
        %v4984 = vpop.xlane.xlu0 %4983
        %4985 = vadd.xlane.f32.xlu0 %v4605
        %v4986 = vpop.xlane.xlu0 %4985
        %4987 = vadd.xlane.f32.xlu0 %v4606
        %v4988 = vpop.xlane.xlu0 %4987
        %4989 = vadd.xlane.f32.xlu0 %v4607
        %v4990 = vpop.xlane.xlu0 %4989
        %4991 = vadd.xlane.f32.xlu0 %v4608
        %v4992 = vpop.xlane.xlu0 %4991
        %v5185 = vlaneseq
        %v5186 = vshrl.u32 %v5185, 7
        %v5187 = vsub.s32 %v2061, %v5186
        %v5188 = vrot.slane %v4610, %v5187
        %v5189 = vlaneseq
        %v5190 = vshrl.u32 %v5189, 7
        %v5191 = vsub.s32 %v2066, %v5190
        %v5192 = vrot.slane %v4612, %v5191
        %v5193 = vsel %vm2071, %v5192, %v5188
        %v5194 = vlaneseq
        %v5195 = vshrl.u32 %v5194, 7
        %v5196 = vsub.s32 %v2073, %v5195
        %v5197 = vrot.slane %v4614, %v5196
        %v5198 = vsel %vm2078, %v5197, %v5193
        %v5199 = vlaneseq
        %v5200 = vshrl.u32 %v5199, 7
        %v5201 = vsub.s32 %v2080, %v5200
        %v5202 = vrot.slane %v4616, %v5201
        %v5203 = vsel %vm2085, %v5202, %v5198
        %v5204 = vlaneseq
        %v5205 = vshrl.u32 %v5204, 7
        %v5206 = vsub.s32 %v2087, %v5205
        %v5207 = vrot.slane %v4618, %v5206
        %v5208 = vsel %vm2092, %v5207, %v5203
        %v5209 = vlaneseq
        %v5210 = vshrl.u32 %v5209, 7
        %v5211 = vsub.s32 %v2094, %v5210
        %v5212 = vrot.slane %v4620, %v5211
        %v5213 = vsel %vm2099, %v5212, %v5208
        %v5214 = vlaneseq
        %v5215 = vshrl.u32 %v5214, 7
        %v5216 = vsub.s32 %v2101, %v5215
        %v5217 = vrot.slane %v4622, %v5216
        %v5218 = vsel %vm2106, %v5217, %v5213
        %v5219 = vlaneseq
        %v5220 = vshrl.u32 %v5219, 7
        %v5221 = vsub.s32 %v2108, %v5220
        %v5222 = vrot.slane %v4624, %v5221
        %v5223 = vsel %vm2113, %v5222, %v5218
        %v5224 = vlaneseq
        %v5225 = vshrl.u32 %v5224, 7
        %v5226 = vsub.s32 %v2115, %v5225
        %v5227 = vrot.slane %v4626, %v5226
        %v5228 = vsel %vm2120, %v5227, %v5223
        %v5229 = vlaneseq
        %v5230 = vshrl.u32 %v5229, 7
        %v5231 = vsub.s32 %v2122, %v5230
        %v5232 = vrot.slane %v4628, %v5231
        %v5233 = vsel %vm2127, %v5232, %v5228
        %v5234 = vlaneseq
        %v5235 = vshrl.u32 %v5234, 7
        %v5236 = vsub.s32 %v2129, %v5235
        %v5237 = vrot.slane %v4630, %v5236
        %v5238 = vsel %vm2134, %v5237, %v5233
        %v5239 = vlaneseq
        %v5240 = vshrl.u32 %v5239, 7
        %v5241 = vsub.s32 %v2136, %v5240
        %v5242 = vrot.slane %v4632, %v5241
        %v5243 = vsel %vm2141, %v5242, %v5238
        %v5244 = vlaneseq
        %v5245 = vshrl.u32 %v5244, 7
        %v5246 = vsub.s32 %v2143, %v5245
        %v5247 = vrot.slane %v4634, %v5246
        %v5248 = vsel %vm2148, %v5247, %v5243
        %v5249 = vlaneseq
        %v5250 = vshrl.u32 %v5249, 7
        %v5251 = vsub.s32 %v2150, %v5250
        %v5252 = vrot.slane %v4636, %v5251
        %v5253 = vsel %vm2155, %v5252, %v5248
        %v5254 = vlaneseq
        %v5255 = vshrl.u32 %v5254, 7
        %v5256 = vsub.s32 %v2157, %v5255
        %v5257 = vrot.slane %v4638, %v5256
        %v5258 = vsel %vm2162, %v5257, %v5253
        %v5259 = vlaneseq
        %v5260 = vshrl.u32 %v5259, 7
        %v5261 = vsub.s32 %v2164, %v5260
        %v5262 = vrot.slane %v4640, %v5261
        %v5263 = vsel %vm2169, %v5262, %v5258
        %v5264 = vlaneseq
        %v5265 = vshrl.u32 %v5264, 7
        %v5266 = vsub.s32 %v2061, %v5265
        %v5267 = vrot.slane %v4642, %v5266
        %v5268 = vlaneseq
        %v5269 = vshrl.u32 %v5268, 7
        %v5270 = vsub.s32 %v2066, %v5269
        %v5271 = vrot.slane %v4644, %v5270
        %v5272 = vsel %vm2071, %v5271, %v5267
        %v5273 = vlaneseq
        %v5274 = vshrl.u32 %v5273, 7
        %v5275 = vsub.s32 %v2073, %v5274
        %v5276 = vrot.slane %v4646, %v5275
        %v5277 = vsel %vm2078, %v5276, %v5272
        %v5278 = vlaneseq
        %v5279 = vshrl.u32 %v5278, 7
        %v5280 = vsub.s32 %v2080, %v5279
        %v5281 = vrot.slane %v4648, %v5280
        %v5282 = vsel %vm2085, %v5281, %v5277
        %v5283 = vlaneseq
        %v5284 = vshrl.u32 %v5283, 7
        %v5285 = vsub.s32 %v2087, %v5284
        %v5286 = vrot.slane %v4650, %v5285
        %v5287 = vsel %vm2092, %v5286, %v5282
        %v5288 = vlaneseq
        %v5289 = vshrl.u32 %v5288, 7
        %v5290 = vsub.s32 %v2094, %v5289
        %v5291 = vrot.slane %v4652, %v5290
        %v5292 = vsel %vm2099, %v5291, %v5287
        %v5293 = vlaneseq
        %v5294 = vshrl.u32 %v5293, 7
        %v5295 = vsub.s32 %v2101, %v5294
        %v5296 = vrot.slane %v4654, %v5295
        %v5297 = vsel %vm2106, %v5296, %v5292
        %v5298 = vlaneseq
        %v5299 = vshrl.u32 %v5298, 7
        %v5300 = vsub.s32 %v2108, %v5299
        %v5301 = vrot.slane %v4656, %v5300
        %v5302 = vsel %vm2113, %v5301, %v5297
        %v5303 = vlaneseq
        %v5304 = vshrl.u32 %v5303, 7
        %v5305 = vsub.s32 %v2115, %v5304
        %v5306 = vrot.slane %v4658, %v5305
        %v5307 = vsel %vm2120, %v5306, %v5302
        %v5308 = vlaneseq
        %v5309 = vshrl.u32 %v5308, 7
        %v5310 = vsub.s32 %v2122, %v5309
        %v5311 = vrot.slane %v4660, %v5310
        %v5312 = vsel %vm2127, %v5311, %v5307
        %v5313 = vlaneseq
        %v5314 = vshrl.u32 %v5313, 7
        %v5315 = vsub.s32 %v2129, %v5314
        %v5316 = vrot.slane %v4662, %v5315
        %v5317 = vsel %vm2134, %v5316, %v5312
        %v5318 = vlaneseq
        %v5319 = vshrl.u32 %v5318, 7
        %v5320 = vsub.s32 %v2136, %v5319
        %v5321 = vrot.slane %v4664, %v5320
        %v5322 = vsel %vm2141, %v5321, %v5317
        %v5323 = vlaneseq
        %v5324 = vshrl.u32 %v5323, 7
        %v5325 = vsub.s32 %v2143, %v5324
        %v5326 = vrot.slane %v4666, %v5325
        %v5327 = vsel %vm2148, %v5326, %v5322
        %v5328 = vlaneseq
        %v5329 = vshrl.u32 %v5328, 7
        %v5330 = vsub.s32 %v2150, %v5329
        %v5331 = vrot.slane %v4668, %v5330
        %v5332 = vsel %vm2155, %v5331, %v5327
        %v5333 = vlaneseq
        %v5334 = vshrl.u32 %v5333, 7
        %v5335 = vsub.s32 %v2157, %v5334
        %v5336 = vrot.slane %v4670, %v5335
        %v5337 = vsel %vm2162, %v5336, %v5332
        %v5338 = vlaneseq
        %v5339 = vshrl.u32 %v5338, 7
        %v5340 = vsub.s32 %v2164, %v5339
        %v5341 = vrot.slane %v4672, %v5340
        %v5342 = vsel %vm2169, %v5341, %v5337
        %v5343 = vlaneseq
        %v5344 = vshrl.u32 %v5343, 7
        %v5345 = vsub.s32 %v2061, %v5344
        %v5346 = vrot.slane %v4674, %v5345
        %v5347 = vlaneseq
        %v5348 = vshrl.u32 %v5347, 7
        %v5349 = vsub.s32 %v2066, %v5348
        %v5350 = vrot.slane %v4676, %v5349
        %v5351 = vsel %vm2071, %v5350, %v5346
        %v5352 = vlaneseq
        %v5353 = vshrl.u32 %v5352, 7
        %v5354 = vsub.s32 %v2073, %v5353
        %v5355 = vrot.slane %v4678, %v5354
        %v5356 = vsel %vm2078, %v5355, %v5351
        %v5357 = vlaneseq
        %v5358 = vshrl.u32 %v5357, 7
        %v5359 = vsub.s32 %v2080, %v5358
        %v5360 = vrot.slane %v4680, %v5359
        %v5361 = vsel %vm2085, %v5360, %v5356
        %v5362 = vlaneseq
        %v5363 = vshrl.u32 %v5362, 7
        %v5364 = vsub.s32 %v2087, %v5363
        %v5365 = vrot.slane %v4682, %v5364
        %v5366 = vsel %vm2092, %v5365, %v5361
        %v5367 = vlaneseq
        %v5368 = vshrl.u32 %v5367, 7
        %v5369 = vsub.s32 %v2094, %v5368
        %v5370 = vrot.slane %v4684, %v5369
        %v5371 = vsel %vm2099, %v5370, %v5366
        %v5372 = vlaneseq
        %v5373 = vshrl.u32 %v5372, 7
        %v5374 = vsub.s32 %v2101, %v5373
        %v5375 = vrot.slane %v4686, %v5374
        %v5376 = vsel %vm2106, %v5375, %v5371
        %v5377 = vlaneseq
        %v5378 = vshrl.u32 %v5377, 7
        %v5379 = vsub.s32 %v2108, %v5378
        %v5380 = vrot.slane %v4688, %v5379
        %v5381 = vsel %vm2113, %v5380, %v5376
        %v5382 = vlaneseq
        %v5383 = vshrl.u32 %v5382, 7
        %v5384 = vsub.s32 %v2115, %v5383
        %v5385 = vrot.slane %v4690, %v5384
        %v5386 = vsel %vm2120, %v5385, %v5381
        %v5387 = vlaneseq
        %v5388 = vshrl.u32 %v5387, 7
        %v5389 = vsub.s32 %v2122, %v5388
        %v5390 = vrot.slane %v4692, %v5389
        %v5391 = vsel %vm2127, %v5390, %v5386
        %v5392 = vlaneseq
        %v5393 = vshrl.u32 %v5392, 7
        %v5394 = vsub.s32 %v2129, %v5393
        %v5395 = vrot.slane %v4694, %v5394
        %v5396 = vsel %vm2134, %v5395, %v5391
        %v5397 = vlaneseq
        %v5398 = vshrl.u32 %v5397, 7
        %v5399 = vsub.s32 %v2136, %v5398
        %v5400 = vrot.slane %v4696, %v5399
        %v5401 = vsel %vm2141, %v5400, %v5396
        %v5402 = vlaneseq
        %v5403 = vshrl.u32 %v5402, 7
        %v5404 = vsub.s32 %v2143, %v5403
        %v5405 = vrot.slane %v4698, %v5404
        %v5406 = vsel %vm2148, %v5405, %v5401
        %v5407 = vlaneseq
        %v5408 = vshrl.u32 %v5407, 7
        %v5409 = vsub.s32 %v2150, %v5408
        %v5410 = vrot.slane %v4700, %v5409
        %v5411 = vsel %vm2155, %v5410, %v5406
        %v5412 = vlaneseq
        %v5413 = vshrl.u32 %v5412, 7
        %v5414 = vsub.s32 %v2157, %v5413
        %v5415 = vrot.slane %v4702, %v5414
        %v5416 = vsel %vm2162, %v5415, %v5411
        %v5417 = vlaneseq
        %v5418 = vshrl.u32 %v5417, 7
        %v5419 = vsub.s32 %v2164, %v5418
        %v5420 = vrot.slane %v4704, %v5419
        %v5421 = vsel %vm2169, %v5420, %v5416
        %v5422 = vlaneseq
        %v5423 = vshrl.u32 %v5422, 7
        %v5424 = vsub.s32 %v2061, %v5423
        %v5425 = vrot.slane %v4706, %v5424
        %v5426 = vlaneseq
        %v5427 = vshrl.u32 %v5426, 7
        %v5428 = vsub.s32 %v2066, %v5427
        %v5429 = vrot.slane %v4708, %v5428
        %v5430 = vsel %vm2071, %v5429, %v5425
        %v5431 = vlaneseq
        %v5432 = vshrl.u32 %v5431, 7
        %v5433 = vsub.s32 %v2073, %v5432
        %v5434 = vrot.slane %v4710, %v5433
        %v5435 = vsel %vm2078, %v5434, %v5430
        %v5436 = vlaneseq
        %v5437 = vshrl.u32 %v5436, 7
        %v5438 = vsub.s32 %v2080, %v5437
        %v5439 = vrot.slane %v4712, %v5438
        %v5440 = vsel %vm2085, %v5439, %v5435
        %v5441 = vlaneseq
        %v5442 = vshrl.u32 %v5441, 7
        %v5443 = vsub.s32 %v2087, %v5442
        %v5444 = vrot.slane %v4714, %v5443
        %v5445 = vsel %vm2092, %v5444, %v5440
        %v5446 = vlaneseq
        %v5447 = vshrl.u32 %v5446, 7
        %v5448 = vsub.s32 %v2094, %v5447
        %v5449 = vrot.slane %v4716, %v5448
        %v5450 = vsel %vm2099, %v5449, %v5445
        %v5451 = vlaneseq
        %v5452 = vshrl.u32 %v5451, 7
        %v5453 = vsub.s32 %v2101, %v5452
        %v5454 = vrot.slane %v4718, %v5453
        %v5455 = vsel %vm2106, %v5454, %v5450
        %v5456 = vlaneseq
        %v5457 = vshrl.u32 %v5456, 7
        %v5458 = vsub.s32 %v2108, %v5457
        %v5459 = vrot.slane %v4720, %v5458
        %v5460 = vsel %vm2113, %v5459, %v5455
        %v5461 = vlaneseq
        %v5462 = vshrl.u32 %v5461, 7
        %v5463 = vsub.s32 %v2115, %v5462
        %v5464 = vrot.slane %v4722, %v5463
        %v5465 = vsel %vm2120, %v5464, %v5460
        %v5466 = vlaneseq
        %v5467 = vshrl.u32 %v5466, 7
        %v5468 = vsub.s32 %v2122, %v5467
        %v5469 = vrot.slane %v4724, %v5468
        %v5470 = vsel %vm2127, %v5469, %v5465
        %v5471 = vlaneseq
        %v5472 = vshrl.u32 %v5471, 7
        %v5473 = vsub.s32 %v2129, %v5472
        %v5474 = vrot.slane %v4726, %v5473
        %v5475 = vsel %vm2134, %v5474, %v5470
        %v5476 = vlaneseq
        %v5477 = vshrl.u32 %v5476, 7
        %v5478 = vsub.s32 %v2136, %v5477
        %v5479 = vrot.slane %v4728, %v5478
        %v5480 = vsel %vm2141, %v5479, %v5475
        %v5481 = vlaneseq
        %v5482 = vshrl.u32 %v5481, 7
        %v5483 = vsub.s32 %v2143, %v5482
        %v5484 = vrot.slane %v4730, %v5483
        %v5485 = vsel %vm2148, %v5484, %v5480
        %v5486 = vlaneseq
        %v5487 = vshrl.u32 %v5486, 7
        %v5488 = vsub.s32 %v2150, %v5487
        %v5489 = vrot.slane %v4732, %v5488
        %v5490 = vsel %vm2155, %v5489, %v5485
        %v5491 = vlaneseq
        %v5492 = vshrl.u32 %v5491, 7
        %v5493 = vsub.s32 %v2157, %v5492
        %v5494 = vrot.slane %v4734, %v5493
        %v5495 = vsel %vm2162, %v5494, %v5490
        %v5496 = vlaneseq
        %v5497 = vshrl.u32 %v5496, 7
        %v5498 = vsub.s32 %v2164, %v5497
        %v5499 = vrot.slane %v4736, %v5498
        %v5500 = vsel %vm2169, %v5499, %v5495
        %v5501 = vlaneseq
        %v5502 = vshrl.u32 %v5501, 7
        %v5503 = vsub.s32 %v2061, %v5502
        %v5504 = vrot.slane %v4738, %v5503
        %v5505 = vlaneseq
        %v5506 = vshrl.u32 %v5505, 7
        %v5507 = vsub.s32 %v2066, %v5506
        %v5508 = vrot.slane %v4740, %v5507
        %v5509 = vsel %vm2071, %v5508, %v5504
        %v5510 = vlaneseq
        %v5511 = vshrl.u32 %v5510, 7
        %v5512 = vsub.s32 %v2073, %v5511
        %v5513 = vrot.slane %v4742, %v5512
        %v5514 = vsel %vm2078, %v5513, %v5509
        %v5515 = vlaneseq
        %v5516 = vshrl.u32 %v5515, 7
        %v5517 = vsub.s32 %v2080, %v5516
        %v5518 = vrot.slane %v4744, %v5517
        %v5519 = vsel %vm2085, %v5518, %v5514
        %v5520 = vlaneseq
        %v5521 = vshrl.u32 %v5520, 7
        %v5522 = vsub.s32 %v2087, %v5521
        %v5523 = vrot.slane %v4746, %v5522
        %v5524 = vsel %vm2092, %v5523, %v5519
        %v5525 = vlaneseq
        %v5526 = vshrl.u32 %v5525, 7
        %v5527 = vsub.s32 %v2094, %v5526
        %v5528 = vrot.slane %v4748, %v5527
        %v5529 = vsel %vm2099, %v5528, %v5524
        %v5530 = vlaneseq
        %v5531 = vshrl.u32 %v5530, 7
        %v5532 = vsub.s32 %v2101, %v5531
        %v5533 = vrot.slane %v4750, %v5532
        %v5534 = vsel %vm2106, %v5533, %v5529
        %v5535 = vlaneseq
        %v5536 = vshrl.u32 %v5535, 7
        %v5537 = vsub.s32 %v2108, %v5536
        %v5538 = vrot.slane %v4752, %v5537
        %v5539 = vsel %vm2113, %v5538, %v5534
        %v5540 = vlaneseq
        %v5541 = vshrl.u32 %v5540, 7
        %v5542 = vsub.s32 %v2115, %v5541
        %v5543 = vrot.slane %v4754, %v5542
        %v5544 = vsel %vm2120, %v5543, %v5539
        %v5545 = vlaneseq
        %v5546 = vshrl.u32 %v5545, 7
        %v5547 = vsub.s32 %v2122, %v5546
        %v5548 = vrot.slane %v4756, %v5547
        %v5549 = vsel %vm2127, %v5548, %v5544
        %v5550 = vlaneseq
        %v5551 = vshrl.u32 %v5550, 7
        %v5552 = vsub.s32 %v2129, %v5551
        %v5553 = vrot.slane %v4758, %v5552
        %v5554 = vsel %vm2134, %v5553, %v5549
        %v5555 = vlaneseq
        %v5556 = vshrl.u32 %v5555, 7
        %v5557 = vsub.s32 %v2136, %v5556
        %v5558 = vrot.slane %v4760, %v5557
        %v5559 = vsel %vm2141, %v5558, %v5554
        %v5560 = vlaneseq
        %v5561 = vshrl.u32 %v5560, 7
        %v5562 = vsub.s32 %v2143, %v5561
        %v5563 = vrot.slane %v4762, %v5562
        %v5564 = vsel %vm2148, %v5563, %v5559
        %v5565 = vlaneseq
        %v5566 = vshrl.u32 %v5565, 7
        %v5567 = vsub.s32 %v2150, %v5566
        %v5568 = vrot.slane %v4764, %v5567
        %v5569 = vsel %vm2155, %v5568, %v5564
        %v5570 = vlaneseq
        %v5571 = vshrl.u32 %v5570, 7
        %v5572 = vsub.s32 %v2157, %v5571
        %v5573 = vrot.slane %v4766, %v5572
        %v5574 = vsel %vm2162, %v5573, %v5569
        %v5575 = vlaneseq
        %v5576 = vshrl.u32 %v5575, 7
        %v5577 = vsub.s32 %v2164, %v5576
        %v5578 = vrot.slane %v4768, %v5577
        %v5579 = vsel %vm2169, %v5578, %v5574
        %v5580 = vlaneseq
        %v5581 = vshrl.u32 %v5580, 7
        %v5582 = vsub.s32 %v2061, %v5581
        %v5583 = vrot.slane %v4770, %v5582
        %v5584 = vlaneseq
        %v5585 = vshrl.u32 %v5584, 7
        %v5586 = vsub.s32 %v2066, %v5585
        %v5587 = vrot.slane %v4772, %v5586
        %v5588 = vsel %vm2071, %v5587, %v5583
        %v5589 = vlaneseq
        %v5590 = vshrl.u32 %v5589, 7
        %v5591 = vsub.s32 %v2073, %v5590
        %v5592 = vrot.slane %v4774, %v5591
        %v5593 = vsel %vm2078, %v5592, %v5588
        %v5594 = vlaneseq
        %v5595 = vshrl.u32 %v5594, 7
        %v5596 = vsub.s32 %v2080, %v5595
        %v5597 = vrot.slane %v4776, %v5596
        %v5598 = vsel %vm2085, %v5597, %v5593
        %v5599 = vlaneseq
        %v5600 = vshrl.u32 %v5599, 7
        %v5601 = vsub.s32 %v2087, %v5600
        %v5602 = vrot.slane %v4778, %v5601
        %v5603 = vsel %vm2092, %v5602, %v5598
        %v5604 = vlaneseq
        %v5605 = vshrl.u32 %v5604, 7
        %v5606 = vsub.s32 %v2094, %v5605
        %v5607 = vrot.slane %v4780, %v5606
        %v5608 = vsel %vm2099, %v5607, %v5603
        %v5609 = vlaneseq
        %v5610 = vshrl.u32 %v5609, 7
        %v5611 = vsub.s32 %v2101, %v5610
        %v5612 = vrot.slane %v4782, %v5611
        %v5613 = vsel %vm2106, %v5612, %v5608
        %v5614 = vlaneseq
        %v5615 = vshrl.u32 %v5614, 7
        %v5616 = vsub.s32 %v2108, %v5615
        %v5617 = vrot.slane %v4784, %v5616
        %v5618 = vsel %vm2113, %v5617, %v5613
        %v5619 = vlaneseq
        %v5620 = vshrl.u32 %v5619, 7
        %v5621 = vsub.s32 %v2115, %v5620
        %v5622 = vrot.slane %v4786, %v5621
        %v5623 = vsel %vm2120, %v5622, %v5618
        %v5624 = vlaneseq
        %v5625 = vshrl.u32 %v5624, 7
        %v5626 = vsub.s32 %v2122, %v5625
        %v5627 = vrot.slane %v4788, %v5626
        %v5628 = vsel %vm2127, %v5627, %v5623
        %v5629 = vlaneseq
        %v5630 = vshrl.u32 %v5629, 7
        %v5631 = vsub.s32 %v2129, %v5630
        %v5632 = vrot.slane %v4790, %v5631
        %v5633 = vsel %vm2134, %v5632, %v5628
        %v5634 = vlaneseq
        %v5635 = vshrl.u32 %v5634, 7
        %v5636 = vsub.s32 %v2136, %v5635
        %v5637 = vrot.slane %v4792, %v5636
        %v5638 = vsel %vm2141, %v5637, %v5633
        %v5639 = vlaneseq
        %v5640 = vshrl.u32 %v5639, 7
        %v5641 = vsub.s32 %v2143, %v5640
        %v5642 = vrot.slane %v4794, %v5641
        %v5643 = vsel %vm2148, %v5642, %v5638
        %v5644 = vlaneseq
        %v5645 = vshrl.u32 %v5644, 7
        %v5646 = vsub.s32 %v2150, %v5645
        %v5647 = vrot.slane %v4796, %v5646
        %v5648 = vsel %vm2155, %v5647, %v5643
        %v5649 = vlaneseq
        %v5650 = vshrl.u32 %v5649, 7
        %v5651 = vsub.s32 %v2157, %v5650
        %v5652 = vrot.slane %v4798, %v5651
        %v5653 = vsel %vm2162, %v5652, %v5648
        %v5654 = vlaneseq
        %v5655 = vshrl.u32 %v5654, 7
        %v5656 = vsub.s32 %v2164, %v5655
        %v5657 = vrot.slane %v4800, %v5656
        %v5658 = vsel %vm2169, %v5657, %v5653
        %v5659 = vlaneseq
        %v5660 = vshrl.u32 %v5659, 7
        %v5661 = vsub.s32 %v2061, %v5660
        %v5662 = vrot.slane %v4802, %v5661
        %v5663 = vlaneseq
        %v5664 = vshrl.u32 %v5663, 7
        %v5665 = vsub.s32 %v2066, %v5664
        %v5666 = vrot.slane %v4804, %v5665
        %v5667 = vsel %vm2071, %v5666, %v5662
        %v5668 = vlaneseq
        %v5669 = vshrl.u32 %v5668, 7
        %v5670 = vsub.s32 %v2073, %v5669
        %v5671 = vrot.slane %v4806, %v5670
        %v5672 = vsel %vm2078, %v5671, %v5667
        %v5673 = vlaneseq
        %v5674 = vshrl.u32 %v5673, 7
        %v5675 = vsub.s32 %v2080, %v5674
        %v5676 = vrot.slane %v4808, %v5675
        %v5677 = vsel %vm2085, %v5676, %v5672
        %v5678 = vlaneseq
        %v5679 = vshrl.u32 %v5678, 7
        %v5680 = vsub.s32 %v2087, %v5679
        %v5681 = vrot.slane %v4810, %v5680
        %v5682 = vsel %vm2092, %v5681, %v5677
        %v5683 = vlaneseq
        %v5684 = vshrl.u32 %v5683, 7
        %v5685 = vsub.s32 %v2094, %v5684
        %v5686 = vrot.slane %v4812, %v5685
        %v5687 = vsel %vm2099, %v5686, %v5682
        %v5688 = vlaneseq
        %v5689 = vshrl.u32 %v5688, 7
        %v5690 = vsub.s32 %v2101, %v5689
        %v5691 = vrot.slane %v4814, %v5690
        %v5692 = vsel %vm2106, %v5691, %v5687
        %v5693 = vlaneseq
        %v5694 = vshrl.u32 %v5693, 7
        %v5695 = vsub.s32 %v2108, %v5694
        %v5696 = vrot.slane %v4816, %v5695
        %v5697 = vsel %vm2113, %v5696, %v5692
        %v5698 = vlaneseq
        %v5699 = vshrl.u32 %v5698, 7
        %v5700 = vsub.s32 %v2115, %v5699
        %v5701 = vrot.slane %v4818, %v5700
        %v5702 = vsel %vm2120, %v5701, %v5697
        %v5703 = vlaneseq
        %v5704 = vshrl.u32 %v5703, 7
        %v5705 = vsub.s32 %v2122, %v5704
        %v5706 = vrot.slane %v4820, %v5705
        %v5707 = vsel %vm2127, %v5706, %v5702
        %v5708 = vlaneseq
        %v5709 = vshrl.u32 %v5708, 7
        %v5710 = vsub.s32 %v2129, %v5709
        %v5711 = vrot.slane %v4822, %v5710
        %v5712 = vsel %vm2134, %v5711, %v5707
        %v5713 = vlaneseq
        %v5714 = vshrl.u32 %v5713, 7
        %v5715 = vsub.s32 %v2136, %v5714
        %v5716 = vrot.slane %v4824, %v5715
        %v5717 = vsel %vm2141, %v5716, %v5712
        %v5718 = vlaneseq
        %v5719 = vshrl.u32 %v5718, 7
        %v5720 = vsub.s32 %v2143, %v5719
        %v5721 = vrot.slane %v4826, %v5720
        %v5722 = vsel %vm2148, %v5721, %v5717
        %v5723 = vlaneseq
        %v5724 = vshrl.u32 %v5723, 7
        %v5725 = vsub.s32 %v2150, %v5724
        %v5726 = vrot.slane %v4828, %v5725
        %v5727 = vsel %vm2155, %v5726, %v5722
        %v5728 = vlaneseq
        %v5729 = vshrl.u32 %v5728, 7
        %v5730 = vsub.s32 %v2157, %v5729
        %v5731 = vrot.slane %v4830, %v5730
        %v5732 = vsel %vm2162, %v5731, %v5727
        %v5733 = vlaneseq
        %v5734 = vshrl.u32 %v5733, 7
        %v5735 = vsub.s32 %v2164, %v5734
        %v5736 = vrot.slane %v4832, %v5735
        %v5737 = vsel %vm2169, %v5736, %v5732
        %v5738 = vlaneseq
        %v5739 = vshrl.u32 %v5738, 7
        %v5740 = vsub.s32 %v2061, %v5739
        %v5741 = vrot.slane %v4834, %v5740
        %v5742 = vlaneseq
        %v5743 = vshrl.u32 %v5742, 7
        %v5744 = vsub.s32 %v2066, %v5743
        %v5745 = vrot.slane %v4836, %v5744
        %v5746 = vsel %vm2071, %v5745, %v5741
        %v5747 = vlaneseq
        %v5748 = vshrl.u32 %v5747, 7
        %v5749 = vsub.s32 %v2073, %v5748
        %v5750 = vrot.slane %v4838, %v5749
        %v5751 = vsel %vm2078, %v5750, %v5746
        %v5752 = vlaneseq
        %v5753 = vshrl.u32 %v5752, 7
        %v5754 = vsub.s32 %v2080, %v5753
        %v5755 = vrot.slane %v4840, %v5754
        %v5756 = vsel %vm2085, %v5755, %v5751
        %v5757 = vlaneseq
        %v5758 = vshrl.u32 %v5757, 7
        %v5759 = vsub.s32 %v2087, %v5758
        %v5760 = vrot.slane %v4842, %v5759
        %v5761 = vsel %vm2092, %v5760, %v5756
        %v5762 = vlaneseq
        %v5763 = vshrl.u32 %v5762, 7
        %v5764 = vsub.s32 %v2094, %v5763
        %v5765 = vrot.slane %v4844, %v5764
        %v5766 = vsel %vm2099, %v5765, %v5761
        %v5767 = vlaneseq
        %v5768 = vshrl.u32 %v5767, 7
        %v5769 = vsub.s32 %v2101, %v5768
        %v5770 = vrot.slane %v4846, %v5769
        %v5771 = vsel %vm2106, %v5770, %v5766
        %v5772 = vlaneseq
        %v5773 = vshrl.u32 %v5772, 7
        %v5774 = vsub.s32 %v2108, %v5773
        %v5775 = vrot.slane %v4848, %v5774
        %v5776 = vsel %vm2113, %v5775, %v5771
        %v5777 = vlaneseq
        %v5778 = vshrl.u32 %v5777, 7
        %v5779 = vsub.s32 %v2115, %v5778
        %v5780 = vrot.slane %v4850, %v5779
        %v5781 = vsel %vm2120, %v5780, %v5776
        %v5782 = vlaneseq
        %v5783 = vshrl.u32 %v5782, 7
        %v5784 = vsub.s32 %v2122, %v5783
        %v5785 = vrot.slane %v4852, %v5784
        %v5786 = vsel %vm2127, %v5785, %v5781
        %v5787 = vlaneseq
        %v5788 = vshrl.u32 %v5787, 7
        %v5789 = vsub.s32 %v2129, %v5788
        %v5790 = vrot.slane %v4854, %v5789
        %v5791 = vsel %vm2134, %v5790, %v5786
        %v5792 = vlaneseq
        %v5793 = vshrl.u32 %v5792, 7
        %v5794 = vsub.s32 %v2136, %v5793
        %v5795 = vrot.slane %v4856, %v5794
        %v5796 = vsel %vm2141, %v5795, %v5791
        %v5797 = vlaneseq
        %v5798 = vshrl.u32 %v5797, 7
        %v5799 = vsub.s32 %v2143, %v5798
        %v5800 = vrot.slane %v4858, %v5799
        %v5801 = vsel %vm2148, %v5800, %v5796
        %v5802 = vlaneseq
        %v5803 = vshrl.u32 %v5802, 7
        %v5804 = vsub.s32 %v2150, %v5803
        %v5805 = vrot.slane %v4860, %v5804
        %v5806 = vsel %vm2155, %v5805, %v5801
        %v5807 = vlaneseq
        %v5808 = vshrl.u32 %v5807, 7
        %v5809 = vsub.s32 %v2157, %v5808
        %v5810 = vrot.slane %v4862, %v5809
        %v5811 = vsel %vm2162, %v5810, %v5806
        %v5812 = vlaneseq
        %v5813 = vshrl.u32 %v5812, 7
        %v5814 = vsub.s32 %v2164, %v5813
        %v5815 = vrot.slane %v4864, %v5814
        %v5816 = vsel %vm2169, %v5815, %v5811
        %v5817 = vlaneseq
        %v5818 = vshrl.u32 %v5817, 7
        %v5819 = vsub.s32 %v2061, %v5818
        %v5820 = vrot.slane %v4866, %v5819
        %v5821 = vlaneseq
        %v5822 = vshrl.u32 %v5821, 7
        %v5823 = vsub.s32 %v2066, %v5822
        %v5824 = vrot.slane %v4868, %v5823
        %v5825 = vsel %vm2071, %v5824, %v5820
        %v5826 = vlaneseq
        %v5827 = vshrl.u32 %v5826, 7
        %v5828 = vsub.s32 %v2073, %v5827
        %v5829 = vrot.slane %v4870, %v5828
        %v5830 = vsel %vm2078, %v5829, %v5825
        %v5831 = vlaneseq
        %v5832 = vshrl.u32 %v5831, 7
        %v5833 = vsub.s32 %v2080, %v5832
        %v5834 = vrot.slane %v4872, %v5833
        %v5835 = vsel %vm2085, %v5834, %v5830
        %v5836 = vlaneseq
        %v5837 = vshrl.u32 %v5836, 7
        %v5838 = vsub.s32 %v2087, %v5837
        %v5839 = vrot.slane %v4874, %v5838
        %v5840 = vsel %vm2092, %v5839, %v5835
        %v5841 = vlaneseq
        %v5842 = vshrl.u32 %v5841, 7
        %v5843 = vsub.s32 %v2094, %v5842
        %v5844 = vrot.slane %v4876, %v5843
        %v5845 = vsel %vm2099, %v5844, %v5840
        %v5846 = vlaneseq
        %v5847 = vshrl.u32 %v5846, 7
        %v5848 = vsub.s32 %v2101, %v5847
        %v5849 = vrot.slane %v4878, %v5848
        %v5850 = vsel %vm2106, %v5849, %v5845
        %v5851 = vlaneseq
        %v5852 = vshrl.u32 %v5851, 7
        %v5853 = vsub.s32 %v2108, %v5852
        %v5854 = vrot.slane %v4880, %v5853
        %v5855 = vsel %vm2113, %v5854, %v5850
        %v5856 = vlaneseq
        %v5857 = vshrl.u32 %v5856, 7
        %v5858 = vsub.s32 %v2115, %v5857
        %v5859 = vrot.slane %v4882, %v5858
        %v5860 = vsel %vm2120, %v5859, %v5855
        %v5861 = vlaneseq
        %v5862 = vshrl.u32 %v5861, 7
        %v5863 = vsub.s32 %v2122, %v5862
        %v5864 = vrot.slane %v4884, %v5863
        %v5865 = vsel %vm2127, %v5864, %v5860
        %v5866 = vlaneseq
        %v5867 = vshrl.u32 %v5866, 7
        %v5868 = vsub.s32 %v2129, %v5867
        %v5869 = vrot.slane %v4886, %v5868
        %v5870 = vsel %vm2134, %v5869, %v5865
        %v5871 = vlaneseq
        %v5872 = vshrl.u32 %v5871, 7
        %v5873 = vsub.s32 %v2136, %v5872
        %v5874 = vrot.slane %v4888, %v5873
        %v5875 = vsel %vm2141, %v5874, %v5870
        %v5876 = vlaneseq
        %v5877 = vshrl.u32 %v5876, 7
        %v5878 = vsub.s32 %v2143, %v5877
        %v5879 = vrot.slane %v4890, %v5878
        %v5880 = vsel %vm2148, %v5879, %v5875
        %v5881 = vlaneseq
        %v5882 = vshrl.u32 %v5881, 7
        %v5883 = vsub.s32 %v2150, %v5882
        %v5884 = vrot.slane %v4892, %v5883
        %v5885 = vsel %vm2155, %v5884, %v5880
        %v5886 = vlaneseq
        %v5887 = vshrl.u32 %v5886, 7
        %v5888 = vsub.s32 %v2157, %v5887
        %v5889 = vrot.slane %v4894, %v5888
        %v5890 = vsel %vm2162, %v5889, %v5885
        %v5891 = vlaneseq
        %v5892 = vshrl.u32 %v5891, 7
        %v5893 = vsub.s32 %v2164, %v5892
        %v5894 = vrot.slane %v4896, %v5893
        %v5895 = vsel %vm2169, %v5894, %v5890
        %v5896 = vlaneseq
        %v5897 = vshrl.u32 %v5896, 7
        %v5898 = vsub.s32 %v2061, %v5897
        %v5899 = vrot.slane %v4898, %v5898
        %v5900 = vlaneseq
        %v5901 = vshrl.u32 %v5900, 7
        %v5902 = vsub.s32 %v2066, %v5901
        %v5903 = vrot.slane %v4900, %v5902
        %v5904 = vsel %vm2071, %v5903, %v5899
        %v5905 = vlaneseq
        %v5906 = vshrl.u32 %v5905, 7
        %v5907 = vsub.s32 %v2073, %v5906
        %v5908 = vrot.slane %v4902, %v5907
        %v5909 = vsel %vm2078, %v5908, %v5904
        %v5910 = vlaneseq
        %v5911 = vshrl.u32 %v5910, 7
        %v5912 = vsub.s32 %v2080, %v5911
        %v5913 = vrot.slane %v4904, %v5912
        %v5914 = vsel %vm2085, %v5913, %v5909
        %v5915 = vlaneseq
        %v5916 = vshrl.u32 %v5915, 7
        %v5917 = vsub.s32 %v2087, %v5916
        %v5918 = vrot.slane %v4906, %v5917
        %v5919 = vsel %vm2092, %v5918, %v5914
        %v5920 = vlaneseq
        %v5921 = vshrl.u32 %v5920, 7
        %v5922 = vsub.s32 %v2094, %v5921
        %v5923 = vrot.slane %v4908, %v5922
        %v5924 = vsel %vm2099, %v5923, %v5919
        %v5925 = vlaneseq
        %v5926 = vshrl.u32 %v5925, 7
        %v5927 = vsub.s32 %v2101, %v5926
        %v5928 = vrot.slane %v4910, %v5927
        %v5929 = vsel %vm2106, %v5928, %v5924
        %v5930 = vlaneseq
        %v5931 = vshrl.u32 %v5930, 7
        %v5932 = vsub.s32 %v2108, %v5931
        %v5933 = vrot.slane %v4912, %v5932
        %v5934 = vsel %vm2113, %v5933, %v5929
        %v5935 = vlaneseq
        %v5936 = vshrl.u32 %v5935, 7
        %v5937 = vsub.s32 %v2115, %v5936
        %v5938 = vrot.slane %v4914, %v5937
        %v5939 = vsel %vm2120, %v5938, %v5934
        %v5940 = vlaneseq
        %v5941 = vshrl.u32 %v5940, 7
        %v5942 = vsub.s32 %v2122, %v5941
        %v5943 = vrot.slane %v4916, %v5942
        %v5944 = vsel %vm2127, %v5943, %v5939
        %v5945 = vlaneseq
        %v5946 = vshrl.u32 %v5945, 7
        %v5947 = vsub.s32 %v2129, %v5946
        %v5948 = vrot.slane %v4918, %v5947
        %v5949 = vsel %vm2134, %v5948, %v5944
        %v5950 = vlaneseq
        %v5951 = vshrl.u32 %v5950, 7
        %v5952 = vsub.s32 %v2136, %v5951
        %v5953 = vrot.slane %v4920, %v5952
        %v5954 = vsel %vm2141, %v5953, %v5949
        %v5955 = vlaneseq
        %v5956 = vshrl.u32 %v5955, 7
        %v5957 = vsub.s32 %v2143, %v5956
        %v5958 = vrot.slane %v4922, %v5957
        %v5959 = vsel %vm2148, %v5958, %v5954
        %v5960 = vlaneseq
        %v5961 = vshrl.u32 %v5960, 7
        %v5962 = vsub.s32 %v2150, %v5961
        %v5963 = vrot.slane %v4924, %v5962
        %v5964 = vsel %vm2155, %v5963, %v5959
        %v5965 = vlaneseq
        %v5966 = vshrl.u32 %v5965, 7
        %v5967 = vsub.s32 %v2157, %v5966
        %v5968 = vrot.slane %v4926, %v5967
        %v5969 = vsel %vm2162, %v5968, %v5964
        %v5970 = vlaneseq
        %v5971 = vshrl.u32 %v5970, 7
        %v5972 = vsub.s32 %v2164, %v5971
        %v5973 = vrot.slane %v4928, %v5972
        %v5974 = vsel %vm2169, %v5973, %v5969
        %v5975 = vlaneseq
        %v5976 = vshrl.u32 %v5975, 7
        %v5977 = vsub.s32 %v2061, %v5976
        %v5978 = vrot.slane %v4930, %v5977
        %v5979 = vlaneseq
        %v5980 = vshrl.u32 %v5979, 7
        %v5981 = vsub.s32 %v2066, %v5980
        %v5982 = vrot.slane %v4932, %v5981
        %v5983 = vsel %vm2071, %v5982, %v5978
        %v5984 = vlaneseq
        %v5985 = vshrl.u32 %v5984, 7
        %v5986 = vsub.s32 %v2073, %v5985
        %v5987 = vrot.slane %v4934, %v5986
        %v5988 = vsel %vm2078, %v5987, %v5983
        %v5989 = vlaneseq
        %v5990 = vshrl.u32 %v5989, 7
        %v5991 = vsub.s32 %v2080, %v5990
        %v5992 = vrot.slane %v4936, %v5991
        %v5993 = vsel %vm2085, %v5992, %v5988
        %v5994 = vlaneseq
        %v5995 = vshrl.u32 %v5994, 7
        %v5996 = vsub.s32 %v2087, %v5995
        %v5997 = vrot.slane %v4938, %v5996
        %v5998 = vsel %vm2092, %v5997, %v5993
        %v5999 = vlaneseq
        %v6000 = vshrl.u32 %v5999, 7
        %v6001 = vsub.s32 %v2094, %v6000
        %v6002 = vrot.slane %v4940, %v6001
        %v6003 = vsel %vm2099, %v6002, %v5998
        %v6004 = vlaneseq
        %v6005 = vshrl.u32 %v6004, 7
        %v6006 = vsub.s32 %v2101, %v6005
        %v6007 = vrot.slane %v4942, %v6006
        %v6008 = vsel %vm2106, %v6007, %v6003
        %v6009 = vlaneseq
        %v6010 = vshrl.u32 %v6009, 7
        %v6011 = vsub.s32 %v2108, %v6010
        %v6012 = vrot.slane %v4944, %v6011
        %v6013 = vsel %vm2113, %v6012, %v6008
        %v6014 = vlaneseq
        %v6015 = vshrl.u32 %v6014, 7
        %v6016 = vsub.s32 %v2115, %v6015
        %v6017 = vrot.slane %v4946, %v6016
        %v6018 = vsel %vm2120, %v6017, %v6013
        %v6019 = vlaneseq
        %v6020 = vshrl.u32 %v6019, 7
        %v6021 = vsub.s32 %v2122, %v6020
        %v6022 = vrot.slane %v4948, %v6021
        %v6023 = vsel %vm2127, %v6022, %v6018
        %v6024 = vlaneseq
        %v6025 = vshrl.u32 %v6024, 7
        %v6026 = vsub.s32 %v2129, %v6025
        %v6027 = vrot.slane %v4950, %v6026
        %v6028 = vsel %vm2134, %v6027, %v6023
        %v6029 = vlaneseq
        %v6030 = vshrl.u32 %v6029, 7
        %v6031 = vsub.s32 %v2136, %v6030
        %v6032 = vrot.slane %v4952, %v6031
        %v6033 = vsel %vm2141, %v6032, %v6028
        %v6034 = vlaneseq
        %v6035 = vshrl.u32 %v6034, 7
        %v6036 = vsub.s32 %v2143, %v6035
        %v6037 = vrot.slane %v4954, %v6036
        %v6038 = vsel %vm2148, %v6037, %v6033
        %v6039 = vlaneseq
        %v6040 = vshrl.u32 %v6039, 7
        %v6041 = vsub.s32 %v2150, %v6040
        %v6042 = vrot.slane %v4956, %v6041
        %v6043 = vsel %vm2155, %v6042, %v6038
        %v6044 = vlaneseq
        %v6045 = vshrl.u32 %v6044, 7
        %v6046 = vsub.s32 %v2157, %v6045
        %v6047 = vrot.slane %v4958, %v6046
        %v6048 = vsel %vm2162, %v6047, %v6043
        %v6049 = vlaneseq
        %v6050 = vshrl.u32 %v6049, 7
        %v6051 = vsub.s32 %v2164, %v6050
        %v6052 = vrot.slane %v4960, %v6051
        %v6053 = vsel %vm2169, %v6052, %v6048
        %v6054 = vlaneseq
        %v6055 = vshrl.u32 %v6054, 7
        %v6056 = vsub.s32 %v2061, %v6055
        %v6057 = vrot.slane %v4962, %v6056
        %v6058 = vlaneseq
        %v6059 = vshrl.u32 %v6058, 7
        %v6060 = vsub.s32 %v2066, %v6059
        %v6061 = vrot.slane %v4964, %v6060
        %v6062 = vsel %vm2071, %v6061, %v6057
        %v6063 = vlaneseq
        %v6064 = vshrl.u32 %v6063, 7
        %v6065 = vsub.s32 %v2073, %v6064
        %v6066 = vrot.slane %v4966, %v6065
        %v6067 = vsel %vm2078, %v6066, %v6062
        %v6068 = vlaneseq
        %v6069 = vshrl.u32 %v6068, 7
        %v6070 = vsub.s32 %v2080, %v6069
        %v6071 = vrot.slane %v4968, %v6070
        %v6072 = vsel %vm2085, %v6071, %v6067
        %v6073 = vlaneseq
        %v6074 = vshrl.u32 %v6073, 7
        %v6075 = vsub.s32 %v2087, %v6074
        %v6076 = vrot.slane %v4970, %v6075
        %v6077 = vsel %vm2092, %v6076, %v6072
        %v6078 = vlaneseq
        %v6079 = vshrl.u32 %v6078, 7
        %v6080 = vsub.s32 %v2094, %v6079
        %v6081 = vrot.slane %v4972, %v6080
        %v6082 = vsel %vm2099, %v6081, %v6077
        %v6083 = vlaneseq
        %v6084 = vshrl.u32 %v6083, 7
        %v6085 = vsub.s32 %v2101, %v6084
        %v6086 = vrot.slane %v4974, %v6085
        %v6087 = vsel %vm2106, %v6086, %v6082
        %v6088 = vlaneseq
        %v6089 = vshrl.u32 %v6088, 7
        %v6090 = vsub.s32 %v2108, %v6089
        %v6091 = vrot.slane %v4976, %v6090
        %v6092 = vsel %vm2113, %v6091, %v6087
        %v6093 = vlaneseq
        %v6094 = vshrl.u32 %v6093, 7
        %v6095 = vsub.s32 %v2115, %v6094
        %v6096 = vrot.slane %v4978, %v6095
        %v6097 = vsel %vm2120, %v6096, %v6092
        %v6098 = vlaneseq
        %v6099 = vshrl.u32 %v6098, 7
        %v6100 = vsub.s32 %v2122, %v6099
        %v6101 = vrot.slane %v4980, %v6100
        %v6102 = vsel %vm2127, %v6101, %v6097
        %v6103 = vlaneseq
        %v6104 = vshrl.u32 %v6103, 7
        %v6105 = vsub.s32 %v2129, %v6104
        %v6106 = vrot.slane %v4982, %v6105
        %v6107 = vsel %vm2134, %v6106, %v6102
        %v6108 = vlaneseq
        %v6109 = vshrl.u32 %v6108, 7
        %v6110 = vsub.s32 %v2136, %v6109
        %v6111 = vrot.slane %v4984, %v6110
        %v6112 = vsel %vm2141, %v6111, %v6107
        %v6113 = vlaneseq
        %v6114 = vshrl.u32 %v6113, 7
        %v6115 = vsub.s32 %v2143, %v6114
        %v6116 = vrot.slane %v4986, %v6115
        %v6117 = vsel %vm2148, %v6116, %v6112
        %v6118 = vlaneseq
        %v6119 = vshrl.u32 %v6118, 7
        %v6120 = vsub.s32 %v2150, %v6119
        %v6121 = vrot.slane %v4988, %v6120
        %v6122 = vsel %vm2155, %v6121, %v6117
        %v6123 = vlaneseq
        %v6124 = vshrl.u32 %v6123, 7
        %v6125 = vsub.s32 %v2157, %v6124
        %v6126 = vrot.slane %v4990, %v6125
        %v6127 = vsel %vm2162, %v6126, %v6122
        %v6128 = vlaneseq
        %v6129 = vshrl.u32 %v6128, 7
        %v6130 = vsub.s32 %v2164, %v6129
        %v6131 = vrot.slane %v4992, %v6130
        %v6132 = vsel %vm2169, %v6131, %v6127
        %v6133 = vsel %vm3040, %v5342, %v5263
        %v6134 = vsel %vm3042, %v5421, %v6133
        %v6135 = vsel %vm3044, %v5500, %v6134
        %v6136 = vsel %vm3046, %v5579, %v6135
        %v6137 = vsel %vm3048, %v5658, %v6136
        %v6138 = vsel %vm3050, %v5737, %v6137
        %v6139 = vsel %vm3052, %v5816, %v6138
        %v6140 = vsel %vm3040, %v5974, %v5895
        %v6141 = vsel %vm3042, %v6053, %v6140
        %v6142 = vsel %vm3044, %v6132, %v6141
        %6145 = vadd.xlane.f32.xlu0 %v6139
        %v6146 = vpop.xlane.xlu0 %6145
        %v6147 = vsel %vm3061, %v6142, 0.0
        %6148 = vadd.xlane.f32.xlu0 %v6147
        %v6149 = vpop.xlane.xlu0 %6148
        %v6150 = vmul.f32 %v6146, 8192.0
        %v6151 = vmul.f32 %v6149, 8192.0
        %vm6152 = vcmp.eq.s32.totalorder %v2061, 0
        %vm6153 = vcmp.eq.s32.totalorder %v2061, 1
        %v6154 = vsel %vm6153, %v6150, 0.0
        %v6155 = vsel %vm6153, %v6151, 0.0
        %v6156 = vsel %vm6152, %v3071, %v6154
        %v6157 = vsel %vm6152, %v3072, %v6155
        %6158 = vst [vmem:[%s138] sm:$0xff] %v6156
        %6159 = vst [vmem:[%s138 + $0x8] sm:$0xf] %v6157
        %p6160 = scmp.lt.s32.totalorder %s15, 1
        %s6161 = scalar_select %p6160, %s15, 1
        %s6162 = smul.addr %s6161, 2
        %s6163 = smul.addr %s6162, 8
        %s6164 = scalar_lea.vmem %s1, %s6163
        // Predicated region
        $region29: #{tpu_custom_call.1} parent=23 // pred_check
          %p6165 = pneg %p59
        $region30: #{tpu_custom_call.1} parent=23 // pred_check_branch
          %6167 = sbr.rel (%p6165) target = $region32
        $region31: #{tpu_custom_call.1} parent=23 // pred_region
          _
        $region32: #{tpu_custom_call.1} parent=23 // pred_fallthru
          _
      $region24: #{tpu_custom_call.1} parent=5 // pred_fallthru
        _
      %p6168 = scmp.le.s32.totalorder 2, %s10
      // Predicated region
      $region33: #{tpu_custom_call.1} parent=5 // pred_check
        %p6169 = pneg %p6168
      $region34: #{tpu_custom_call.1} parent=5 // pred_check_branch
        %6171 = sbr.rel (%p6169) target = $region36
      $region35: #{tpu_custom_call.1} parent=5 // pred_region
        %s6172 = ssub.s32 %s10, 2
        // Predicated region
        $region37: #{tpu_custom_call.1} parent=35 // pred_check
          %p6173 = pneg %p65
        $region38: #{tpu_custom_call.1} parent=35 // pred_check_branch
          %6175 = sbr.rel (%p6173) target = $region40
        $region39: #{tpu_custom_call.1} parent=35 // pred_region
          %p6176 = scmp.lt.s32.totalorder %s16, 1
          %s6177 = scalar_select %p6176, %s16, 1
          %s6178 = smul.addr %s6177, 2
          %s6179 = smul.addr %s6178, 8
          %s6180 = scalar_lea.vmem %s1, %s6179
        $region40: #{tpu_custom_call.1} parent=35 // pred_fallthru
          _
      $region36: #{tpu_custom_call.1} parent=5 // pred_fallthru
        _
    $region6: #{tpu_custom_call.1} parent=1 // loop_footer
      %s14 = sadd.s32 1, %s10
    $region7: #{tpu_custom_call.1} parent=1 // loop_footer_branch
      %9 = sbr.rel target = $region3
    $region8: #{tpu_custom_call.1} parent=1 // loop_exit
      _
    %6181 = vsyncpa [#allocation3], 1
    %s6182 = scalar_lea.sflag [#allocation3], 1
    %6183 = vsyncpa %s6182, 1

</llo_original>
